<compile_context>
chip_gen: v6e
topology: v6e:2x2x1
jax: 0.10.0
libtpu: 0.0.40
codegen_flags: <defaults>
</compile_context>

<pallas_src>
import jax
import jax.numpy as jnp
from jax.experimental import pallas as pl
from jax.experimental.pallas import tpu as pltpu

# ---------------- module hyper-parameters (small, consistent with the forward) ----------------
B = 2                               # batch_size
N = 8                               # num_rois
V_DIM = 32                          # v_dim == out_dim  -> v_transform / cap_transform are None
Q_DIM = 32                          # q_dim (Q and q share this width so concat widths match)
OUT_DIM = 32
IN_DIM = OUT_DIM + Q_DIM            # 64, BN / GAT input width
LABEL_NUM = 4
DIR_NUM = 2
NUM_HEADS = 4
HEAD_DIM = OUT_DIM // NUM_HEADS     # 8
HID_DIM = NUM_HEADS * HEAD_DIM      # 32
FILM_DIM = 2 * IN_DIM               # FiLMGen(module_dim=in_dim) emits 2*in_dim; module slices 2*out_dim
NUM_STEPS = 1
BN_EPS = 1e-5
NEG_INF = -1e9
INV_SQRT_HD = 1.0 / (float(HEAD_DIM) ** 0.5)

# packed, 128-lane-aligned projection layout per direction:
#   [ q (HID=32) | k (HID=32) | v'_h0 (32) .. v'_h3 (32) | pad (64) ]  -> 256 columns
PER_DIR = 256
PROJ_COLS = DIR_NUM * PER_DIR       # 512
BO_OFF = PROJ_COLS                  # 512  : averaged output bias (OUT_DIM)
FB_OFF = BO_OFF + OUT_DIM           # 544  : FiLM bias (2*OUT_DIM, gamma_baseline folded)
PSMALL = 640                        # padded to a 128-lane multiple


# ---------------------------------------- fused kernel ----------------------------------------
def _fused_kernel(xcat_ref, mbias_ref, wcat_ref, wfilm_ref, psmall_ref, out_ref):
    # xcat  : [2, B*N, IN_DIM]          branch 0 = concat(cap, q_expand), branch 1 = concat(v, Q_expand)
    # mbias : [2, DIR, B*N, B*N]        block-diagonal label bias + adjacency/-batch mask folded to -1e9
    # wcat  : [2, IN_DIM, PROJ_COLS]    BN / Wo / 1/sqrt(hd) / 1/DIR folded stacked projection
    # wfilm : [2, OUT_DIM, 2*OUT_DIM]
    # psmall: [2, PSMALL]               [ proj bias (512) | bo_avg (32) | film bias (64) | pad (32) ]
    # out   : [B*N, 2*OUT_DIM]          [ exp_v | exp_cap ] packed along lanes (single store region)
    bn_rows = xcat_ref.shape[1]                                # B*N

    x_l = xcat_ref[0]                                          # [BN, IN_DIM]
    x_r = xcat_ref[1]
    mball = mbias_ref[...]                                     # [2, DIR, BN, BN]
    w_l = wcat_ref[0]                                          # [IN_DIM, PROJ_COLS]
    w_r = wcat_ref[1]

    exp_cap = x_l[:, :OUT_DIM]                                 # residual bases
    exp_v = x_r[:, :OUT_DIM]

    # --- hoisted, step-invariant pieces (broadcasts emitted once; q-part projections constant) ---
    pbias = [psmall_ref[br][:PROJ_COLS][None, :] for br in (0, 1)]           # [1, 512]
    bo_avg = [psmall_ref[br][BO_OFF:BO_OFF + OUT_DIM][None, :] for br in (0, 1)]
    fbias = [psmall_ref[br][FB_OFF:FB_OFF + 2 * OUT_DIM][None, :] for br in (0, 1)]
    wproj = [w_l, w_r]
    # q_expand part never changes across steps -> its projection is hoisted out of the step loop
    qproj = [jnp.dot(x_l[:, OUT_DIM:], w_l[OUT_DIM:, :], preferred_element_type=jnp.float32),
             jnp.dot(x_r[:, OUT_DIM:], w_r[OUT_DIM:, :], preferred_element_type=jnp.float32)]

    def gat_branch(act, br):
        # q_expand_v_cat zero-row mask (rows whose feature row sums to zero drop the q contribution,
        # masked BEFORE BatchNorm -> the BN shift term stays in pbias for every row).
        row_ok = (jnp.sum(act, axis=-1, keepdims=True) != 0.0).astype(jnp.float32)     # [BN, 1]
        proj = (jnp.dot(act, wproj[br][:OUT_DIM, :], preferred_element_type=jnp.float32)
                + row_ok * qproj[br] + pbias[br])                                       # [BN, 512]

        acc = jnp.zeros((bn_rows, OUT_DIM), jnp.float32)
        for d in range(DIR_NUM):
            off = d * PER_DIR
            # single [BN, HID] -> [HID, BN] transpose per (branch, direction); per-head k^T is a
            # sublane slice of it (replaces 4 tiny per-head [8,8] transposes).
            k_t = proj[:, off + HID_DIM:off + 2 * HID_DIM].T                            # [HID, BN]
            mb = mball[br, d]                                                           # [BN, BN]
            for h in range(NUM_HEADS):
                qh = proj[:, off + h * HEAD_DIM: off + (h + 1) * HEAD_DIM]              # [BN, HD]
                kht = k_t[h * HEAD_DIM:(h + 1) * HEAD_DIM, :]                           # [HD, BN]
                vo = proj[:, off + 2 * HID_DIM + h * OUT_DIM:
                          off + 2 * HID_DIM + (h + 1) * OUT_DIM]                        # [BN, OUT]
                # 1/sqrt(head_dim) already folded into the q columns on the host
                s = jnp.dot(qh, kht, preferred_element_type=jnp.float32) + mb
                s = s - jnp.max(s, axis=-1, keepdims=True)
                p = jnp.exp(s)
                p = p * pl.reciprocal(jnp.sum(p, axis=-1, keepdims=True), approx=True)
                acc = acc + jnp.dot(p, vo, preferred_element_type=jnp.float32)
        # 1/DIR_NUM folded into v' columns / bias; bo averaged over directions on the host
        return jax.nn.relu(acc + bo_avg[br])

    for _ in range(NUM_STEPS):
        cap_rel = gat_branch(exp_cap, 0)       # explicit_relation_L
        v_rel = gat_branch(exp_v, 1)           # explicit_relation_R

        # FiLM generators (linear) + CROSS modulation + ReLU + residual.
        # gamma_baseline=1 is folded into the gs half of the FiLM bias on the host.
        lf = jnp.dot(cap_rel, wfilm_ref[0], preferred_element_type=jnp.float32) + fbias[0]
        rf = jnp.dot(v_rel, wfilm_ref[1], preferred_element_type=jnp.float32) + fbias[1]
        exp_v = exp_v + jax.nn.relu(v_rel * lf[:, :OUT_DIM] + lf[:, OUT_DIM:])
        exp_cap = exp_cap + jax.nn.relu(cap_rel * rf[:, :OUT_DIM] + rf[:, OUT_DIM:])

    out_ref[...] = jnp.concatenate([exp_v, exp_cap], axis=-1)


# ------------------------------------ host-side parameter folding ------------------------------------
def _fold_branch(gat_p, bn_p, film_p):
    """Fold eval-mode BN, per-head output projection, 1/sqrt(hd), 1/DIR and FiLM gamma baseline."""
    scale = bn_p["gamma"] * jax.lax.rsqrt(bn_p["var"] + BN_EPS)         # [IN_DIM]
    shift = bn_p["beta"] - bn_p["mean"] * scale                         # [IN_DIM]
    blocks = []
    for d in range(DIR_NUM):
        wq = gat_p["wq"][d] * INV_SQRT_HD                               # fold attention scale into q
        wk = gat_p["wk"][d]
        wv, wo = gat_p["wv"][d], gat_p["wo"][d]
        # fold output projection into the value projection per head, and the direction mean into v'
        wvo = jnp.concatenate(
            [wv[:, h * HEAD_DIM:(h + 1) * HEAD_DIM] @ wo[h * HEAD_DIM:(h + 1) * HEAD_DIM, :]
             for h in range(NUM_HEADS)], axis=-1) * (1.0 / DIR_NUM)     # [IN_DIM, NUM_HEADS*OUT]
        pad = jnp.zeros((IN_DIM, PER_DIR - 2 * HID_DIM - NUM_HEADS * OUT_DIM), jnp.float32)
        blocks.append(jnp.concatenate([wq, wk, wvo, pad], axis=-1))     # [IN_DIM, 256]
    w_all = jnp.concatenate(blocks, axis=-1)                            # [IN_DIM, PROJ_COLS]
    w_fold = scale[:, None] * w_all
    b_fold = shift @ w_all                                              # [PROJ_COLS]

    bo_avg = jnp.mean(gat_p["bo"], axis=0)                              # (bo_0 + bo_1)/DIR  [OUT_DIM]
    fbias = film_p["b"][:2 * OUT_DIM]
    fbias = fbias.at[:OUT_DIM].add(1.0)                                 # gamma_baseline = 1
    p_small = jnp.concatenate(
        [b_fold, bo_avg, fbias, jnp.zeros((PSMALL - FB_OFF - 2 * OUT_DIM,), jnp.float32)])
    w_film = film_p["w"][:, :2 * OUT_DIM]                               # only gs/bs columns are used
    return (w_fold.astype(jnp.float32), p_small.astype(jnp.float32), w_film.astype(jnp.float32))


def _edge_bias_blockdiag(adj, wl, bl):
    """Label-conditioned edge bias + adjacency mask for both directions, laid out block-diagonally over
    the batch (cross-batch entries = -1e9) so the batch can be folded into the sublane axis."""
    bsz, n = adj.shape[0], adj.shape[1]
    adj_dirs = jnp.stack([adj, jnp.swapaxes(adj, 1, 2)], axis=1)        # [B, DIR, N, N, L]
    bias = jnp.einsum('bdnml,dl->bdnm', adj_dirs, wl) + bl[None, :, :, None]
    mask = jnp.sum(adj_dirs, axis=-1) > 0.0
    mb = jnp.where(mask, bias, NEG_INF).astype(jnp.float32)             # [B, DIR, N, N]
    out = jnp.full((DIR_NUM, bsz * n, bsz * n), NEG_INF, jnp.float32)
    for b in range(bsz):                                                # trace-time loop, B is tiny
        out = out.at[:, b * n:(b + 1) * n, b * n:(b + 1) * n].set(mb[b])
    return out                                                          # [DIR, B*N, B*N]


# ---------------------------------------- forward wrapper ----------------------------------------
@jax.jit
def explicit_relation_encoder(v, Q, q, cap, exp_adj_matrix_L, exp_adj_matrix_R, params):
    # v_dim == out_dim -> v_transform / cap_transform are None (identity)
    batch, num_rois = v.shape[0], v.shape[1]

    wL, pL, fL = _fold_branch(params["gat_L"], params["bn_L"], params["film_L"])
    wR, pR, fR = _fold_branch(params["gat_R"], params["bn_R"], params["film_R"])
    wcat = jnp.stack([wL, wR])                                          # [2, IN_DIM, PROJ_COLS]
    psmall = jnp.stack([pL, pR])                                        # [2, PSMALL]
    wfilm = jnp.stack([fL, fR])                                         # [2, OUT_DIM, 2*OUT_DIM]

    mbias = jnp.stack([
        _edge_bias_blockdiag(exp_adj_matrix_L, params["gat_L"]["wl"], params["gat_L"]["bl"]),
        _edge_bias_blockdiag(exp_adj_matrix_R, params["gat_R"]["wl"], params["gat_R"]["bl"]),
    ])                                                                  # [2, DIR, B*N, B*N]

    # per-example data packed into one slab per branch: [features | q_expand] (layout plumbing only;
    # the zero-row q mask stays inside the kernel since it depends on the evolving features)
    q_exp = jnp.broadcast_to(q[:, None, :], (batch, num_rois, Q_DIM))
    Q_exp = jnp.broadcast_to(Q[:, None, :], (batch, num_rois, Q_DIM))
    xcat = jnp.stack([
        jnp.concatenate([cap, q_exp], axis=-1).reshape(batch * num_rois, IN_DIM),
        jnp.concatenate([v, Q_exp], axis=-1).reshape(batch * num_rois, IN_DIM),
    ])                                                                  # [2, B*N, IN_DIM]

    bn_rows = batch * num_rois
    packed = pl.pallas_call(
        _fused_kernel,
        out_shape=jax.ShapeDtypeStruct((bn_rows, 2 * OUT_DIM), jnp.float32),
        grid=(1,),
        in_specs=[
            pl.BlockSpec((2, bn_rows, IN_DIM), lambda i: (0, 0, 0)),
            pl.BlockSpec((2, DIR_NUM, bn_rows, bn_rows), lambda i: (0, 0, 0, 0)),
            pl.BlockSpec((2, IN_DIM, PROJ_COLS), lambda i: (0, 0, 0)),
            pl.BlockSpec((2, OUT_DIM, 2 * OUT_DIM), lambda i: (0, 0, 0)),
            pl.BlockSpec((2, PSMALL), lambda i: (0, 0)),
        ],
        out_specs=pl.BlockSpec((bn_rows, 2 * OUT_DIM), lambda i: (0, 0)),
        compiler_params=pltpu.CompilerParams(dimension_semantics=("arbitrary",)),
    )(xcat, mbias, wcat, wfilm, psmall)

    exp_v = packed[:, :OUT_DIM].reshape(batch, num_rois, OUT_DIM)
    exp_cap = packed[:, OUT_DIM:].reshape(batch, num_rois, OUT_DIM)
    return exp_v, exp_cap


# ---------------------------------------- parameters ----------------------------------------
def init_params(key):
    def nrm(k, shape, scale):
        return (scale * jax.random.normal(k, shape)).astype(jnp.float32)

    def gat_params(k):
        ks = jax.random.split(k, 7)
        s_in = 1.0 / (IN_DIM ** 0.5)
        s_hid = 1.0 / (HID_DIM ** 0.5)
        return {
            "wq": nrm(ks[0], (DIR_NUM, IN_DIM, HID_DIM), s_in),
            "wk": nrm(ks[1], (DIR_NUM, IN_DIM, HID_DIM), s_in),
            "wv": nrm(ks[2], (DIR_NUM, IN_DIM, HID_DIM), s_in),
            "wo": nrm(ks[3], (DIR_NUM, HID_DIM, OUT_DIM), s_hid),
            "bo": nrm(ks[4], (DIR_NUM, OUT_DIM), 0.02),
            "wl": nrm(ks[5], (DIR_NUM, LABEL_NUM), 0.1),
            "bl": nrm(ks[6], (DIR_NUM, 1), 0.05),
        }

    def bn_params(offset):
        idx = jnp.arange(IN_DIM, dtype=jnp.float32)
        return {
            "gamma": 1.0 + 0.01 * idx,
            "beta": 0.005 * idx + offset,
            "mean": 0.002 * idx,
            "var": 1.0 + 0.01 * idx,
        }

    def film_params(k):
        ks = jax.random.split(k, 2)
        return {
            "w": nrm(ks[0], (OUT_DIM, FILM_DIM), 1.0 / (OUT_DIM ** 0.5)),
            "b": nrm(ks[1], (FILM_DIM,), 0.02),
        }

    k_gL, k_gR, k_fL, k_fR = jax.random.split(key, 4)
    return {
        "bn_L": bn_params(0.0),
        "bn_R": bn_params(0.01),
        "gat_L": gat_params(k_gL),
        "gat_R": gat_params(k_gR),
        "film_L": film_params(k_fL),
        "film_R": film_params(k_fR),
    }


# ---------------------------------------- main ----------------------------------------
if __name__ == "__main__":
    key = jax.random.PRNGKey(0)
    kv, kQ, kq, kc, kaL, kaR = jax.random.split(key, 6)

    v = jax.random.normal(kv, (B, N, V_DIM), jnp.float32)
    Q = jax.random.normal(kQ, (B, Q_DIM), jnp.float32)
    q = jax.random.normal(kq, (B, Q_DIM), jnp.float32)
    cap = jax.random.normal(kc, (B, N, V_DIM), jnp.float32)
    cap = cap.at[:, -1, :].set(0.0)   # exercise the q_expand_v_cat zero-row mask path
    adj_L = jax.random.bernoulli(kaL, 0.3, (B, N, N, LABEL_NUM)).astype(jnp.float32)
    adj_R = jax.random.bernoulli(kaR, 0.3, (B, N, N, LABEL_NUM)).astype(jnp.float32)

    params = init_params(jax.random.PRNGKey(42))

    exp_v, exp_cap = explicit_relation_encoder(v, Q, q, cap, adj_L, adj_R, params)
    jax.block_until_ready((exp_v, exp_cap))

    assert exp_v.shape == (B, N, OUT_DIM) and exp_cap.shape == (B, N, OUT_DIM)
    assert bool(jnp.all(jnp.isfinite(exp_v))) and bool(jnp.all(jnp.isfinite(exp_cap)))
    print("KERNEL_OK")
</pallas_src>

<mosaic_0001>
module attributes {stable_mosaic.version = 11 : i64} {
  func.func @_fused_kernel(%arg0: i32, %arg1: memref<2x16x64xf32, #tpu.memory_space<vmem>>, %arg2: memref<2x2x16x16xf32, #tpu.memory_space<vmem>>, %arg3: memref<2x64x512xf32, #tpu.memory_space<vmem>>, %arg4: memref<2x32x64xf32, #tpu.memory_space<vmem>>, %arg5: memref<2x640xf32, #tpu.memory_space<vmem>>, %arg6: memref<16x64xf32, #tpu.memory_space<vmem>>) attributes {dimension_semantics = [#tpu.dimension_semantics<arbitrary>], iteration_bounds = array<i64: 1>, scalar_prefetch = 0 : i64, scratch_operands = 0 : i64, tpu.core_type = #tpu.core_type<tc>, window_params = [{pipeline_mode = #tpu.pipeline_mode<synchronous>, transform_indices = @transform_0, window_bounds = array<i64: 2, 16, 64>}, {pipeline_mode = #tpu.pipeline_mode<synchronous>, transform_indices = @transform_1, window_bounds = array<i64: 2, 2, 16, 16>}, {pipeline_mode = #tpu.pipeline_mode<synchronous>, transform_indices = @transform_2, window_bounds = array<i64: 2, 64, 512>}, {pipeline_mode = #tpu.pipeline_mode<synchronous>, transform_indices = @transform_3, window_bounds = array<i64: 2, 32, 64>}, {pipeline_mode = #tpu.pipeline_mode<synchronous>, transform_indices = @transform_4, window_bounds = array<i64: 2, 640>}, {pipeline_mode = #tpu.pipeline_mode<synchronous>, transform_indices = @transform_5, window_bounds = array<i64: 16, 64>}]} {
    %c0 = arith.constant 0 : index
    %c0_0 = arith.constant 0 : index
    %c0_1 = arith.constant 0 : index
    %0 = vector.load %arg1[%c0, %c0_0, %c0_1] : memref<2x16x64xf32, #tpu.memory_space<vmem>>, vector<1x16x64xf32>
    %1 = vector.shape_cast %0 : vector<1x16x64xf32> to vector<16x64xf32>
    %c1 = arith.constant 1 : index
    %c0_2 = arith.constant 0 : index
    %c0_3 = arith.constant 0 : index
    %2 = vector.load %arg1[%c1, %c0_2, %c0_3] : memref<2x16x64xf32, #tpu.memory_space<vmem>>, vector<1x16x64xf32>
    %3 = vector.shape_cast %2 : vector<1x16x64xf32> to vector<16x64xf32>
    %c0_4 = arith.constant 0 : index
    %c0_5 = arith.constant 0 : index
    %c0_6 = arith.constant 0 : index
    %c0_7 = arith.constant 0 : index
    %4 = vector.load %arg2[%c0_4, %c0_5, %c0_6, %c0_7] : memref<2x2x16x16xf32, #tpu.memory_space<vmem>>, vector<2x2x16x16xf32>
    %c0_8 = arith.constant 0 : index
    %c0_9 = arith.constant 0 : index
    %c0_10 = arith.constant 0 : index
    %5 = vector.load %arg3[%c0_8, %c0_9, %c0_10] : memref<2x64x512xf32, #tpu.memory_space<vmem>>, vector<1x64x512xf32>
    %6 = vector.shape_cast %5 : vector<1x64x512xf32> to vector<64x512xf32>
    %c1_11 = arith.constant 1 : index
    %c0_12 = arith.constant 0 : index
    %c0_13 = arith.constant 0 : index
    %7 = vector.load %arg3[%c1_11, %c0_12, %c0_13] : memref<2x64x512xf32, #tpu.memory_space<vmem>>, vector<1x64x512xf32>
    %8 = vector.shape_cast %7 : vector<1x64x512xf32> to vector<64x512xf32>
    %9 = vector.extract_strided_slice %1 {offsets = [0, 0], sizes = [16, 32], strides = [1, 1]} : vector<16x64xf32> to vector<16x32xf32>
    %10 = vector.extract_strided_slice %3 {offsets = [0, 0], sizes = [16, 32], strides = [1, 1]} : vector<16x64xf32> to vector<16x32xf32>
    %c0_14 = arith.constant 0 : index
    %c0_15 = arith.constant 0 : index
    %11 = vector.load %arg5[%c0_14, %c0_15] : memref<2x640xf32, #tpu.memory_space<vmem>>, vector<1x640xf32>
    %12 = vector.shape_cast %11 : vector<1x640xf32> to vector<640xf32>
    %13 = vector.extract_strided_slice %12 {offsets = [0], sizes = [512], strides = [1]} : vector<640xf32> to vector<512xf32>
    %14 = vector.shape_cast %13 : vector<512xf32> to vector<1x512xf32>
    %c1_16 = arith.constant 1 : index
    %c0_17 = arith.constant 0 : index
    %15 = vector.load %arg5[%c1_16, %c0_17] : memref<2x640xf32, #tpu.memory_space<vmem>>, vector<1x640xf32>
    %16 = vector.shape_cast %15 : vector<1x640xf32> to vector<640xf32>
    %17 = vector.extract_strided_slice %16 {offsets = [0], sizes = [512], strides = [1]} : vector<640xf32> to vector<512xf32>
    %18 = vector.shape_cast %17 : vector<512xf32> to vector<1x512xf32>
    %c0_18 = arith.constant 0 : index
    %c0_19 = arith.constant 0 : index
    %19 = vector.load %arg5[%c0_18, %c0_19] : memref<2x640xf32, #tpu.memory_space<vmem>>, vector<1x640xf32>
    %20 = vector.shape_cast %19 : vector<1x640xf32> to vector<640xf32>
    %21 = vector.extract_strided_slice %20 {offsets = [512], sizes = [32], strides = [1]} : vector<640xf32> to vector<32xf32>
    %22 = vector.shape_cast %21 : vector<32xf32> to vector<1x32xf32>
    %c1_20 = arith.constant 1 : index
    %c0_21 = arith.constant 0 : index
    %23 = vector.load %arg5[%c1_20, %c0_21] : memref<2x640xf32, #tpu.memory_space<vmem>>, vector<1x640xf32>
    %24 = vector.shape_cast %23 : vector<1x640xf32> to vector<640xf32>
    %25 = vector.extract_strided_slice %24 {offsets = [512], sizes = [32], strides = [1]} : vector<640xf32> to vector<32xf32>
    %26 = vector.shape_cast %25 : vector<32xf32> to vector<1x32xf32>
    %c0_22 = arith.constant 0 : index
    %c0_23 = arith.constant 0 : index
    %27 = vector.load %arg5[%c0_22, %c0_23] : memref<2x640xf32, #tpu.memory_space<vmem>>, vector<1x640xf32>
    %28 = vector.shape_cast %27 : vector<1x640xf32> to vector<640xf32>
    %29 = vector.extract_strided_slice %28 {offsets = [544], sizes = [64], strides = [1]} : vector<640xf32> to vector<64xf32>
    %30 = vector.shape_cast %29 : vector<64xf32> to vector<1x64xf32>
    %c1_24 = arith.constant 1 : index
    %c0_25 = arith.constant 0 : index
    %31 = vector.load %arg5[%c1_24, %c0_25] : memref<2x640xf32, #tpu.memory_space<vmem>>, vector<1x640xf32>
    %32 = vector.shape_cast %31 : vector<1x640xf32> to vector<640xf32>
    %33 = vector.extract_strided_slice %32 {offsets = [544], sizes = [64], strides = [1]} : vector<640xf32> to vector<64xf32>
    %34 = vector.shape_cast %33 : vector<64xf32> to vector<1x64xf32>
    %35 = vector.extract_strided_slice %1 {offsets = [0, 32], sizes = [16, 32], strides = [1, 1]} : vector<16x64xf32> to vector<16x32xf32>
    %36 = vector.extract_strided_slice %6 {offsets = [32, 0], sizes = [32, 512], strides = [1, 1]} : vector<64x512xf32> to vector<32x512xf32>
    %cst = arith.constant dense<0.000000e+00> : vector<16x512xf32>
    %37 = tpu.matmul %35, %36, %cst {dimension_numbers = #tpu.dot_dimension_numbers<[1], [0], [0], [1], [0, 0, 1, 1], [], []>} : vector<16x32xf32>, vector<32x512xf32>, vector<16x512xf32> -> vector<16x512xf32>
    %38 = vector.extract_strided_slice %3 {offsets = [0, 32], sizes = [16, 32], strides = [1, 1]} : vector<16x64xf32> to vector<16x32xf32>
    %39 = vector.extract_strided_slice %8 {offsets = [32, 0], sizes = [32, 512], strides = [1, 1]} : vector<64x512xf32> to vector<32x512xf32>
    %cst_26 = arith.constant dense<0.000000e+00> : vector<16x512xf32>
    %40 = tpu.matmul %38, %39, %cst_26 {dimension_numbers = #tpu.dot_dimension_numbers<[1], [0], [0], [1], [0, 0, 1, 1], [], []>} : vector<16x32xf32>, vector<32x512xf32>, vector<16x512xf32> -> vector<16x512xf32>
    %cst_27 = arith.constant dense<0.000000e+00> : vector<16xf32>
    %41 = vector.multi_reduction <add>, %9, %cst_27 [1] : vector<16x32xf32> to vector<16xf32>
    %42 = vector.shape_cast %41 : vector<16xf32> to vector<16x1xf32>
    %cst_28 = arith.constant 0.000000e+00 : f32
    %43 = vector.broadcast %cst_28 : f32 to vector<16x1xf32>
    %44 = arith.cmpf one, %42, %43 : vector<16x1xf32>
    %45 = arith.extui %44 : vector<16x1xi1> to vector<16x1xi32>
    %46 = arith.sitofp %45 : vector<16x1xi32> to vector<16x1xf32>
    %47 = vector.extract_strided_slice %6 {offsets = [0, 0], sizes = [32, 512], strides = [1, 1]} : vector<64x512xf32> to vector<32x512xf32>
    %cst_29 = arith.constant dense<0.000000e+00> : vector<16x512xf32>
    %48 = tpu.matmul %9, %47, %cst_29 {dimension_numbers = #tpu.dot_dimension_numbers<[1], [0], [0], [1], [0, 0, 1, 1], [], []>} : vector<16x32xf32>, vector<32x512xf32>, vector<16x512xf32> -> vector<16x512xf32>
    %49 = vector.broadcast %46 : vector<16x1xf32> to vector<16x512xf32>
    %50 = arith.mulf %49, %37 : vector<16x512xf32>
    %51 = arith.addf %48, %50 : vector<16x512xf32>
    %52 = vector.broadcast %14 : vector<1x512xf32> to vector<16x512xf32>
    %53 = arith.addf %51, %52 : vector<16x512xf32>
    %cst_30 = arith.constant 0.000000e+00 : f32
    %54 = vector.broadcast %cst_30 : f32 to vector<16x32xf32>
    %55 = vector.extract_strided_slice %53 {offsets = [0, 32], sizes = [16, 32], strides = [1, 1]} : vector<16x512xf32> to vector<16x32xf32>
    %56 = tpu.transpose %55, [1, 0] : vector<16x32xf32> -> vector<32x16xf32>
    %57 = vector.extract_strided_slice %4 {offsets = [0, 0, 0, 0], sizes = [1, 1, 16, 16], strides = [1, 1, 1, 1]} : vector<2x2x16x16xf32> to vector<1x1x16x16xf32>
    %58 = vector.shape_cast %57 : vector<1x1x16x16xf32> to vector<16x16xf32>
    %59 = vector.extract_strided_slice %53 {offsets = [0, 0], sizes = [16, 8], strides = [1, 1]} : vector<16x512xf32> to vector<16x8xf32>
    %60 = vector.extract_strided_slice %56 {offsets = [0, 0], sizes = [8, 16], strides = [1, 1]} : vector<32x16xf32> to vector<8x16xf32>
    %61 = vector.extract_strided_slice %53 {offsets = [0, 64], sizes = [16, 32], strides = [1, 1]} : vector<16x512xf32> to vector<16x32xf32>
    %cst_31 = arith.constant dense<0.000000e+00> : vector<16x16xf32>
    %62 = tpu.matmul %59, %60, %cst_31 {dimension_numbers = #tpu.dot_dimension_numbers<[1], [0], [0], [1], [0, 0, 1, 1], [], []>} : vector<16x8xf32>, vector<8x16xf32>, vector<16x16xf32> -> vector<16x16xf32>
    %63 = arith.addf %62, %58 : vector<16x16xf32>
    %cst_32 = arith.constant dense<0xFF800000> : vector<16xf32>
    %64 = vector.multi_reduction <maximumf>, %63, %cst_32 [1] : vector<16x16xf32> to vector<16xf32>
    %65 = vector.shape_cast %64 : vector<16xf32> to vector<16x1xf32>
    %66 = vector.broadcast %65 : vector<16x1xf32> to vector<16x16xf32>
    %67 = arith.subf %63, %66 : vector<16x16xf32>
    %68 = math.exp %67 : vector<16x16xf32>
    %cst_33 = arith.constant dense<0.000000e+00> : vector<16xf32>
    %69 = vector.multi_reduction <add>, %68, %cst_33 [1] : vector<16x16xf32> to vector<16xf32>
    %70 = vector.shape_cast %69 : vector<16xf32> to vector<16x1xf32>
    %71 = tpu.reciprocal %70 {approx = true} : vector<16x1xf32> -> vector<16x1xf32>
    %72 = vector.broadcast %71 : vector<16x1xf32> to vector<16x16xf32>
    %73 = arith.mulf %68, %72 : vector<16x16xf32>
    %cst_34 = arith.constant dense<0.000000e+00> : vector<16x32xf32>
    %74 = tpu.matmul %73, %61, %cst_34 {dimension_numbers = #tpu.dot_dimension_numbers<[1], [0], [0], [1], [0, 0, 1, 1], [], []>} : vector<16x16xf32>, vector<16x32xf32>, vector<16x32xf32> -> vector<16x32xf32>
    %75 = arith.addf %54, %74 : vector<16x32xf32>
    %76 = vector.extract_strided_slice %53 {offsets = [0, 8], sizes = [16, 8], strides = [1, 1]} : vector<16x512xf32> to vector<16x8xf32>
    %77 = vector.extract_strided_slice %56 {offsets = [8, 0], sizes = [8, 16], strides = [1, 1]} : vector<32x16xf32> to vector<8x16xf32>
    %78 = vector.extract_strided_slice %53 {offsets = [0, 96], sizes = [16, 32], strides = [1, 1]} : vector<16x512xf32> to vector<16x32xf32>
    %cst_35 = arith.constant dense<0.000000e+00> : vector<16x16xf32>
    %79 = tpu.matmul %76, %77, %cst_35 {dimension_numbers = #tpu.dot_dimension_numbers<[1], [0], [0], [1], [0, 0, 1, 1], [], []>} : vector<16x8xf32>, vector<8x16xf32>, vector<16x16xf32> -> vector<16x16xf32>
    %80 = arith.addf %79, %58 : vector<16x16xf32>
    %cst_36 = arith.constant dense<0xFF800000> : vector<16xf32>
    %81 = vector.multi_reduction <maximumf>, %80, %cst_36 [1] : vector<16x16xf32> to vector<16xf32>
    %82 = vector.shape_cast %81 : vector<16xf32> to vector<16x1xf32>
    %83 = vector.broadcast %82 : vector<16x1xf32> to vector<16x16xf32>
    %84 = arith.subf %80, %83 : vector<16x16xf32>
    %85 = math.exp %84 : vector<16x16xf32>
    %cst_37 = arith.constant dense<0.000000e+00> : vector<16xf32>
    %86 = vector.multi_reduction <add>, %85, %cst_37 [1] : vector<16x16xf32> to vector<16xf32>
    %87 = vector.shape_cast %86 : vector<16xf32> to vector<16x1xf32>
    %88 = tpu.reciprocal %87 {approx = true} : vector<16x1xf32> -> vector<16x1xf32>
    %89 = vector.broadcast %88 : vector<16x1xf32> to vector<16x16xf32>
    %90 = arith.mulf %85, %89 : vector<16x16xf32>
    %cst_38 = arith.constant dense<0.000000e+00> : vector<16x32xf32>
    %91 = tpu.matmul %90, %78, %cst_38 {dimension_numbers = #tpu.dot_dimension_numbers<[1], [0], [0], [1], [0, 0, 1, 1], [], []>} : vector<16x16xf32>, vector<16x32xf32>, vector<16x32xf32> -> vector<16x32xf32>
    %92 = arith.addf %75, %91 : vector<16x32xf32>
    %93 = vector.extract_strided_slice %53 {offsets = [0, 16], sizes = [16, 8], strides = [1, 1]} : vector<16x512xf32> to vector<16x8xf32>
    %94 = vector.extract_strided_slice %56 {offsets = [16, 0], sizes = [8, 16], strides = [1, 1]} : vector<32x16xf32> to vector<8x16xf32>
    %95 = vector.extract_strided_slice %53 {offsets = [0, 128], sizes = [16, 32], strides = [1, 1]} : vector<16x512xf32> to vector<16x32xf32>
    %cst_39 = arith.constant dense<0.000000e+00> : vector<16x16xf32>
    %96 = tpu.matmul %93, %94, %cst_39 {dimension_numbers = #tpu.dot_dimension_numbers<[1], [0], [0], [1], [0, 0, 1, 1], [], []>} : vector<16x8xf32>, vector<8x16xf32>, vector<16x16xf32> -> vector<16x16xf32>
    %97 = arith.addf %96, %58 : vector<16x16xf32>
    %cst_40 = arith.constant dense<0xFF800000> : vector<16xf32>
    %98 = vector.multi_reduction <maximumf>, %97, %cst_40 [1] : vector<16x16xf32> to vector<16xf32>
    %99 = vector.shape_cast %98 : vector<16xf32> to vector<16x1xf32>
    %100 = vector.broadcast %99 : vector<16x1xf32> to vector<16x16xf32>
    %101 = arith.subf %97, %100 : vector<16x16xf32>
    %102 = math.exp %101 : vector<16x16xf32>
    %cst_41 = arith.constant dense<0.000000e+00> : vector<16xf32>
    %103 = vector.multi_reduction <add>, %102, %cst_41 [1] : vector<16x16xf32> to vector<16xf32>
    %104 = vector.shape_cast %103 : vector<16xf32> to vector<16x1xf32>
    %105 = tpu.reciprocal %104 {approx = true} : vector<16x1xf32> -> vector<16x1xf32>
    %106 = vector.broadcast %105 : vector<16x1xf32> to vector<16x16xf32>
    %107 = arith.mulf %102, %106 : vector<16x16xf32>
    %cst_42 = arith.constant dense<0.000000e+00> : vector<16x32xf32>
    %108 = tpu.matmul %107, %95, %cst_42 {dimension_numbers = #tpu.dot_dimension_numbers<[1], [0], [0], [1], [0, 0, 1, 1], [], []>} : vector<16x16xf32>, vector<16x32xf32>, vector<16x32xf32> -> vector<16x32xf32>
    %109 = arith.addf %92, %108 : vector<16x32xf32>
    %110 = vector.extract_strided_slice %53 {offsets = [0, 24], sizes = [16, 8], strides = [1, 1]} : vector<16x512xf32> to vector<16x8xf32>
    %111 = vector.extract_strided_slice %56 {offsets = [24, 0], sizes = [8, 16], strides = [1, 1]} : vector<32x16xf32> to vector<8x16xf32>
    %112 = vector.extract_strided_slice %53 {offsets = [0, 160], sizes = [16, 32], strides = [1, 1]} : vector<16x512xf32> to vector<16x32xf32>
    %cst_43 = arith.constant dense<0.000000e+00> : vector<16x16xf32>
    %113 = tpu.matmul %110, %111, %cst_43 {dimension_numbers = #tpu.dot_dimension_numbers<[1], [0], [0], [1], [0, 0, 1, 1], [], []>} : vector<16x8xf32>, vector<8x16xf32>, vector<16x16xf32> -> vector<16x16xf32>
    %114 = arith.addf %113, %58 : vector<16x16xf32>
    %cst_44 = arith.constant dense<0xFF800000> : vector<16xf32>
    %115 = vector.multi_reduction <maximumf>, %114, %cst_44 [1] : vector<16x16xf32> to vector<16xf32>
    %116 = vector.shape_cast %115 : vector<16xf32> to vector<16x1xf32>
    %117 = vector.broadcast %116 : vector<16x1xf32> to vector<16x16xf32>
    %118 = arith.subf %114, %117 : vector<16x16xf32>
    %119 = math.exp %118 : vector<16x16xf32>
    %cst_45 = arith.constant dense<0.000000e+00> : vector<16xf32>
    %120 = vector.multi_reduction <add>, %119, %cst_45 [1] : vector<16x16xf32> to vector<16xf32>
    %121 = vector.shape_cast %120 : vector<16xf32> to vector<16x1xf32>
    %122 = tpu.reciprocal %121 {approx = true} : vector<16x1xf32> -> vector<16x1xf32>
    %123 = vector.broadcast %122 : vector<16x1xf32> to vector<16x16xf32>
    %124 = arith.mulf %119, %123 : vector<16x16xf32>
    %cst_46 = arith.constant dense<0.000000e+00> : vector<16x32xf32>
    %125 = tpu.matmul %124, %112, %cst_46 {dimension_numbers = #tpu.dot_dimension_numbers<[1], [0], [0], [1], [0, 0, 1, 1], [], []>} : vector<16x16xf32>, vector<16x32xf32>, vector<16x32xf32> -> vector<16x32xf32>
    %126 = arith.addf %109, %125 : vector<16x32xf32>
    %127 = vector.extract_strided_slice %53 {offsets = [0, 288], sizes = [16, 32], strides = [1, 1]} : vector<16x512xf32> to vector<16x32xf32>
    %128 = tpu.transpose %127, [1, 0] : vector<16x32xf32> -> vector<32x16xf32>
    %129 = vector.extract_strided_slice %4 {offsets = [0, 1, 0, 0], sizes = [1, 1, 16, 16], strides = [1, 1, 1, 1]} : vector<2x2x16x16xf32> to vector<1x1x16x16xf32>
    %130 = vector.shape_cast %129 : vector<1x1x16x16xf32> to vector<16x16xf32>
    %131 = vector.extract_strided_slice %53 {offsets = [0, 256], sizes = [16, 8], strides = [1, 1]} : vector<16x512xf32> to vector<16x8xf32>
    %132 = vector.extract_strided_slice %128 {offsets = [0, 0], sizes = [8, 16], strides = [1, 1]} : vector<32x16xf32> to vector<8x16xf32>
    %133 = vector.extract_strided_slice %53 {offsets = [0, 320], sizes = [16, 32], strides = [1, 1]} : vector<16x512xf32> to vector<16x32xf32>
    %cst_47 = arith.constant dense<0.000000e+00> : vector<16x16xf32>
    %134 = tpu.matmul %131, %132, %cst_47 {dimension_numbers = #tpu.dot_dimension_numbers<[1], [0], [0], [1], [0, 0, 1, 1], [], []>} : vector<16x8xf32>, vector<8x16xf32>, vector<16x16xf32> -> vector<16x16xf32>
    %135 = arith.addf %134, %130 : vector<16x16xf32>
    %cst_48 = arith.constant dense<0xFF800000> : vector<16xf32>
    %136 = vector.multi_reduction <maximumf>, %135, %cst_48 [1] : vector<16x16xf32> to vector<16xf32>
    %137 = vector.shape_cast %136 : vector<16xf32> to vector<16x1xf32>
    %138 = vector.broadcast %137 : vector<16x1xf32> to vector<16x16xf32>
    %139 = arith.subf %135, %138 : vector<16x16xf32>
    %140 = math.exp %139 : vector<16x16xf32>
    %cst_49 = arith.constant dense<0.000000e+00> : vector<16xf32>
    %141 = vector.multi_reduction <add>, %140, %cst_49 [1] : vector<16x16xf32> to vector<16xf32>
    %142 = vector.shape_cast %141 : vector<16xf32> to vector<16x1xf32>
    %143 = tpu.reciprocal %142 {approx = true} : vector<16x1xf32> -> vector<16x1xf32>
    %144 = vector.broadcast %143 : vector<16x1xf32> to vector<16x16xf32>
    %145 = arith.mulf %140, %144 : vector<16x16xf32>
    %cst_50 = arith.constant dense<0.000000e+00> : vector<16x32xf32>
    %146 = tpu.matmul %145, %133, %cst_50 {dimension_numbers = #tpu.dot_dimension_numbers<[1], [0], [0], [1], [0, 0, 1, 1], [], []>} : vector<16x16xf32>, vector<16x32xf32>, vector<16x32xf32> -> vector<16x32xf32>
    %147 = arith.addf %126, %146 : vector<16x32xf32>
    %148 = vector.extract_strided_slice %53 {offsets = [0, 264], sizes = [16, 8], strides = [1, 1]} : vector<16x512xf32> to vector<16x8xf32>
    %149 = vector.extract_strided_slice %128 {offsets = [8, 0], sizes = [8, 16], strides = [1, 1]} : vector<32x16xf32> to vector<8x16xf32>
    %150 = vector.extract_strided_slice %53 {offsets = [0, 352], sizes = [16, 32], strides = [1, 1]} : vector<16x512xf32> to vector<16x32xf32>
    %cst_51 = arith.constant dense<0.000000e+00> : vector<16x16xf32>
    %151 = tpu.matmul %148, %149, %cst_51 {dimension_numbers = #tpu.dot_dimension_numbers<[1], [0], [0], [1], [0, 0, 1, 1], [], []>} : vector<16x8xf32>, vector<8x16xf32>, vector<16x16xf32> -> vector<16x16xf32>
    %152 = arith.addf %151, %130 : vector<16x16xf32>
    %cst_52 = arith.constant dense<0xFF800000> : vector<16xf32>
    %153 = vector.multi_reduction <maximumf>, %152, %cst_52 [1] : vector<16x16xf32> to vector<16xf32>
    %154 = vector.shape_cast %153 : vector<16xf32> to vector<16x1xf32>
    %155 = vector.broadcast %154 : vector<16x1xf32> to vector<16x16xf32>
    %156 = arith.subf %152, %155 : vector<16x16xf32>
    %157 = math.exp %156 : vector<16x16xf32>
    %cst_53 = arith.constant dense<0.000000e+00> : vector<16xf32>
    %158 = vector.multi_reduction <add>, %157, %cst_53 [1] : vector<16x16xf32> to vector<16xf32>
    %159 = vector.shape_cast %158 : vector<16xf32> to vector<16x1xf32>
    %160 = tpu.reciprocal %159 {approx = true} : vector<16x1xf32> -> vector<16x1xf32>
    %161 = vector.broadcast %160 : vector<16x1xf32> to vector<16x16xf32>
    %162 = arith.mulf %157, %161 : vector<16x16xf32>
    %cst_54 = arith.constant dense<0.000000e+00> : vector<16x32xf32>
    %163 = tpu.matmul %162, %150, %cst_54 {dimension_numbers = #tpu.dot_dimension_numbers<[1], [0], [0], [1], [0, 0, 1, 1], [], []>} : vector<16x16xf32>, vector<16x32xf32>, vector<16x32xf32> -> vector<16x32xf32>
    %164 = arith.addf %147, %163 : vector<16x32xf32>
    %165 = vector.extract_strided_slice %53 {offsets = [0, 272], sizes = [16, 8], strides = [1, 1]} : vector<16x512xf32> to vector<16x8xf32>
    %166 = vector.extract_strided_slice %128 {offsets = [16, 0], sizes = [8, 16], strides = [1, 1]} : vector<32x16xf32> to vector<8x16xf32>
    %167 = vector.extract_strided_slice %53 {offsets = [0, 384], sizes = [16, 32], strides = [1, 1]} : vector<16x512xf32> to vector<16x32xf32>
    %cst_55 = arith.constant dense<0.000000e+00> : vector<16x16xf32>
    %168 = tpu.matmul %165, %166, %cst_55 {dimension_numbers = #tpu.dot_dimension_numbers<[1], [0], [0], [1], [0, 0, 1, 1], [], []>} : vector<16x8xf32>, vector<8x16xf32>, vector<16x16xf32> -> vector<16x16xf32>
    %169 = arith.addf %168, %130 : vector<16x16xf32>
    %cst_56 = arith.constant dense<0xFF800000> : vector<16xf32>
    %170 = vector.multi_reduction <maximumf>, %169, %cst_56 [1] : vector<16x16xf32> to vector<16xf32>
    %171 = vector.shape_cast %170 : vector<16xf32> to vector<16x1xf32>
    %172 = vector.broadcast %171 : vector<16x1xf32> to vector<16x16xf32>
    %173 = arith.subf %169, %172 : vector<16x16xf32>
    %174 = math.exp %173 : vector<16x16xf32>
    %cst_57 = arith.constant dense<0.000000e+00> : vector<16xf32>
    %175 = vector.multi_reduction <add>, %174, %cst_57 [1] : vector<16x16xf32> to vector<16xf32>
    %176 = vector.shape_cast %175 : vector<16xf32> to vector<16x1xf32>
    %177 = tpu.reciprocal %176 {approx = true} : vector<16x1xf32> -> vector<16x1xf32>
    %178 = vector.broadcast %177 : vector<16x1xf32> to vector<16x16xf32>
    %179 = arith.mulf %174, %178 : vector<16x16xf32>
    %cst_58 = arith.constant dense<0.000000e+00> : vector<16x32xf32>
    %180 = tpu.matmul %179, %167, %cst_58 {dimension_numbers = #tpu.dot_dimension_numbers<[1], [0], [0], [1], [0, 0, 1, 1], [], []>} : vector<16x16xf32>, vector<16x32xf32>, vector<16x32xf32> -> vector<16x32xf32>
    %181 = arith.addf %164, %180 : vector<16x32xf32>
    %182 = vector.extract_strided_slice %53 {offsets = [0, 280], sizes = [16, 8], strides = [1, 1]} : vector<16x512xf32> to vector<16x8xf32>
    %183 = vector.extract_strided_slice %128 {offsets = [24, 0], sizes = [8, 16], strides = [1, 1]} : vector<32x16xf32> to vector<8x16xf32>
    %184 = vector.extract_strided_slice %53 {offsets = [0, 416], sizes = [16, 32], strides = [1, 1]} : vector<16x512xf32> to vector<16x32xf32>
    %cst_59 = arith.constant dense<0.000000e+00> : vector<16x16xf32>
    %185 = tpu.matmul %182, %183, %cst_59 {dimension_numbers = #tpu.dot_dimension_numbers<[1], [0], [0], [1], [0, 0, 1, 1], [], []>} : vector<16x8xf32>, vector<8x16xf32>, vector<16x16xf32> -> vector<16x16xf32>
    %186 = arith.addf %185, %130 : vector<16x16xf32>
    %cst_60 = arith.constant dense<0xFF800000> : vector<16xf32>
    %187 = vector.multi_reduction <maximumf>, %186, %cst_60 [1] : vector<16x16xf32> to vector<16xf32>
    %188 = vector.shape_cast %187 : vector<16xf32> to vector<16x1xf32>
    %189 = vector.broadcast %188 : vector<16x1xf32> to vector<16x16xf32>
    %190 = arith.subf %186, %189 : vector<16x16xf32>
    %191 = math.exp %190 : vector<16x16xf32>
    %cst_61 = arith.constant dense<0.000000e+00> : vector<16xf32>
    %192 = vector.multi_reduction <add>, %191, %cst_61 [1] : vector<16x16xf32> to vector<16xf32>
    %193 = vector.shape_cast %192 : vector<16xf32> to vector<16x1xf32>
    %194 = tpu.reciprocal %193 {approx = true} : vector<16x1xf32> -> vector<16x1xf32>
    %195 = vector.broadcast %194 : vector<16x1xf32> to vector<16x16xf32>
    %196 = arith.mulf %191, %195 : vector<16x16xf32>
    %cst_62 = arith.constant dense<0.000000e+00> : vector<16x32xf32>
    %197 = tpu.matmul %196, %184, %cst_62 {dimension_numbers = #tpu.dot_dimension_numbers<[1], [0], [0], [1], [0, 0, 1, 1], [], []>} : vector<16x16xf32>, vector<16x32xf32>, vector<16x32xf32> -> vector<16x32xf32>
    %198 = arith.addf %181, %197 : vector<16x32xf32>
    %199 = vector.broadcast %22 : vector<1x32xf32> to vector<16x32xf32>
    %200 = arith.addf %198, %199 : vector<16x32xf32>
    %cst_63 = arith.constant 0.000000e+00 : f32
    %201 = vector.broadcast %cst_63 : f32 to vector<16x32xf32>
    %202 = arith.maximumf %200, %201 : vector<16x32xf32>
    %cst_64 = arith.constant dense<0.000000e+00> : vector<16xf32>
    %203 = vector.multi_reduction <add>, %10, %cst_64 [1] : vector<16x32xf32> to vector<16xf32>
    %204 = vector.shape_cast %203 : vector<16xf32> to vector<16x1xf32>
    %cst_65 = arith.constant 0.000000e+00 : f32
    %205 = vector.broadcast %cst_65 : f32 to vector<16x1xf32>
    %206 = arith.cmpf one, %204, %205 : vector<16x1xf32>
    %207 = arith.extui %206 : vector<16x1xi1> to vector<16x1xi32>
    %208 = arith.sitofp %207 : vector<16x1xi32> to vector<16x1xf32>
    %209 = vector.extract_strided_slice %8 {offsets = [0, 0], sizes = [32, 512], strides = [1, 1]} : vector<64x512xf32> to vector<32x512xf32>
    %cst_66 = arith.constant dense<0.000000e+00> : vector<16x512xf32>
    %210 = tpu.matmul %10, %209, %cst_66 {dimension_numbers = #tpu.dot_dimension_numbers<[1], [0], [0], [1], [0, 0, 1, 1], [], []>} : vector<16x32xf32>, vector<32x512xf32>, vector<16x512xf32> -> vector<16x512xf32>
    %211 = vector.broadcast %208 : vector<16x1xf32> to vector<16x512xf32>
    %212 = arith.mulf %211, %40 : vector<16x512xf32>
    %213 = arith.addf %210, %212 : vector<16x512xf32>
    %214 = vector.broadcast %18 : vector<1x512xf32> to vector<16x512xf32>
    %215 = arith.addf %213, %214 : vector<16x512xf32>
    %cst_67 = arith.constant 0.000000e+00 : f32
    %216 = vector.broadcast %cst_67 : f32 to vector<16x32xf32>
    %217 = vector.extract_strided_slice %215 {offsets = [0, 32], sizes = [16, 32], strides = [1, 1]} : vector<16x512xf32> to vector<16x32xf32>
    %218 = tpu.transpose %217, [1, 0] : vector<16x32xf32> -> vector<32x16xf32>
    %219 = vector.extract_strided_slice %4 {offsets = [1, 0, 0, 0], sizes = [1, 1, 16, 16], strides = [1, 1, 1, 1]} : vector<2x2x16x16xf32> to vector<1x1x16x16xf32>
    %220 = vector.shape_cast %219 : vector<1x1x16x16xf32> to vector<16x16xf32>
    %221 = vector.extract_strided_slice %215 {offsets = [0, 0], sizes = [16, 8], strides = [1, 1]} : vector<16x512xf32> to vector<16x8xf32>
    %222 = vector.extract_strided_slice %218 {offsets = [0, 0], sizes = [8, 16], strides = [1, 1]} : vector<32x16xf32> to vector<8x16xf32>
    %223 = vector.extract_strided_slice %215 {offsets = [0, 64], sizes = [16, 32], strides = [1, 1]} : vector<16x512xf32> to vector<16x32xf32>
    %cst_68 = arith.constant dense<0.000000e+00> : vector<16x16xf32>
    %224 = tpu.matmul %221, %222, %cst_68 {dimension_numbers = #tpu.dot_dimension_numbers<[1], [0], [0], [1], [0, 0, 1, 1], [], []>} : vector<16x8xf32>, vector<8x16xf32>, vector<16x16xf32> -> vector<16x16xf32>
    %225 = arith.addf %224, %220 : vector<16x16xf32>
    %cst_69 = arith.constant dense<0xFF800000> : vector<16xf32>
    %226 = vector.multi_reduction <maximumf>, %225, %cst_69 [1] : vector<16x16xf32> to vector<16xf32>
    %227 = vector.shape_cast %226 : vector<16xf32> to vector<16x1xf32>
    %228 = vector.broadcast %227 : vector<16x1xf32> to vector<16x16xf32>
    %229 = arith.subf %225, %228 : vector<16x16xf32>
    %230 = math.exp %229 : vector<16x16xf32>
    %cst_70 = arith.constant dense<0.000000e+00> : vector<16xf32>
    %231 = vector.multi_reduction <add>, %230, %cst_70 [1] : vector<16x16xf32> to vector<16xf32>
    %232 = vector.shape_cast %231 : vector<16xf32> to vector<16x1xf32>
    %233 = tpu.reciprocal %232 {approx = true} : vector<16x1xf32> -> vector<16x1xf32>
    %234 = vector.broadcast %233 : vector<16x1xf32> to vector<16x16xf32>
    %235 = arith.mulf %230, %234 : vector<16x16xf32>
    %cst_71 = arith.constant dense<0.000000e+00> : vector<16x32xf32>
    %236 = tpu.matmul %235, %223, %cst_71 {dimension_numbers = #tpu.dot_dimension_numbers<[1], [0], [0], [1], [0, 0, 1, 1], [], []>} : vector<16x16xf32>, vector<16x32xf32>, vector<16x32xf32> -> vector<16x32xf32>
    %237 = arith.addf %216, %236 : vector<16x32xf32>
    %238 = vector.extract_strided_slice %215 {offsets = [0, 8], sizes = [16, 8], strides = [1, 1]} : vector<16x512xf32> to vector<16x8xf32>
    %239 = vector.extract_strided_slice %218 {offsets = [8, 0], sizes = [8, 16], strides = [1, 1]} : vector<32x16xf32> to vector<8x16xf32>
    %240 = vector.extract_strided_slice %215 {offsets = [0, 96], sizes = [16, 32], strides = [1, 1]} : vector<16x512xf32> to vector<16x32xf32>
    %cst_72 = arith.constant dense<0.000000e+00> : vector<16x16xf32>
    %241 = tpu.matmul %238, %239, %cst_72 {dimension_numbers = #tpu.dot_dimension_numbers<[1], [0], [0], [1], [0, 0, 1, 1], [], []>} : vector<16x8xf32>, vector<8x16xf32>, vector<16x16xf32> -> vector<16x16xf32>
    %242 = arith.addf %241, %220 : vector<16x16xf32>
    %cst_73 = arith.constant dense<0xFF800000> : vector<16xf32>
    %243 = vector.multi_reduction <maximumf>, %242, %cst_73 [1] : vector<16x16xf32> to vector<16xf32>
    %244 = vector.shape_cast %243 : vector<16xf32> to vector<16x1xf32>
    %245 = vector.broadcast %244 : vector<16x1xf32> to vector<16x16xf32>
    %246 = arith.subf %242, %245 : vector<16x16xf32>
    %247 = math.exp %246 : vector<16x16xf32>
    %cst_74 = arith.constant dense<0.000000e+00> : vector<16xf32>
    %248 = vector.multi_reduction <add>, %247, %cst_74 [1] : vector<16x16xf32> to vector<16xf32>
    %249 = vector.shape_cast %248 : vector<16xf32> to vector<16x1xf32>
    %250 = tpu.reciprocal %249 {approx = true} : vector<16x1xf32> -> vector<16x1xf32>
    %251 = vector.broadcast %250 : vector<16x1xf32> to vector<16x16xf32>
    %252 = arith.mulf %247, %251 : vector<16x16xf32>
    %cst_75 = arith.constant dense<0.000000e+00> : vector<16x32xf32>
    %253 = tpu.matmul %252, %240, %cst_75 {dimension_numbers = #tpu.dot_dimension_numbers<[1], [0], [0], [1], [0, 0, 1, 1], [], []>} : vector<16x16xf32>, vector<16x32xf32>, vector<16x32xf32> -> vector<16x32xf32>
    %254 = arith.addf %237, %253 : vector<16x32xf32>
    %255 = vector.extract_strided_slice %215 {offsets = [0, 16], sizes = [16, 8], strides = [1, 1]} : vector<16x512xf32> to vector<16x8xf32>
    %256 = vector.extract_strided_slice %218 {offsets = [16, 0], sizes = [8, 16], strides = [1, 1]} : vector<32x16xf32> to vector<8x16xf32>
    %257 = vector.extract_strided_slice %215 {offsets = [0, 128], sizes = [16, 32], strides = [1, 1]} : vector<16x512xf32> to vector<16x32xf32>
    %cst_76 = arith.constant dense<0.000000e+00> : vector<16x16xf32>
    %258 = tpu.matmul %255, %256, %cst_76 {dimension_numbers = #tpu.dot_dimension_numbers<[1], [0], [0], [1], [0, 0, 1, 1], [], []>} : vector<16x8xf32>, vector<8x16xf32>, vector<16x16xf32> -> vector<16x16xf32>
    %259 = arith.addf %258, %220 : vector<16x16xf32>
    %cst_77 = arith.constant dense<0xFF800000> : vector<16xf32>
    %260 = vector.multi_reduction <maximumf>, %259, %cst_77 [1] : vector<16x16xf32> to vector<16xf32>
    %261 = vector.shape_cast %260 : vector<16xf32> to vector<16x1xf32>
    %262 = vector.broadcast %261 : vector<16x1xf32> to vector<16x16xf32>
    %263 = arith.subf %259, %262 : vector<16x16xf32>
    %264 = math.exp %263 : vector<16x16xf32>
    %cst_78 = arith.constant dense<0.000000e+00> : vector<16xf32>
    %265 = vector.multi_reduction <add>, %264, %cst_78 [1] : vector<16x16xf32> to vector<16xf32>
    %266 = vector.shape_cast %265 : vector<16xf32> to vector<16x1xf32>
    %267 = tpu.reciprocal %266 {approx = true} : vector<16x1xf32> -> vector<16x1xf32>
    %268 = vector.broadcast %267 : vector<16x1xf32> to vector<16x16xf32>
    %269 = arith.mulf %264, %268 : vector<16x16xf32>
    %cst_79 = arith.constant dense<0.000000e+00> : vector<16x32xf32>
    %270 = tpu.matmul %269, %257, %cst_79 {dimension_numbers = #tpu.dot_dimension_numbers<[1], [0], [0], [1], [0, 0, 1, 1], [], []>} : vector<16x16xf32>, vector<16x32xf32>, vector<16x32xf32> -> vector<16x32xf32>
    %271 = arith.addf %254, %270 : vector<16x32xf32>
    %272 = vector.extract_strided_slice %215 {offsets = [0, 24], sizes = [16, 8], strides = [1, 1]} : vector<16x512xf32> to vector<16x8xf32>
    %273 = vector.extract_strided_slice %218 {offsets = [24, 0], sizes = [8, 16], strides = [1, 1]} : vector<32x16xf32> to vector<8x16xf32>
    %274 = vector.extract_strided_slice %215 {offsets = [0, 160], sizes = [16, 32], strides = [1, 1]} : vector<16x512xf32> to vector<16x32xf32>
    %cst_80 = arith.constant dense<0.000000e+00> : vector<16x16xf32>
    %275 = tpu.matmul %272, %273, %cst_80 {dimension_numbers = #tpu.dot_dimension_numbers<[1], [0], [0], [1], [0, 0, 1, 1], [], []>} : vector<16x8xf32>, vector<8x16xf32>, vector<16x16xf32> -> vector<16x16xf32>
    %276 = arith.addf %275, %220 : vector<16x16xf32>
    %cst_81 = arith.constant dense<0xFF800000> : vector<16xf32>
    %277 = vector.multi_reduction <maximumf>, %276, %cst_81 [1] : vector<16x16xf32> to vector<16xf32>
    %278 = vector.shape_cast %277 : vector<16xf32> to vector<16x1xf32>
    %279 = vector.broadcast %278 : vector<16x1xf32> to vector<16x16xf32>
    %280 = arith.subf %276, %279 : vector<16x16xf32>
    %281 = math.exp %280 : vector<16x16xf32>
    %cst_82 = arith.constant dense<0.000000e+00> : vector<16xf32>
    %282 = vector.multi_reduction <add>, %281, %cst_82 [1] : vector<16x16xf32> to vector<16xf32>
    %283 = vector.shape_cast %282 : vector<16xf32> to vector<16x1xf32>
    %284 = tpu.reciprocal %283 {approx = true} : vector<16x1xf32> -> vector<16x1xf32>
    %285 = vector.broadcast %284 : vector<16x1xf32> to vector<16x16xf32>
    %286 = arith.mulf %281, %285 : vector<16x16xf32>
    %cst_83 = arith.constant dense<0.000000e+00> : vector<16x32xf32>
    %287 = tpu.matmul %286, %274, %cst_83 {dimension_numbers = #tpu.dot_dimension_numbers<[1], [0], [0], [1], [0, 0, 1, 1], [], []>} : vector<16x16xf32>, vector<16x32xf32>, vector<16x32xf32> -> vector<16x32xf32>
    %288 = arith.addf %271, %287 : vector<16x32xf32>
    %289 = vector.extract_strided_slice %215 {offsets = [0, 288], sizes = [16, 32], strides = [1, 1]} : vector<16x512xf32> to vector<16x32xf32>
    %290 = tpu.transpose %289, [1, 0] : vector<16x32xf32> -> vector<32x16xf32>
    %291 = vector.extract_strided_slice %4 {offsets = [1, 1, 0, 0], sizes = [1, 1, 16, 16], strides = [1, 1, 1, 1]} : vector<2x2x16x16xf32> to vector<1x1x16x16xf32>
    %292 = vector.shape_cast %291 : vector<1x1x16x16xf32> to vector<16x16xf32>
    %293 = vector.extract_strided_slice %215 {offsets = [0, 256], sizes = [16, 8], strides = [1, 1]} : vector<16x512xf32> to vector<16x8xf32>
    %294 = vector.extract_strided_slice %290 {offsets = [0, 0], sizes = [8, 16], strides = [1, 1]} : vector<32x16xf32> to vector<8x16xf32>
    %295 = vector.extract_strided_slice %215 {offsets = [0, 320], sizes = [16, 32], strides = [1, 1]} : vector<16x512xf32> to vector<16x32xf32>
    %cst_84 = arith.constant dense<0.000000e+00> : vector<16x16xf32>
    %296 = tpu.matmul %293, %294, %cst_84 {dimension_numbers = #tpu.dot_dimension_numbers<[1], [0], [0], [1], [0, 0, 1, 1], [], []>} : vector<16x8xf32>, vector<8x16xf32>, vector<16x16xf32> -> vector<16x16xf32>
    %297 = arith.addf %296, %292 : vector<16x16xf32>
    %cst_85 = arith.constant dense<0xFF800000> : vector<16xf32>
    %298 = vector.multi_reduction <maximumf>, %297, %cst_85 [1] : vector<16x16xf32> to vector<16xf32>
    %299 = vector.shape_cast %298 : vector<16xf32> to vector<16x1xf32>
    %300 = vector.broadcast %299 : vector<16x1xf32> to vector<16x16xf32>
    %301 = arith.subf %297, %300 : vector<16x16xf32>
    %302 = math.exp %301 : vector<16x16xf32>
    %cst_86 = arith.constant dense<0.000000e+00> : vector<16xf32>
    %303 = vector.multi_reduction <add>, %302, %cst_86 [1] : vector<16x16xf32> to vector<16xf32>
    %304 = vector.shape_cast %303 : vector<16xf32> to vector<16x1xf32>
    %305 = tpu.reciprocal %304 {approx = true} : vector<16x1xf32> -> vector<16x1xf32>
    %306 = vector.broadcast %305 : vector<16x1xf32> to vector<16x16xf32>
    %307 = arith.mulf %302, %306 : vector<16x16xf32>
    %cst_87 = arith.constant dense<0.000000e+00> : vector<16x32xf32>
    %308 = tpu.matmul %307, %295, %cst_87 {dimension_numbers = #tpu.dot_dimension_numbers<[1], [0], [0], [1], [0, 0, 1, 1], [], []>} : vector<16x16xf32>, vector<16x32xf32>, vector<16x32xf32> -> vector<16x32xf32>
    %309 = arith.addf %288, %308 : vector<16x32xf32>
    %310 = vector.extract_strided_slice %215 {offsets = [0, 264], sizes = [16, 8], strides = [1, 1]} : vector<16x512xf32> to vector<16x8xf32>
    %311 = vector.extract_strided_slice %290 {offsets = [8, 0], sizes = [8, 16], strides = [1, 1]} : vector<32x16xf32> to vector<8x16xf32>
    %312 = vector.extract_strided_slice %215 {offsets = [0, 352], sizes = [16, 32], strides = [1, 1]} : vector<16x512xf32> to vector<16x32xf32>
    %cst_88 = arith.constant dense<0.000000e+00> : vector<16x16xf32>
    %313 = tpu.matmul %310, %311, %cst_88 {dimension_numbers = #tpu.dot_dimension_numbers<[1], [0], [0], [1], [0, 0, 1, 1], [], []>} : vector<16x8xf32>, vector<8x16xf32>, vector<16x16xf32> -> vector<16x16xf32>
    %314 = arith.addf %313, %292 : vector<16x16xf32>
    %cst_89 = arith.constant dense<0xFF800000> : vector<16xf32>
    %315 = vector.multi_reduction <maximumf>, %314, %cst_89 [1] : vector<16x16xf32> to vector<16xf32>
    %316 = vector.shape_cast %315 : vector<16xf32> to vector<16x1xf32>
    %317 = vector.broadcast %316 : vector<16x1xf32> to vector<16x16xf32>
    %318 = arith.subf %314, %317 : vector<16x16xf32>
    %319 = math.exp %318 : vector<16x16xf32>
    %cst_90 = arith.constant dense<0.000000e+00> : vector<16xf32>
    %320 = vector.multi_reduction <add>, %319, %cst_90 [1] : vector<16x16xf32> to vector<16xf32>
    %321 = vector.shape_cast %320 : vector<16xf32> to vector<16x1xf32>
    %322 = tpu.reciprocal %321 {approx = true} : vector<16x1xf32> -> vector<16x1xf32>
    %323 = vector.broadcast %322 : vector<16x1xf32> to vector<16x16xf32>
    %324 = arith.mulf %319, %323 : vector<16x16xf32>
    %cst_91 = arith.constant dense<0.000000e+00> : vector<16x32xf32>
    %325 = tpu.matmul %324, %312, %cst_91 {dimension_numbers = #tpu.dot_dimension_numbers<[1], [0], [0], [1], [0, 0, 1, 1], [], []>} : vector<16x16xf32>, vector<16x32xf32>, vector<16x32xf32> -> vector<16x32xf32>
    %326 = arith.addf %309, %325 : vector<16x32xf32>
    %327 = vector.extract_strided_slice %215 {offsets = [0, 272], sizes = [16, 8], strides = [1, 1]} : vector<16x512xf32> to vector<16x8xf32>
    %328 = vector.extract_strided_slice %290 {offsets = [16, 0], sizes = [8, 16], strides = [1, 1]} : vector<32x16xf32> to vector<8x16xf32>
    %329 = vector.extract_strided_slice %215 {offsets = [0, 384], sizes = [16, 32], strides = [1, 1]} : vector<16x512xf32> to vector<16x32xf32>
    %cst_92 = arith.constant dense<0.000000e+00> : vector<16x16xf32>
    %330 = tpu.matmul %327, %328, %cst_92 {dimension_numbers = #tpu.dot_dimension_numbers<[1], [0], [0], [1], [0, 0, 1, 1], [], []>} : vector<16x8xf32>, vector<8x16xf32>, vector<16x16xf32> -> vector<16x16xf32>
    %331 = arith.addf %330, %292 : vector<16x16xf32>
    %cst_93 = arith.constant dense<0xFF800000> : vector<16xf32>
    %332 = vector.multi_reduction <maximumf>, %331, %cst_93 [1] : vector<16x16xf32> to vector<16xf32>
    %333 = vector.shape_cast %332 : vector<16xf32> to vector<16x1xf32>
    %334 = vector.broadcast %333 : vector<16x1xf32> to vector<16x16xf32>
    %335 = arith.subf %331, %334 : vector<16x16xf32>
    %336 = math.exp %335 : vector<16x16xf32>
    %cst_94 = arith.constant dense<0.000000e+00> : vector<16xf32>
    %337 = vector.multi_reduction <add>, %336, %cst_94 [1] : vector<16x16xf32> to vector<16xf32>
    %338 = vector.shape_cast %337 : vector<16xf32> to vector<16x1xf32>
    %339 = tpu.reciprocal %338 {approx = true} : vector<16x1xf32> -> vector<16x1xf32>
    %340 = vector.broadcast %339 : vector<16x1xf32> to vector<16x16xf32>
    %341 = arith.mulf %336, %340 : vector<16x16xf32>
    %cst_95 = arith.constant dense<0.000000e+00> : vector<16x32xf32>
    %342 = tpu.matmul %341, %329, %cst_95 {dimension_numbers = #tpu.dot_dimension_numbers<[1], [0], [0], [1], [0, 0, 1, 1], [], []>} : vector<16x16xf32>, vector<16x32xf32>, vector<16x32xf32> -> vector<16x32xf32>
    %343 = arith.addf %326, %342 : vector<16x32xf32>
    %344 = vector.extract_strided_slice %215 {offsets = [0, 280], sizes = [16, 8], strides = [1, 1]} : vector<16x512xf32> to vector<16x8xf32>
    %345 = vector.extract_strided_slice %290 {offsets = [24, 0], sizes = [8, 16], strides = [1, 1]} : vector<32x16xf32> to vector<8x16xf32>
    %346 = vector.extract_strided_slice %215 {offsets = [0, 416], sizes = [16, 32], strides = [1, 1]} : vector<16x512xf32> to vector<16x32xf32>
    %cst_96 = arith.constant dense<0.000000e+00> : vector<16x16xf32>
    %347 = tpu.matmul %344, %345, %cst_96 {dimension_numbers = #tpu.dot_dimension_numbers<[1], [0], [0], [1], [0, 0, 1, 1], [], []>} : vector<16x8xf32>, vector<8x16xf32>, vector<16x16xf32> -> vector<16x16xf32>
    %348 = arith.addf %347, %292 : vector<16x16xf32>
    %cst_97 = arith.constant dense<0xFF800000> : vector<16xf32>
    %349 = vector.multi_reduction <maximumf>, %348, %cst_97 [1] : vector<16x16xf32> to vector<16xf32>
    %350 = vector.shape_cast %349 : vector<16xf32> to vector<16x1xf32>
    %351 = vector.broadcast %350 : vector<16x1xf32> to vector<16x16xf32>
    %352 = arith.subf %348, %351 : vector<16x16xf32>
    %353 = math.exp %352 : vector<16x16xf32>
    %cst_98 = arith.constant dense<0.000000e+00> : vector<16xf32>
    %354 = vector.multi_reduction <add>, %353, %cst_98 [1] : vector<16x16xf32> to vector<16xf32>
    %355 = vector.shape_cast %354 : vector<16xf32> to vector<16x1xf32>
    %356 = tpu.reciprocal %355 {approx = true} : vector<16x1xf32> -> vector<16x1xf32>
    %357 = vector.broadcast %356 : vector<16x1xf32> to vector<16x16xf32>
    %358 = arith.mulf %353, %357 : vector<16x16xf32>
    %cst_99 = arith.constant dense<0.000000e+00> : vector<16x32xf32>
    %359 = tpu.matmul %358, %346, %cst_99 {dimension_numbers = #tpu.dot_dimension_numbers<[1], [0], [0], [1], [0, 0, 1, 1], [], []>} : vector<16x16xf32>, vector<16x32xf32>, vector<16x32xf32> -> vector<16x32xf32>
    %360 = arith.addf %343, %359 : vector<16x32xf32>
    %361 = vector.broadcast %26 : vector<1x32xf32> to vector<16x32xf32>
    %362 = arith.addf %360, %361 : vector<16x32xf32>
    %cst_100 = arith.constant 0.000000e+00 : f32
    %363 = vector.broadcast %cst_100 : f32 to vector<16x32xf32>
    %364 = arith.maximumf %362, %363 : vector<16x32xf32>
    %c0_101 = arith.constant 0 : index
    %c0_102 = arith.constant 0 : index
    %c0_103 = arith.constant 0 : index
    %365 = vector.load %arg4[%c0_101, %c0_102, %c0_103] : memref<2x32x64xf32, #tpu.memory_space<vmem>>, vector<1x32x64xf32>
    %366 = vector.shape_cast %365 : vector<1x32x64xf32> to vector<32x64xf32>
    %cst_104 = arith.constant dense<0.000000e+00> : vector<16x64xf32>
    %367 = tpu.matmul %202, %366, %cst_104 {dimension_numbers = #tpu.dot_dimension_numbers<[1], [0], [0], [1], [0, 0, 1, 1], [], []>} : vector<16x32xf32>, vector<32x64xf32>, vector<16x64xf32> -> vector<16x64xf32>
    %368 = vector.broadcast %30 : vector<1x64xf32> to vector<16x64xf32>
    %369 = arith.addf %367, %368 : vector<16x64xf32>
    %c1_105 = arith.constant 1 : index
    %c0_106 = arith.constant 0 : index
    %c0_107 = arith.constant 0 : index
    %370 = vector.load %arg4[%c1_105, %c0_106, %c0_107] : memref<2x32x64xf32, #tpu.memory_space<vmem>>, vector<1x32x64xf32>
    %371 = vector.shape_cast %370 : vector<1x32x64xf32> to vector<32x64xf32>
    %cst_108 = arith.constant dense<0.000000e+00> : vector<16x64xf32>
    %372 = tpu.matmul %364, %371, %cst_108 {dimension_numbers = #tpu.dot_dimension_numbers<[1], [0], [0], [1], [0, 0, 1, 1], [], []>} : vector<16x32xf32>, vector<32x64xf32>, vector<16x64xf32> -> vector<16x64xf32>
    %373 = vector.broadcast %34 : vector<1x64xf32> to vector<16x64xf32>
    %374 = arith.addf %372, %373 : vector<16x64xf32>
    %375 = vector.extract_strided_slice %369 {offsets = [0, 0], sizes = [16, 32], strides = [1, 1]} : vector<16x64xf32> to vector<16x32xf32>
    %376 = arith.mulf %364, %375 : vector<16x32xf32>
    %377 = vector.extract_strided_slice %369 {offsets = [0, 32], sizes = [16, 32], strides = [1, 1]} : vector<16x64xf32> to vector<16x32xf32>
    %378 = arith.addf %376, %377 : vector<16x32xf32>
    %cst_109 = arith.constant 0.000000e+00 : f32
    %379 = vector.broadcast %cst_109 : f32 to vector<16x32xf32>
    %380 = arith.maximumf %378, %379 : vector<16x32xf32>
    %381 = arith.addf %10, %380 : vector<16x32xf32>
    %382 = vector.extract_strided_slice %374 {offsets = [0, 0], sizes = [16, 32], strides = [1, 1]} : vector<16x64xf32> to vector<16x32xf32>
    %383 = arith.mulf %202, %382 : vector<16x32xf32>
    %384 = vector.extract_strided_slice %374 {offsets = [0, 32], sizes = [16, 32], strides = [1, 1]} : vector<16x64xf32> to vector<16x32xf32>
    %385 = arith.addf %383, %384 : vector<16x32xf32>
    %cst_110 = arith.constant 0.000000e+00 : f32
    %386 = vector.broadcast %cst_110 : f32 to vector<16x32xf32>
    %387 = arith.maximumf %385, %386 : vector<16x32xf32>
    %388 = arith.addf %9, %387 : vector<16x32xf32>
    %389 = tpu.concatenate %381, %388 in 1 : vector<16x32xf32>, vector<16x32xf32> -> vector<16x64xf32>
    %c0_111 = arith.constant 0 : index
    %c0_112 = arith.constant 0 : index
    %390 = vector.load %arg6[%c0_111, %c0_112] : memref<16x64xf32, #tpu.memory_space<vmem>>, vector<16x64xf32>
    tpu.vector_store %arg6[%c0_111, %c0_112], %389 {strides = array<i32>} : memref<16x64xf32, #tpu.memory_space<vmem>>, vector<16x64xf32>,
    return
  }
  func.func @transform_0(%arg0: i32) -> (i32, i32, i32) {
    %c0_i32 = arith.constant 0 : i32
    %c0_i32_0 = arith.constant 0 : i32
    %c0_i32_1 = arith.constant 0 : i32
    %c0_i32_2 = arith.constant 0 : i32
    return %c0_i32, %c0_i32_0, %c0_i32_1 : i32, i32, i32
  }
  func.func @transform_1(%arg0: i32) -> (i32, i32, i32, i32) {
    %c0_i32 = arith.constant 0 : i32
    %c0_i32_0 = arith.constant 0 : i32
    %c0_i32_1 = arith.constant 0 : i32
    %c0_i32_2 = arith.constant 0 : i32
    %c0_i32_3 = arith.constant 0 : i32
    return %c0_i32, %c0_i32_0, %c0_i32_1, %c0_i32_2 : i32, i32, i32, i32
  }
  func.func @transform_2(%arg0: i32) -> (i32, i32, i32) {
    %c0_i32 = arith.constant 0 : i32
    %c0_i32_0 = arith.constant 0 : i32
    %c0_i32_1 = arith.constant 0 : i32
    %c0_i32_2 = arith.constant 0 : i32
    return %c0_i32, %c0_i32_0, %c0_i32_1 : i32, i32, i32
  }
  func.func @transform_3(%arg0: i32) -> (i32, i32, i32) {
    %c0_i32 = arith.constant 0 : i32
    %c0_i32_0 = arith.constant 0 : i32
    %c0_i32_1 = arith.constant 0 : i32
    %c0_i32_2 = arith.constant 0 : i32
    return %c0_i32, %c0_i32_0, %c0_i32_1 : i32, i32, i32
  }
  func.func @transform_4(%arg0: i32) -> (i32, i32) {
    %c0_i32 = arith.constant 0 : i32
    %c0_i32_0 = arith.constant 0 : i32
    %c0_i32_1 = arith.constant 0 : i32
    return %c0_i32, %c0_i32_0 : i32, i32
  }
  func.func @transform_5(%arg0: i32) -> (i32, i32) {
    %c0_i32 = arith.constant 0 : i32
    %c0_i32_0 = arith.constant 0 : i32
    %c0_i32_1 = arith.constant 0 : i32
    return %c0_i32, %c0_i32_0 : i32, i32
  }
}

</mosaic_0001>

<llo_original>
// kernel: explicit_relation_encoder.1
$region0: #{explicit_relation_encoder.1}
  #allocation0 [shape = 'u32[]', space=smem, size = 0x4, offset = 0x4, fixed_abs, tag = 'smem constant byte address 0x4 - core index']
  #allocation1 [shape = 'u32[144,128]{1,0:T(1,128)}', space=vmem, size = 0x12000, scoped, tag = 'internal scratch']
  %s0 = inlined_call_operand.vmem [shape: f32[2,16,64], index: 0, kind: input, shape index: {}]
  %s1 = inlined_call_operand.vmem [shape: f32[2,2,16,16], index: 1, kind: input, shape index: {}]
  %s2 = inlined_call_operand.vmem [shape: f32[2,64,512], index: 2, kind: input, shape index: {}]
  %s3 = inlined_call_operand.vmem [shape: f32[2,32,64], index: 3, kind: input, shape index: {}]
  %s4 = inlined_call_operand.vmem [shape: f32[2,640], index: 4, kind: input, shape index: {}]
  %s5 = inlined_call_operand.vmem [shape: f32[16,64], index: 5, kind: output, shape index: {}]
  %s6 = sld [smem:[#allocation0]]
  $region30: #{explicit_relation_encoder.1} parent=0
    _
  %s8 = ssub.s32 1, %s6
  %s9 = scalar_select 0, %s8, %s6
  // Predicated region
  $region2: #{explicit_relation_encoder.1} parent=0 // pred_check
    _
  $region3: #{explicit_relation_encoder.1} parent=0 // pred_check_branch
    %11 = sbr.rel (0) target = $region5
  $region4: #{explicit_relation_encoder.1} parent=0 // pred_region
    _
  $region5: #{explicit_relation_encoder.1} parent=0 // pred_fallthru
    _
  // Predicated region
  $region6: #{explicit_relation_encoder.1} parent=0 // pred_check
    _
  $region7: #{explicit_relation_encoder.1} parent=0 // pred_check_branch
    %13 = sbr.rel (0) target = $region9
  $region8: #{explicit_relation_encoder.1} parent=0 // pred_region
    _
  $region9: #{explicit_relation_encoder.1} parent=0 // pred_fallthru
    _
  // Predicated region
  $region10: #{explicit_relation_encoder.1} parent=0 // pred_check
    _
  $region11: #{explicit_relation_encoder.1} parent=0 // pred_check_branch
    %15 = sbr.rel (0) target = $region13
  $region12: #{explicit_relation_encoder.1} parent=0 // pred_region
    _
  $region13: #{explicit_relation_encoder.1} parent=0 // pred_fallthru
    _
  // Predicated region
  $region14: #{explicit_relation_encoder.1} parent=0 // pred_check
    _
  $region15: #{explicit_relation_encoder.1} parent=0 // pred_check_branch
    %17 = sbr.rel (0) target = $region17
  $region16: #{explicit_relation_encoder.1} parent=0 // pred_region
    _
  $region17: #{explicit_relation_encoder.1} parent=0 // pred_fallthru
    _
  // Predicated region
  $region18: #{explicit_relation_encoder.1} parent=0 // pred_check
    _
  $region19: #{explicit_relation_encoder.1} parent=0 // pred_check_branch
    %19 = sbr.rel (0) target = $region21
  $region20: #{explicit_relation_encoder.1} parent=0 // pred_region
    _
  $region21: #{explicit_relation_encoder.1} parent=0 // pred_fallthru
    _
  %v20 = vld [vmem:[%s0] sm:$0xff]
  %v21 = vld [vmem:[%s0 + $0x8] sm:$0xff]
  %s22 = scalar_lea.vmem %s0, 16
  %v23 = vld [vmem:[%s22] sm:$0xff]
  %v24 = vld [vmem:[%s22 + $0x8] sm:$0xff]
  %v25 = vld [vmem:[%s1] sm:$0xff]
  %v26 = vld [vmem:[%s1 + $0x8] sm:$0xff]
  %v27 = vld [vmem:[%s1 + $0x10] sm:$0xff]
  %v28 = vld [vmem:[%s1 + $0x18] sm:$0xff]
  %v29 = vld [vmem:[%s1 + $0x20] sm:$0xff]
  %v30 = vld [vmem:[%s1 + $0x28] sm:$0xff]
  %v31 = vld [vmem:[%s1 + $0x30] sm:$0xff]
  %v32 = vld [vmem:[%s1 + $0x38] sm:$0xff]
  %v33 = vld [vmem:[%s2] sm:$0xff]
  %v34 = vld [vmem:[%s2 + $0x8] sm:$0xff]
  %v35 = vld [vmem:[%s2 + $0x10] sm:$0xff]
  %v36 = vld [vmem:[%s2 + $0x18] sm:$0xff]
  %v37 = vld [vmem:[%s2 + $0x20] sm:$0xff]
  %v38 = vld [vmem:[%s2 + $0x28] sm:$0xff]
  %v39 = vld [vmem:[%s2 + $0x30] sm:$0xff]
  %v40 = vld [vmem:[%s2 + $0x38] sm:$0xff]
  %v41 = vld [vmem:[%s2 + $0x40] sm:$0xff]
  %v42 = vld [vmem:[%s2 + $0x48] sm:$0xff]
  %v43 = vld [vmem:[%s2 + $0x50] sm:$0xff]
  %v44 = vld [vmem:[%s2 + $0x58] sm:$0xff]
  %v45 = vld [vmem:[%s2 + $0x60] sm:$0xff]
  %v46 = vld [vmem:[%s2 + $0x68] sm:$0xff]
  %v47 = vld [vmem:[%s2 + $0x70] sm:$0xff]
  %v48 = vld [vmem:[%s2 + $0x78] sm:$0xff]
  %v49 = vld [vmem:[%s2 + $0x80] sm:$0xff]
  %v50 = vld [vmem:[%s2 + $0x88] sm:$0xff]
  %v51 = vld [vmem:[%s2 + $0x90] sm:$0xff]
  %v52 = vld [vmem:[%s2 + $0x98] sm:$0xff]
  %v53 = vld [vmem:[%s2 + $0xa0] sm:$0xff]
  %v54 = vld [vmem:[%s2 + $0xa8] sm:$0xff]
  %v55 = vld [vmem:[%s2 + $0xb0] sm:$0xff]
  %v56 = vld [vmem:[%s2 + $0xb8] sm:$0xff]
  %v57 = vld [vmem:[%s2 + $0xc0] sm:$0xff]
  %v58 = vld [vmem:[%s2 + $0xc8] sm:$0xff]
  %v59 = vld [vmem:[%s2 + $0xd0] sm:$0xff]
  %v60 = vld [vmem:[%s2 + $0xd8] sm:$0xff]
  %v61 = vld [vmem:[%s2 + $0xe0] sm:$0xff]
  %v62 = vld [vmem:[%s2 + $0xe8] sm:$0xff]
  %v63 = vld [vmem:[%s2 + $0xf0] sm:$0xff]
  %v64 = vld [vmem:[%s2 + $0xf8] sm:$0xff]
  %s65 = scalar_lea.vmem %s2, 256
  %v66 = vld [vmem:[%s65] sm:$0xff]
  %v67 = vld [vmem:[%s65 + $0x8] sm:$0xff]
  %v68 = vld [vmem:[%s65 + $0x10] sm:$0xff]
  %v69 = vld [vmem:[%s65 + $0x18] sm:$0xff]
  %v70 = vld [vmem:[%s65 + $0x20] sm:$0xff]
  %v71 = vld [vmem:[%s65 + $0x28] sm:$0xff]
  %v72 = vld [vmem:[%s65 + $0x30] sm:$0xff]
  %v73 = vld [vmem:[%s65 + $0x38] sm:$0xff]
  %v74 = vld [vmem:[%s65 + $0x40] sm:$0xff]
  %v75 = vld [vmem:[%s65 + $0x48] sm:$0xff]
  %v76 = vld [vmem:[%s65 + $0x50] sm:$0xff]
  %v77 = vld [vmem:[%s65 + $0x58] sm:$0xff]
  %v78 = vld [vmem:[%s65 + $0x60] sm:$0xff]
  %v79 = vld [vmem:[%s65 + $0x68] sm:$0xff]
  %v80 = vld [vmem:[%s65 + $0x70] sm:$0xff]
  %v81 = vld [vmem:[%s65 + $0x78] sm:$0xff]
  %v82 = vld [vmem:[%s65 + $0x80] sm:$0xff]
  %v83 = vld [vmem:[%s65 + $0x88] sm:$0xff]
  %v84 = vld [vmem:[%s65 + $0x90] sm:$0xff]
  %v85 = vld [vmem:[%s65 + $0x98] sm:$0xff]
  %v86 = vld [vmem:[%s65 + $0xa0] sm:$0xff]
  %v87 = vld [vmem:[%s65 + $0xa8] sm:$0xff]
  %v88 = vld [vmem:[%s65 + $0xb0] sm:$0xff]
  %v89 = vld [vmem:[%s65 + $0xb8] sm:$0xff]
  %v90 = vld [vmem:[%s65 + $0xc0] sm:$0xff]
  %v91 = vld [vmem:[%s65 + $0xc8] sm:$0xff]
  %v92 = vld [vmem:[%s65 + $0xd0] sm:$0xff]
  %v93 = vld [vmem:[%s65 + $0xd8] sm:$0xff]
  %v94 = vld [vmem:[%s65 + $0xe0] sm:$0xff]
  %v95 = vld [vmem:[%s65 + $0xe8] sm:$0xff]
  %v96 = vld [vmem:[%s65 + $0xf0] sm:$0xff]
  %v97 = vld [vmem:[%s65 + $0xf8] sm:$0xff]
  %v98 = vld [vmem:[%s4] ss:$2 sm:$0x1f]
  %s99 = scalar_lea.vmem %s4, 1
  %v100 = vld [vmem:[%s99] ss:$2 sm:$0x1f]
  %103 = vrot.lane.b32.xlu0 %v20, 96
  %v104 = vpop.permute.xlu0 %103
  %105 = vrot.lane.b32.xlu0 %v21, 96
  %v106 = vpop.permute.xlu0 %105
  %vm107 = vcmask 261120
  %v108 = vsel %vm107, %v104, 0
  %v110 = vsel %vm107, %v106, 0
  %112 = vmatprep.subr.mxu0 0.0
  %113 = vmatpush1.msra.mxu0 0.0
  %114 = vmatprep.subr.mxu0 0.0
  %115 = vmatpush1.msra.mxu0 0.0
  %116 = vmatprep.subr.mxu0 0.0
  %117 = vmatpush1.msra.mxu0 0.0
  %118 = vmatprep.subr.mxu0 0.0
  %119 = vmatpush1.msra.mxu0 0.0
  %120 = vmatprep.subr.mxu0 0.0
  %121 = vmatpush1.msra.mxu0 0.0
  %122 = vmatprep.subr.mxu0 0.0
  %123 = vmatpush1.msra.mxu0 0.0
  %124 = vmatprep.subr.mxu0 0.0
  %125 = vmatpush1.msra.mxu0 0.0
  %126 = vmatprep.subr.mxu0 0.0
  %127 = vmatpush1.msra.mxu0 0.0
  %128 = vmatprep.subr.mxu0 0.0
  %129 = vmatpush1.msra.mxu0 0.0
  %130 = vmatprep.subr.mxu0 0.0
  %131 = vmatpush1.msra.mxu0 0.0
  %132 = vmatprep.subr.mxu0 0.0
  %133 = vmatpush1.msra.mxu0 0.0
  %134 = vmatprep.subr.mxu0 0.0
  %135 = vmatpush1.msra.mxu0 0.0
  %136 = vmatprep.subr.mxu0 %v62
  %137 = vmatpush1.msra.mxu0 %v61
  %138 = vmatprep.subr.mxu0 %v58
  %139 = vmatpush1.msra.mxu0 %v57
  %140 = vmatprep.subr.mxu0 %v54
  %141 = vmatpush1.msra.mxu0 %v53
  %142 = vmatprep.subr.mxu0 %v50
  %143 = vmatpush1.msra.mxu0 %v49
  %144 = vmatprep.subr.mxu0 0.0
  %145 = vmatpush2.msra.mxu0 0.0
  %146 = vmatprep.subr.mxu0 0.0
  %147 = vmatpush2.msra.mxu0 0.0
  %148 = vmatprep.subr.mxu0 0.0
  %149 = vmatpush2.msra.mxu0 0.0
  %150 = vmatprep.subr.mxu0 0.0
  %151 = vmatpush2.msra.mxu0 0.0
  %152 = vmatprep.subr.mxu0 0.0
  %153 = vmatpush2.msra.mxu0 0.0
  %154 = vmatprep.subr.mxu0 0.0
  %155 = vmatpush2.msra.mxu0 0.0
  %156 = vmatprep.subr.mxu0 0.0
  %157 = vmatpush2.msra.mxu0 0.0
  %158 = vmatprep.subr.mxu0 0.0
  %159 = vmatpush2.msra.mxu0 0.0
  %160 = vmatprep.subr.mxu0 0.0
  %161 = vmatpush2.msra.mxu0 0.0
  %162 = vmatprep.subr.mxu0 0.0
  %163 = vmatpush2.msra.mxu0 0.0
  %164 = vmatprep.subr.mxu0 0.0
  %165 = vmatpush2.msra.mxu0 0.0
  %166 = vmatprep.subr.mxu0 0.0
  %167 = vmatpush2.msra.mxu0 0.0
  %168 = vmatprep.subr.mxu0 0.0
  %169 = vmatpush2.msra.mxu0 0.0
  %170 = vmatprep.subr.mxu0 0.0
  %171 = vmatpush2.msra.mxu0 0.0
  %172 = vmatprep.subr.mxu0 0.0
  %173 = vmatpush2.msra.mxu0 0.0
  %174 = vmatprep.subr.mxu0 0.0
  %175 = vmatpush2.msra.mxu0 0.0
  %176 = vmatprep.mubr.f32.mxu0 0.0
  %177 = vmatmul.mubr.f32.gmra.mxu0 %v108
  %v178 = vpop.f32.mrf.mxu0
  %v179 = vadd.f32 0.0, %v178
  %v180 = vpop.f32.mrf.mxu0
  %v181 = vadd.f32 0.0, %v180
  %182 = vmatprep.mubr.f32.mxu0 0.0
  %183 = vmatmul.mubr.f32.gmra.mxu0 %v110
  %v184 = vpop.f32.mrf.mxu0
  %v185 = vadd.f32 0.0, %v184
  %v186 = vpop.f32.mrf.mxu0
  %v187 = vadd.f32 0.0, %v186
  %188 = vdwg.mxu0
  %189 = vmatprep.subr.mxu0 0.0
  %190 = vmatpush1.msra.mxu0 0.0
  %191 = vmatprep.subr.mxu0 0.0
  %192 = vmatpush1.msra.mxu0 0.0
  %193 = vmatprep.subr.mxu0 0.0
  %194 = vmatpush1.msra.mxu0 0.0
  %195 = vmatprep.subr.mxu0 0.0
  %196 = vmatpush1.msra.mxu0 0.0
  %197 = vmatprep.subr.mxu0 0.0
  %198 = vmatpush1.msra.mxu0 0.0
  %199 = vmatprep.subr.mxu0 0.0
  %200 = vmatpush1.msra.mxu0 0.0
  %201 = vmatprep.subr.mxu0 0.0
  %202 = vmatpush1.msra.mxu0 0.0
  %203 = vmatprep.subr.mxu0 0.0
  %204 = vmatpush1.msra.mxu0 0.0
  %205 = vmatprep.subr.mxu0 0.0
  %206 = vmatpush1.msra.mxu0 0.0
  %207 = vmatprep.subr.mxu0 0.0
  %208 = vmatpush1.msra.mxu0 0.0
  %209 = vmatprep.subr.mxu0 0.0
  %210 = vmatpush1.msra.mxu0 0.0
  %211 = vmatprep.subr.mxu0 0.0
  %212 = vmatpush1.msra.mxu0 0.0
  %213 = vmatprep.subr.mxu0 %v64
  %214 = vmatpush1.msra.mxu0 %v63
  %215 = vmatprep.subr.mxu0 %v60
  %216 = vmatpush1.msra.mxu0 %v59
  %217 = vmatprep.subr.mxu0 %v56
  %218 = vmatpush1.msra.mxu0 %v55
  %219 = vmatprep.subr.mxu0 %v52
  %220 = vmatpush1.msra.mxu0 %v51
  %221 = vmatprep.subr.mxu0 0.0
  %222 = vmatpush2.msra.mxu0 0.0
  %223 = vmatprep.subr.mxu0 0.0
  %224 = vmatpush2.msra.mxu0 0.0
  %225 = vmatprep.subr.mxu0 0.0
  %226 = vmatpush2.msra.mxu0 0.0
  %227 = vmatprep.subr.mxu0 0.0
  %228 = vmatpush2.msra.mxu0 0.0
  %229 = vmatprep.subr.mxu0 0.0
  %230 = vmatpush2.msra.mxu0 0.0
  %231 = vmatprep.subr.mxu0 0.0
  %232 = vmatpush2.msra.mxu0 0.0
  %233 = vmatprep.subr.mxu0 0.0
  %234 = vmatpush2.msra.mxu0 0.0
  %235 = vmatprep.subr.mxu0 0.0
  %236 = vmatpush2.msra.mxu0 0.0
  %237 = vmatprep.subr.mxu0 0.0
  %238 = vmatpush2.msra.mxu0 0.0
  %239 = vmatprep.subr.mxu0 0.0
  %240 = vmatpush2.msra.mxu0 0.0
  %241 = vmatprep.subr.mxu0 0.0
  %242 = vmatpush2.msra.mxu0 0.0
  %243 = vmatprep.subr.mxu0 0.0
  %244 = vmatpush2.msra.mxu0 0.0
  %245 = vmatprep.subr.mxu0 0.0
  %246 = vmatpush2.msra.mxu0 0.0
  %247 = vmatprep.subr.mxu0 0.0
  %248 = vmatpush2.msra.mxu0 0.0
  %249 = vmatprep.subr.mxu0 0.0
  %250 = vmatpush2.msra.mxu0 0.0
  %251 = vmatprep.subr.mxu0 0.0
  %252 = vmatpush2.msra.mxu0 0.0
  %253 = vmatprep.mubr.f32.mxu0 0.0
  %254 = vmatmul.mubr.f32.gmra.mxu0 %v108
  %v255 = vpop.f32.mrf.mxu0
  %v256 = vadd.f32 0.0, %v255
  %v257 = vpop.f32.mrf.mxu0
  %v258 = vadd.f32 0.0, %v257
  %259 = vmatprep.mubr.f32.mxu0 0.0
  %260 = vmatmul.mubr.f32.gmra.mxu0 %v110
  %v261 = vpop.f32.mrf.mxu0
  %v262 = vadd.f32 0.0, %v261
  %v263 = vpop.f32.mrf.mxu0
  %v264 = vadd.f32 0.0, %v263
  %265 = vdwg.mxu0
  %268 = vrot.lane.b32.xlu0 %v23, 96
  %v269 = vpop.permute.xlu0 %268
  %270 = vrot.lane.b32.xlu0 %v24, 96
  %v271 = vpop.permute.xlu0 %270
  %v272 = vsel %vm107, %v269, 0
  %v274 = vsel %vm107, %v271, 0
  %276 = vmatprep.subr.mxu0 0.0
  %277 = vmatpush1.msra.mxu0 0.0
  %278 = vmatprep.subr.mxu0 0.0
  %279 = vmatpush1.msra.mxu0 0.0
  %280 = vmatprep.subr.mxu0 0.0
  %281 = vmatpush1.msra.mxu0 0.0
  %282 = vmatprep.subr.mxu0 0.0
  %283 = vmatpush1.msra.mxu0 0.0
  %284 = vmatprep.subr.mxu0 0.0
  %285 = vmatpush1.msra.mxu0 0.0
  %286 = vmatprep.subr.mxu0 0.0
  %287 = vmatpush1.msra.mxu0 0.0
  %288 = vmatprep.subr.mxu0 0.0
  %289 = vmatpush1.msra.mxu0 0.0
  %290 = vmatprep.subr.mxu0 0.0
  %291 = vmatpush1.msra.mxu0 0.0
  %292 = vmatprep.subr.mxu0 0.0
  %293 = vmatpush1.msra.mxu0 0.0
  %294 = vmatprep.subr.mxu0 0.0
  %295 = vmatpush1.msra.mxu0 0.0
  %296 = vmatprep.subr.mxu0 0.0
  %297 = vmatpush1.msra.mxu0 0.0
  %298 = vmatprep.subr.mxu0 0.0
  %299 = vmatpush1.msra.mxu0 0.0
  %300 = vmatprep.subr.mxu0 %v95
  %301 = vmatpush1.msra.mxu0 %v94
  %302 = vmatprep.subr.mxu0 %v91
  %303 = vmatpush1.msra.mxu0 %v90
  %304 = vmatprep.subr.mxu0 %v87
  %305 = vmatpush1.msra.mxu0 %v86
  %306 = vmatprep.subr.mxu0 %v83
  %307 = vmatpush1.msra.mxu0 %v82
  %308 = vmatprep.subr.mxu0 0.0
  %309 = vmatpush2.msra.mxu0 0.0
  %310 = vmatprep.subr.mxu0 0.0
  %311 = vmatpush2.msra.mxu0 0.0
  %312 = vmatprep.subr.mxu0 0.0
  %313 = vmatpush2.msra.mxu0 0.0
  %314 = vmatprep.subr.mxu0 0.0
  %315 = vmatpush2.msra.mxu0 0.0
  %316 = vmatprep.subr.mxu0 0.0
  %317 = vmatpush2.msra.mxu0 0.0
  %318 = vmatprep.subr.mxu0 0.0
  %319 = vmatpush2.msra.mxu0 0.0
  %320 = vmatprep.subr.mxu0 0.0
  %321 = vmatpush2.msra.mxu0 0.0
  %322 = vmatprep.subr.mxu0 0.0
  %323 = vmatpush2.msra.mxu0 0.0
  %324 = vmatprep.subr.mxu0 0.0
  %325 = vmatpush2.msra.mxu0 0.0
  %326 = vmatprep.subr.mxu0 0.0
  %327 = vmatpush2.msra.mxu0 0.0
  %328 = vmatprep.subr.mxu0 0.0
  %329 = vmatpush2.msra.mxu0 0.0
  %330 = vmatprep.subr.mxu0 0.0
  %331 = vmatpush2.msra.mxu0 0.0
  %332 = vmatprep.subr.mxu0 0.0
  %333 = vmatpush2.msra.mxu0 0.0
  %334 = vmatprep.subr.mxu0 0.0
  %335 = vmatpush2.msra.mxu0 0.0
  %336 = vmatprep.subr.mxu0 0.0
  %337 = vmatpush2.msra.mxu0 0.0
  %338 = vmatprep.subr.mxu0 0.0
  %339 = vmatpush2.msra.mxu0 0.0
  %340 = vmatprep.mubr.f32.mxu0 0.0
  %341 = vmatmul.mubr.f32.gmra.mxu0 %v272
  %v342 = vpop.f32.mrf.mxu0
  %v343 = vadd.f32 0.0, %v342
  %v344 = vpop.f32.mrf.mxu0
  %v345 = vadd.f32 0.0, %v344
  %346 = vmatprep.mubr.f32.mxu0 0.0
  %347 = vmatmul.mubr.f32.gmra.mxu0 %v274
  %v348 = vpop.f32.mrf.mxu0
  %v349 = vadd.f32 0.0, %v348
  %v350 = vpop.f32.mrf.mxu0
  %v351 = vadd.f32 0.0, %v350
  %352 = vdwg.mxu0
  %353 = vmatprep.subr.mxu0 0.0
  %354 = vmatpush1.msra.mxu0 0.0
  %355 = vmatprep.subr.mxu0 0.0
  %356 = vmatpush1.msra.mxu0 0.0
  %357 = vmatprep.subr.mxu0 0.0
  %358 = vmatpush1.msra.mxu0 0.0
  %359 = vmatprep.subr.mxu0 0.0
  %360 = vmatpush1.msra.mxu0 0.0
  %361 = vmatprep.subr.mxu0 0.0
  %362 = vmatpush1.msra.mxu0 0.0
  %363 = vmatprep.subr.mxu0 0.0
  %364 = vmatpush1.msra.mxu0 0.0
  %365 = vmatprep.subr.mxu0 0.0
  %366 = vmatpush1.msra.mxu0 0.0
  %367 = vmatprep.subr.mxu0 0.0
  %368 = vmatpush1.msra.mxu0 0.0
  %369 = vmatprep.subr.mxu0 0.0
  %370 = vmatpush1.msra.mxu0 0.0
  %371 = vmatprep.subr.mxu0 0.0
  %372 = vmatpush1.msra.mxu0 0.0
  %373 = vmatprep.subr.mxu0 0.0
  %374 = vmatpush1.msra.mxu0 0.0
  %375 = vmatprep.subr.mxu0 0.0
  %376 = vmatpush1.msra.mxu0 0.0
  %377 = vmatprep.subr.mxu0 %v97
  %378 = vmatpush1.msra.mxu0 %v96
  %379 = vmatprep.subr.mxu0 %v93
  %380 = vmatpush1.msra.mxu0 %v92
  %381 = vmatprep.subr.mxu0 %v89
  %382 = vmatpush1.msra.mxu0 %v88
  %383 = vmatprep.subr.mxu0 %v85
  %384 = vmatpush1.msra.mxu0 %v84
  %385 = vmatprep.subr.mxu0 0.0
  %386 = vmatpush2.msra.mxu0 0.0
  %387 = vmatprep.subr.mxu0 0.0
  %388 = vmatpush2.msra.mxu0 0.0
  %389 = vmatprep.subr.mxu0 0.0
  %390 = vmatpush2.msra.mxu0 0.0
  %391 = vmatprep.subr.mxu0 0.0
  %392 = vmatpush2.msra.mxu0 0.0
  %393 = vmatprep.subr.mxu0 0.0
  %394 = vmatpush2.msra.mxu0 0.0
  %395 = vmatprep.subr.mxu0 0.0
  %396 = vmatpush2.msra.mxu0 0.0
  %397 = vmatprep.subr.mxu0 0.0
  %398 = vmatpush2.msra.mxu0 0.0
  %399 = vmatprep.subr.mxu0 0.0
  %400 = vmatpush2.msra.mxu0 0.0
  %401 = vmatprep.subr.mxu0 0.0
  %402 = vmatpush2.msra.mxu0 0.0
  %403 = vmatprep.subr.mxu0 0.0
  %404 = vmatpush2.msra.mxu0 0.0
  %405 = vmatprep.subr.mxu0 0.0
  %406 = vmatpush2.msra.mxu0 0.0
  %407 = vmatprep.subr.mxu0 0.0
  %408 = vmatpush2.msra.mxu0 0.0
  %409 = vmatprep.subr.mxu0 0.0
  %410 = vmatpush2.msra.mxu0 0.0
  %411 = vmatprep.subr.mxu0 0.0
  %412 = vmatpush2.msra.mxu0 0.0
  %413 = vmatprep.subr.mxu0 0.0
  %414 = vmatpush2.msra.mxu0 0.0
  %415 = vmatprep.subr.mxu0 0.0
  %416 = vmatpush2.msra.mxu0 0.0
  %417 = vmatprep.mubr.f32.mxu0 0.0
  %418 = vmatmul.mubr.f32.gmra.mxu0 %v272
  %v419 = vpop.f32.mrf.mxu0
  %v420 = vadd.f32 0.0, %v419
  %v421 = vpop.f32.mrf.mxu0
  %v422 = vadd.f32 0.0, %v421
  %423 = vmatprep.mubr.f32.mxu0 0.0
  %424 = vmatmul.mubr.f32.gmra.mxu0 %v274
  %v425 = vpop.f32.mrf.mxu0
  %v426 = vadd.f32 0.0, %v425
  %v427 = vpop.f32.mrf.mxu0
  %v428 = vadd.f32 0.0, %v427
  %429 = vdwg.mxu0
  %v430 = vsel %vm107, %v20, 0.0
  %431 = vadd.xlane.f32.xlu0 %v430
  %v432 = vpop.xlane.xlu0 %431
  %v433 = vsel %vm107, %v21, 0.0
  %434 = vadd.xlane.f32.xlu0 %v433
  %v435 = vpop.xlane.xlu0 %434
  %vm436 = vcmp.ne.f32.partialorder %v432, 0.0
  %vm437 = vcmp.ne.f32.partialorder %v435, 0.0
  %v438 = vsel %vm436, 1, 0
  %v439 = vsel %vm437, 1, 0
  %v440 = vcvt.s32.f32 %v438
  %v441 = vcvt.s32.f32 %v439
  %v442 = vmul.f32 %v440, %v179
  %v443 = vmul.f32 %v440, %v181
  %v444 = vmul.f32 %v440, %v256
  %v445 = vmul.f32 %v440, %v258
  %v446 = vmul.f32 %v441, %v185
  %v447 = vmul.f32 %v441, %v187
  %v448 = vmul.f32 %v441, %v262
  %v449 = vmul.f32 %v441, %v264
  %v450 = vsel %vm107, %v20, 0
  %v452 = vsel %vm107, %v21, 0
  %454 = vmatprep.subr.mxu0 0.0
  %455 = vmatpush1.msra.mxu0 0.0
  %456 = vmatprep.subr.mxu0 0.0
  %457 = vmatpush1.msra.mxu0 0.0
  %458 = vmatprep.subr.mxu0 0.0
  %459 = vmatpush1.msra.mxu0 0.0
  %460 = vmatprep.subr.mxu0 0.0
  %461 = vmatpush1.msra.mxu0 0.0
  %462 = vmatprep.subr.mxu0 0.0
  %463 = vmatpush1.msra.mxu0 0.0
  %464 = vmatprep.subr.mxu0 0.0
  %465 = vmatpush1.msra.mxu0 0.0
  %466 = vmatprep.subr.mxu0 0.0
  %467 = vmatpush1.msra.mxu0 0.0
  %468 = vmatprep.subr.mxu0 0.0
  %469 = vmatpush1.msra.mxu0 0.0
  %470 = vmatprep.subr.mxu0 0.0
  %471 = vmatpush1.msra.mxu0 0.0
  %472 = vmatprep.subr.mxu0 0.0
  %473 = vmatpush1.msra.mxu0 0.0
  %474 = vmatprep.subr.mxu0 0.0
  %475 = vmatpush1.msra.mxu0 0.0
  %476 = vmatprep.subr.mxu0 0.0
  %477 = vmatpush1.msra.mxu0 0.0
  %478 = vmatprep.subr.mxu0 %v46
  %479 = vmatpush1.msra.mxu0 %v45
  %480 = vmatprep.subr.mxu0 %v42
  %481 = vmatpush1.msra.mxu0 %v41
  %482 = vmatprep.subr.mxu0 %v38
  %483 = vmatpush1.msra.mxu0 %v37
  %484 = vmatprep.subr.mxu0 %v34
  %485 = vmatpush1.msra.mxu0 %v33
  %486 = vmatprep.subr.mxu0 0.0
  %487 = vmatpush2.msra.mxu0 0.0
  %488 = vmatprep.subr.mxu0 0.0
  %489 = vmatpush2.msra.mxu0 0.0
  %490 = vmatprep.subr.mxu0 0.0
  %491 = vmatpush2.msra.mxu0 0.0
  %492 = vmatprep.subr.mxu0 0.0
  %493 = vmatpush2.msra.mxu0 0.0
  %494 = vmatprep.subr.mxu0 0.0
  %495 = vmatpush2.msra.mxu0 0.0
  %496 = vmatprep.subr.mxu0 0.0
  %497 = vmatpush2.msra.mxu0 0.0
  %498 = vmatprep.subr.mxu0 0.0
  %499 = vmatpush2.msra.mxu0 0.0
  %500 = vmatprep.subr.mxu0 0.0
  %501 = vmatpush2.msra.mxu0 0.0
  %502 = vmatprep.subr.mxu0 0.0
  %503 = vmatpush2.msra.mxu0 0.0
  %504 = vmatprep.subr.mxu0 0.0
  %505 = vmatpush2.msra.mxu0 0.0
  %506 = vmatprep.subr.mxu0 0.0
  %507 = vmatpush2.msra.mxu0 0.0
  %508 = vmatprep.subr.mxu0 0.0
  %509 = vmatpush2.msra.mxu0 0.0
  %510 = vmatprep.subr.mxu0 0.0
  %511 = vmatpush2.msra.mxu0 0.0
  %512 = vmatprep.subr.mxu0 0.0
  %513 = vmatpush2.msra.mxu0 0.0
  %514 = vmatprep.subr.mxu0 0.0
  %515 = vmatpush2.msra.mxu0 0.0
  %516 = vmatprep.subr.mxu0 0.0
  %517 = vmatpush2.msra.mxu0 0.0
  %518 = vmatprep.mubr.f32.mxu0 0.0
  %519 = vmatmul.mubr.f32.gmra.mxu0 %v450
  %v520 = vpop.f32.mrf.mxu0
  %v521 = vadd.f32 %v442, %v520
  %v522 = vpop.f32.mrf.mxu0
  %v523 = vadd.f32 %v443, %v522
  %524 = vmatprep.mubr.f32.mxu0 0.0
  %525 = vmatmul.mubr.f32.gmra.mxu0 %v452
  %v526 = vpop.f32.mrf.mxu0
  %v527 = vadd.f32 %v446, %v526
  %v528 = vpop.f32.mrf.mxu0
  %v529 = vadd.f32 %v447, %v528
  %530 = vdwg.mxu0
  %531 = vmatprep.subr.mxu0 0.0
  %532 = vmatpush1.msra.mxu0 0.0
  %533 = vmatprep.subr.mxu0 0.0
  %534 = vmatpush1.msra.mxu0 0.0
  %535 = vmatprep.subr.mxu0 0.0
  %536 = vmatpush1.msra.mxu0 0.0
  %537 = vmatprep.subr.mxu0 0.0
  %538 = vmatpush1.msra.mxu0 0.0
  %539 = vmatprep.subr.mxu0 0.0
  %540 = vmatpush1.msra.mxu0 0.0
  %541 = vmatprep.subr.mxu0 0.0
  %542 = vmatpush1.msra.mxu0 0.0
  %543 = vmatprep.subr.mxu0 0.0
  %544 = vmatpush1.msra.mxu0 0.0
  %545 = vmatprep.subr.mxu0 0.0
  %546 = vmatpush1.msra.mxu0 0.0
  %547 = vmatprep.subr.mxu0 0.0
  %548 = vmatpush1.msra.mxu0 0.0
  %549 = vmatprep.subr.mxu0 0.0
  %550 = vmatpush1.msra.mxu0 0.0
  %551 = vmatprep.subr.mxu0 0.0
  %552 = vmatpush1.msra.mxu0 0.0
  %553 = vmatprep.subr.mxu0 0.0
  %554 = vmatpush1.msra.mxu0 0.0
  %555 = vmatprep.subr.mxu0 %v48
  %556 = vmatpush1.msra.mxu0 %v47
  %557 = vmatprep.subr.mxu0 %v44
  %558 = vmatpush1.msra.mxu0 %v43
  %559 = vmatprep.subr.mxu0 %v40
  %560 = vmatpush1.msra.mxu0 %v39
  %561 = vmatprep.subr.mxu0 %v36
  %562 = vmatpush1.msra.mxu0 %v35
  %563 = vmatprep.subr.mxu0 0.0
  %564 = vmatpush2.msra.mxu0 0.0
  %565 = vmatprep.subr.mxu0 0.0
  %566 = vmatpush2.msra.mxu0 0.0
  %567 = vmatprep.subr.mxu0 0.0
  %568 = vmatpush2.msra.mxu0 0.0
  %569 = vmatprep.subr.mxu0 0.0
  %570 = vmatpush2.msra.mxu0 0.0
  %571 = vmatprep.subr.mxu0 0.0
  %572 = vmatpush2.msra.mxu0 0.0
  %573 = vmatprep.subr.mxu0 0.0
  %574 = vmatpush2.msra.mxu0 0.0
  %575 = vmatprep.subr.mxu0 0.0
  %576 = vmatpush2.msra.mxu0 0.0
  %577 = vmatprep.subr.mxu0 0.0
  %578 = vmatpush2.msra.mxu0 0.0
  %579 = vmatprep.subr.mxu0 0.0
  %580 = vmatpush2.msra.mxu0 0.0
  %581 = vmatprep.subr.mxu0 0.0
  %582 = vmatpush2.msra.mxu0 0.0
  %583 = vmatprep.subr.mxu0 0.0
  %584 = vmatpush2.msra.mxu0 0.0
  %585 = vmatprep.subr.mxu0 0.0
  %586 = vmatpush2.msra.mxu0 0.0
  %587 = vmatprep.subr.mxu0 0.0
  %588 = vmatpush2.msra.mxu0 0.0
  %589 = vmatprep.subr.mxu0 0.0
  %590 = vmatpush2.msra.mxu0 0.0
  %591 = vmatprep.subr.mxu0 0.0
  %592 = vmatpush2.msra.mxu0 0.0
  %593 = vmatprep.subr.mxu0 0.0
  %594 = vmatpush2.msra.mxu0 0.0
  %595 = vmatprep.mubr.f32.mxu0 0.0
  %596 = vmatmul.mubr.f32.gmra.mxu0 %v450
  %v597 = vpop.f32.mrf.mxu0
  %v598 = vadd.f32 %v444, %v597
  %v599 = vpop.f32.mrf.mxu0
  %v600 = vadd.f32 %v445, %v599
  %601 = vmatprep.mubr.f32.mxu0 0.0
  %602 = vmatmul.mubr.f32.gmra.mxu0 %v452
  %v603 = vpop.f32.mrf.mxu0
  %v604 = vadd.f32 %v448, %v603
  %v605 = vpop.f32.mrf.mxu0
  %v606 = vadd.f32 %v449, %v605
  %607 = vdwg.mxu0
  %v609 = vlaneseq
  %v610 = vshrl.u32 %v609, 7
  %v611 = vsub.s32 0, %v610
  %v612 = vrot.slane %v98, %v611
  %v613 = vlaneseq
  %v614 = vshrl.u32 %v613, 7
  %v615 = vsub.s32 1, %v614
  %v616 = vrot.slane %v98, %v615
  %v617 = vlaneseq
  %v618 = vshrl.u32 %v617, 7
  %v619 = vsub.s32 2, %v618
  %v620 = vrot.slane %v98, %v619
  %v621 = vlaneseq
  %v622 = vshrl.u32 %v621, 7
  %v623 = vsub.s32 3, %v622
  %v624 = vrot.slane %v98, %v623
  %v629 = vadd.f32 %v521, %v612
  %v630 = vadd.f32 %v523, %v616
  %v631 = vadd.f32 %v598, %v620
  %v632 = vadd.f32 %v600, %v624
  %v633 = vadd.f32 %v527, %v612
  %v634 = vadd.f32 %v529, %v616
  %v635 = vadd.f32 %v604, %v620
  %v636 = vadd.f32 %v606, %v624
  %639 = vrot.lane.b32.xlu0 %v629, 96
  %v640 = vpop.permute.xlu0 %639
  %641 = vrot.lane.b32.xlu0 %v633, 96
  %v642 = vpop.permute.xlu0 %641
  %vm643 = vcmask 64512
  %v644 = vsel %vm643, %v629, 0
  %v646 = vsel %vm643, %v633, 0
  %v648 = vsel %vm643, %v640, 0
  %v650 = vsel %vm643, %v642, 0
  %652 = vmatprep.subr.mxu0 0.0
  %653 = vmatpush1.xpose.msra.mxu0 0.0
  %654 = vmatprep.subr.mxu0 0.0
  %655 = vmatpush1.xpose.msra.mxu0 0.0
  %656 = vmatprep.subr.mxu0 0.0
  %657 = vmatpush1.xpose.msra.mxu0 0.0
  %658 = vmatprep.subr.mxu0 0.0
  %659 = vmatpush1.xpose.msra.mxu0 0.0
  %660 = vmatprep.subr.mxu0 0.0
  %661 = vmatpush1.xpose.msra.mxu0 0.0
  %662 = vmatprep.subr.mxu0 0.0
  %663 = vmatpush1.xpose.msra.mxu0 0.0
  %664 = vmatprep.subr.mxu0 0.0
  %665 = vmatpush1.xpose.msra.mxu0 0.0
  %666 = vmatprep.subr.mxu0 0.0
  %667 = vmatpush1.xpose.msra.mxu0 0.0
  %668 = vmatprep.subr.mxu0 0.0
  %669 = vmatpush1.xpose.msra.mxu0 0.0
  %670 = vmatprep.subr.mxu0 0.0
  %671 = vmatpush1.xpose.msra.mxu0 0.0
  %672 = vmatprep.subr.mxu0 0.0
  %673 = vmatpush1.xpose.msra.mxu0 0.0
  %674 = vmatprep.subr.mxu0 0.0
  %675 = vmatpush1.xpose.msra.mxu0 0.0
  %676 = vmatprep.subr.mxu0 0.0
  %677 = vmatpush1.xpose.msra.mxu0 0.0
  %678 = vmatprep.subr.mxu0 0.0
  %679 = vmatpush1.xpose.msra.mxu0 0.0
  %680 = vmatprep.subr.mxu0 0.0
  %681 = vmatpush1.xpose.msra.mxu0 %v650
  %682 = vmatprep.subr.mxu0 0.0
  %683 = vmatpush1.xpose.msra.mxu0 %v648
  %684 = vmatprep.subr.mxu0 0.0
  %685 = vmatpush2.xpose.msra.mxu0 0.0
  %686 = vmatprep.subr.mxu0 0.0
  %687 = vmatpush2.xpose.msra.mxu0 0.0
  %688 = vmatprep.subr.mxu0 0.0
  %689 = vmatpush2.xpose.msra.mxu0 0.0
  %690 = vmatprep.subr.mxu0 0.0
  %691 = vmatpush2.xpose.msra.mxu0 0.0
  %692 = vmatprep.subr.mxu0 0.0
  %693 = vmatpush2.xpose.msra.mxu0 0.0
  %694 = vmatprep.subr.mxu0 0.0
  %695 = vmatpush2.xpose.msra.mxu0 0.0
  %696 = vmatprep.subr.mxu0 0.0
  %697 = vmatpush2.xpose.msra.mxu0 0.0
  %698 = vmatprep.subr.mxu0 0.0
  %699 = vmatpush2.xpose.msra.mxu0 0.0
  %700 = vmatprep.subr.mxu0 0.0
  %701 = vmatpush2.xpose.msra.mxu0 0.0
  %702 = vmatprep.subr.mxu0 0.0
  %703 = vmatpush2.xpose.msra.mxu0 0.0
  %704 = vmatprep.subr.mxu0 0.0
  %705 = vmatpush2.xpose.msra.mxu0 0.0
  %706 = vmatprep.subr.mxu0 0.0
  %707 = vmatpush2.xpose.msra.mxu0 0.0
  %708 = vmatprep.subr.mxu0 0.0
  %709 = vmatpush2.xpose.msra.mxu0 0.0
  %710 = vmatprep.subr.mxu0 0.0
  %711 = vmatpush2.xpose.msra.mxu0 0.0
  %712 = vmatprep.subr.mxu0 0.0
  %713 = vmatpush2.xpose.msra.mxu0 0.0
  %714 = vmatprep.subr.mxu0 0.0
  %715 = vmatpush2.xpose.msra.mxu0 0.0
  %716 = vmatprep.mubr.f32.mxu0 0.0
  %717 = vmatmul.mubr.f32.gmra.mxu0 %v644
  %v718 = vpop.f32.mrf.mxu0
  %v719 = vadd.f32 %v25, %v718
  %v720 = vpop.f32.mrf.mxu0
  %721 = vmatprep.mubr.f32.mxu0 0.0
  %722 = vmatmul.mubr.f32.gmra.mxu0 %v646
  %v723 = vpop.f32.mrf.mxu0
  %v724 = vadd.f32 %v26, %v723
  %v725 = vpop.f32.mrf.mxu0
  %726 = vdwg.mxu0
  %vm727 = vcmask 130048
  %v728 = vsel %vm727, %v719, -inf
  %729 = vmax.xlane.f32.xlu0 %v728
  %v730 = vpop.xlane.xlu0 %729
  %v731 = vsel %vm727, %v724, -inf
  %732 = vmax.xlane.f32.xlu0 %v731
  %v733 = vpop.xlane.xlu0 %732
  %v734 = vsub.f32 %v719, %v730
  %v735 = vsub.f32 %v724, %v733
  %v736 = vmul.f32 %v734, 1.442695
  %v737 = vpow.pop %v736
  %v738 = vmul.f32 %v735, 1.442695
  %v739 = vpow.pop %v738
  %v740 = vsel %vm727, %v737, 0.0
  %741 = vadd.xlane.f32.xlu0 %v740
  %v742 = vpop.xlane.xlu0 %741
  %v743 = vsel %vm727, %v739, 0.0
  %744 = vadd.xlane.f32.xlu0 %v743
  %v745 = vpop.xlane.xlu0 %744
  %v746 = vrcp.pop %v742
  %v747 = vrcp.pop %v745
  %v748 = vmul.f32 %v737, %v746
  %v749 = vmul.f32 %v739, %v747
  %750 = vrot.lane.b32.xlu0 %v629, 120
  %v751 = vpop.permute.xlu0 %750
  %752 = vrot.lane.b32.xlu0 %v633, 120
  %v753 = vpop.permute.xlu0 %752
  %754 = vrot.lane.b32.xlu0 %v629, 88
  %v755 = vpop.permute.xlu0 %754
  %756 = vrot.lane.b32.xlu0 %v633, 88
  %v757 = vpop.permute.xlu0 %756
  %v758 = vsel %vm643, %v751, 0
  %v760 = vsel %vm643, %v753, 0
  %v762 = vsel %vm643, %v755, 0
  %v764 = vsel %vm643, %v757, 0
  %766 = vmatprep.subr.mxu0 0.0
  %767 = vmatpush1.xpose.msra.mxu0 0.0
  %768 = vmatprep.subr.mxu0 0.0
  %769 = vmatpush1.xpose.msra.mxu0 0.0
  %770 = vmatprep.subr.mxu0 0.0
  %771 = vmatpush1.xpose.msra.mxu0 0.0
  %772 = vmatprep.subr.mxu0 0.0
  %773 = vmatpush1.xpose.msra.mxu0 0.0
  %774 = vmatprep.subr.mxu0 0.0
  %775 = vmatpush1.xpose.msra.mxu0 0.0
  %776 = vmatprep.subr.mxu0 0.0
  %777 = vmatpush1.xpose.msra.mxu0 0.0
  %778 = vmatprep.subr.mxu0 0.0
  %779 = vmatpush1.xpose.msra.mxu0 0.0
  %780 = vmatprep.subr.mxu0 0.0
  %781 = vmatpush1.xpose.msra.mxu0 0.0
  %782 = vmatprep.subr.mxu0 0.0
  %783 = vmatpush1.xpose.msra.mxu0 0.0
  %784 = vmatprep.subr.mxu0 0.0
  %785 = vmatpush1.xpose.msra.mxu0 0.0
  %786 = vmatprep.subr.mxu0 0.0
  %787 = vmatpush1.xpose.msra.mxu0 0.0
  %788 = vmatprep.subr.mxu0 0.0
  %789 = vmatpush1.xpose.msra.mxu0 0.0
  %790 = vmatprep.subr.mxu0 0.0
  %791 = vmatpush1.xpose.msra.mxu0 0.0
  %792 = vmatprep.subr.mxu0 0.0
  %793 = vmatpush1.xpose.msra.mxu0 0.0
  %794 = vmatprep.subr.mxu0 0.0
  %795 = vmatpush1.xpose.msra.mxu0 %v764
  %796 = vmatprep.subr.mxu0 0.0
  %797 = vmatpush1.xpose.msra.mxu0 %v762
  %798 = vmatprep.subr.mxu0 0.0
  %799 = vmatpush2.xpose.msra.mxu0 0.0
  %800 = vmatprep.subr.mxu0 0.0
  %801 = vmatpush2.xpose.msra.mxu0 0.0
  %802 = vmatprep.subr.mxu0 0.0
  %803 = vmatpush2.xpose.msra.mxu0 0.0
  %804 = vmatprep.subr.mxu0 0.0
  %805 = vmatpush2.xpose.msra.mxu0 0.0
  %806 = vmatprep.subr.mxu0 0.0
  %807 = vmatpush2.xpose.msra.mxu0 0.0
  %808 = vmatprep.subr.mxu0 0.0
  %809 = vmatpush2.xpose.msra.mxu0 0.0
  %810 = vmatprep.subr.mxu0 0.0
  %811 = vmatpush2.xpose.msra.mxu0 0.0
  %812 = vmatprep.subr.mxu0 0.0
  %813 = vmatpush2.xpose.msra.mxu0 0.0
  %814 = vmatprep.subr.mxu0 0.0
  %815 = vmatpush2.xpose.msra.mxu0 0.0
  %816 = vmatprep.subr.mxu0 0.0
  %817 = vmatpush2.xpose.msra.mxu0 0.0
  %818 = vmatprep.subr.mxu0 0.0
  %819 = vmatpush2.xpose.msra.mxu0 0.0
  %820 = vmatprep.subr.mxu0 0.0
  %821 = vmatpush2.xpose.msra.mxu0 0.0
  %822 = vmatprep.subr.mxu0 0.0
  %823 = vmatpush2.xpose.msra.mxu0 0.0
  %824 = vmatprep.subr.mxu0 0.0
  %825 = vmatpush2.xpose.msra.mxu0 0.0
  %826 = vmatprep.subr.mxu0 0.0
  %827 = vmatpush2.xpose.msra.mxu0 0.0
  %828 = vmatprep.subr.mxu0 0.0
  %829 = vmatpush2.xpose.msra.mxu0 0.0
  %830 = vmatprep.mubr.f32.mxu0 0.0
  %831 = vmatmul.mubr.f32.gmra.mxu0 %v758
  %v832 = vpop.f32.mrf.mxu0
  %v833 = vadd.f32 %v25, %v832
  %v834 = vpop.f32.mrf.mxu0
  %835 = vmatprep.mubr.f32.mxu0 0.0
  %836 = vmatmul.mubr.f32.gmra.mxu0 %v760
  %v837 = vpop.f32.mrf.mxu0
  %v838 = vadd.f32 %v26, %v837
  %v839 = vpop.f32.mrf.mxu0
  %840 = vdwg.mxu0
  %v841 = vsel %vm727, %v833, -inf
  %842 = vmax.xlane.f32.xlu0 %v841
  %v843 = vpop.xlane.xlu0 %842
  %v844 = vsel %vm727, %v838, -inf
  %845 = vmax.xlane.f32.xlu0 %v844
  %v846 = vpop.xlane.xlu0 %845
  %v847 = vsub.f32 %v833, %v843
  %v848 = vsub.f32 %v838, %v846
  %v849 = vmul.f32 %v847, 1.442695
  %v850 = vpow.pop %v849
  %v851 = vmul.f32 %v848, 1.442695
  %v852 = vpow.pop %v851
  %v853 = vsel %vm727, %v850, 0.0
  %854 = vadd.xlane.f32.xlu0 %v853
  %v855 = vpop.xlane.xlu0 %854
  %v856 = vsel %vm727, %v852, 0.0
  %857 = vadd.xlane.f32.xlu0 %v856
  %v858 = vpop.xlane.xlu0 %857
  %v859 = vrcp.pop %v855
  %v860 = vrcp.pop %v858
  %v861 = vmul.f32 %v850, %v859
  %v862 = vmul.f32 %v852, %v860
  %863 = vrot.lane.b32.xlu0 %v629, 32
  %v864 = vpop.permute.xlu0 %863
  %865 = vrot.lane.b32.xlu0 %v633, 32
  %v866 = vpop.permute.xlu0 %865
  %v870 = vsel %vm727, %v861, 0
  %v873 = vsel %vm727, %v862, 0
  %875 = vmatprep.subr.mxu0 0.0
  %876 = vmatpush1.msra.mxu0 0.0
  %877 = vmatprep.subr.mxu0 0.0
  %878 = vmatpush1.msra.mxu0 0.0
  %879 = vmatprep.subr.mxu0 0.0
  %880 = vmatpush1.msra.mxu0 0.0
  %881 = vmatprep.subr.mxu0 0.0
  %882 = vmatpush1.msra.mxu0 0.0
  %883 = vmatprep.subr.mxu0 0.0
  %884 = vmatpush1.msra.mxu0 0.0
  %885 = vmatprep.subr.mxu0 0.0
  %886 = vmatpush1.msra.mxu0 0.0
  %887 = vmatprep.subr.mxu0 0.0
  %888 = vmatpush1.msra.mxu0 0.0
  %889 = vmatprep.subr.mxu0 0.0
  %890 = vmatpush1.msra.mxu0 0.0
  %891 = vmatprep.subr.mxu0 0.0
  %892 = vmatpush1.msra.mxu0 0.0
  %893 = vmatprep.subr.mxu0 0.0
  %894 = vmatpush1.msra.mxu0 0.0
  %895 = vmatprep.subr.mxu0 0.0
  %896 = vmatpush1.msra.mxu0 0.0
  %897 = vmatprep.subr.mxu0 0.0
  %898 = vmatpush1.msra.mxu0 0.0
  %899 = vmatprep.subr.mxu0 0.0
  %900 = vmatpush1.msra.mxu0 0.0
  %901 = vmatprep.subr.mxu0 0.0
  %902 = vmatpush1.msra.mxu0 0.0
  %903 = vmatprep.subr.mxu0 0.0
  %904 = vmatpush1.msra.mxu0 %v866
  %905 = vmatprep.subr.mxu0 0.0
  %906 = vmatpush1.msra.mxu0 %v864
  %907 = vmatprep.subr.mxu0 0.0
  %908 = vmatpush2.msra.mxu0 0.0
  %909 = vmatprep.subr.mxu0 0.0
  %910 = vmatpush2.msra.mxu0 0.0
  %911 = vmatprep.subr.mxu0 0.0
  %912 = vmatpush2.msra.mxu0 0.0
  %913 = vmatprep.subr.mxu0 0.0
  %914 = vmatpush2.msra.mxu0 0.0
  %915 = vmatprep.subr.mxu0 0.0
  %916 = vmatpush2.msra.mxu0 0.0
  %917 = vmatprep.subr.mxu0 0.0
  %918 = vmatpush2.msra.mxu0 0.0
  %919 = vmatprep.subr.mxu0 0.0
  %920 = vmatpush2.msra.mxu0 0.0
  %921 = vmatprep.subr.mxu0 0.0
  %922 = vmatpush2.msra.mxu0 0.0
  %923 = vmatprep.subr.mxu0 0.0
  %924 = vmatpush2.msra.mxu0 0.0
  %925 = vmatprep.subr.mxu0 0.0
  %926 = vmatpush2.msra.mxu0 0.0
  %927 = vmatprep.subr.mxu0 0.0
  %928 = vmatpush2.msra.mxu0 0.0
  %929 = vmatprep.subr.mxu0 0.0
  %930 = vmatpush2.msra.mxu0 0.0
  %931 = vmatprep.subr.mxu0 0.0
  %932 = vmatpush2.msra.mxu0 0.0
  %933 = vmatprep.subr.mxu0 0.0
  %934 = vmatpush2.msra.mxu0 0.0
  %935 = vmatprep.subr.mxu0 0.0
  %936 = vmatpush2.msra.mxu0 0.0
  %937 = vmatprep.subr.mxu0 0.0
  %938 = vmatpush2.msra.mxu0 0.0
  %939 = vmatprep.mubr.f32.mxu0 0.0
  %940 = vmatmul.mubr.f32.gmra.mxu0 %v870
  %v941 = vpop.f32.mrf.mxu0
  %v942 = vadd.f32 0.0, %v941
  %v943 = vpop.f32.mrf.mxu0
  %944 = vmatprep.mubr.f32.mxu0 0.0
  %945 = vmatmul.mubr.f32.gmra.mxu0 %v873
  %v946 = vpop.f32.mrf.mxu0
  %v947 = vadd.f32 0.0, %v946
  %v948 = vpop.f32.mrf.mxu0
  %949 = vdwg.mxu0
  %950 = vrot.lane.b32.xlu0 %v629, 64
  %v951 = vpop.permute.xlu0 %950
  %952 = vrot.lane.b32.xlu0 %v633, 64
  %v953 = vpop.permute.xlu0 %952
  %v957 = vsel %vm727, %v748, 0
  %v960 = vsel %vm727, %v749, 0
  %962 = vmatprep.subr.mxu0 0.0
  %963 = vmatpush1.msra.mxu0 0.0
  %964 = vmatprep.subr.mxu0 0.0
  %965 = vmatpush1.msra.mxu0 0.0
  %966 = vmatprep.subr.mxu0 0.0
  %967 = vmatpush1.msra.mxu0 0.0
  %968 = vmatprep.subr.mxu0 0.0
  %969 = vmatpush1.msra.mxu0 0.0
  %970 = vmatprep.subr.mxu0 0.0
  %971 = vmatpush1.msra.mxu0 0.0
  %972 = vmatprep.subr.mxu0 0.0
  %973 = vmatpush1.msra.mxu0 0.0
  %974 = vmatprep.subr.mxu0 0.0
  %975 = vmatpush1.msra.mxu0 0.0
  %976 = vmatprep.subr.mxu0 0.0
  %977 = vmatpush1.msra.mxu0 0.0
  %978 = vmatprep.subr.mxu0 0.0
  %979 = vmatpush1.msra.mxu0 0.0
  %980 = vmatprep.subr.mxu0 0.0
  %981 = vmatpush1.msra.mxu0 0.0
  %982 = vmatprep.subr.mxu0 0.0
  %983 = vmatpush1.msra.mxu0 0.0
  %984 = vmatprep.subr.mxu0 0.0
  %985 = vmatpush1.msra.mxu0 0.0
  %986 = vmatprep.subr.mxu0 0.0
  %987 = vmatpush1.msra.mxu0 0.0
  %988 = vmatprep.subr.mxu0 0.0
  %989 = vmatpush1.msra.mxu0 0.0
  %990 = vmatprep.subr.mxu0 0.0
  %991 = vmatpush1.msra.mxu0 %v953
  %992 = vmatprep.subr.mxu0 0.0
  %993 = vmatpush1.msra.mxu0 %v951
  %994 = vmatprep.subr.mxu0 0.0
  %995 = vmatpush2.msra.mxu0 0.0
  %996 = vmatprep.subr.mxu0 0.0
  %997 = vmatpush2.msra.mxu0 0.0
  %998 = vmatprep.subr.mxu0 0.0
  %999 = vmatpush2.msra.mxu0 0.0
  %1000 = vmatprep.subr.mxu0 0.0
  %1001 = vmatpush2.msra.mxu0 0.0
  %1002 = vmatprep.subr.mxu0 0.0
  %1003 = vmatpush2.msra.mxu0 0.0
  %1004 = vmatprep.subr.mxu0 0.0
  %1005 = vmatpush2.msra.mxu0 0.0
  %1006 = vmatprep.subr.mxu0 0.0
  %1007 = vmatpush2.msra.mxu0 0.0
  %1008 = vmatprep.subr.mxu0 0.0
  %1009 = vmatpush2.msra.mxu0 0.0
  %1010 = vmatprep.subr.mxu0 0.0
  %1011 = vmatpush2.msra.mxu0 0.0
  %1012 = vmatprep.subr.mxu0 0.0
  %1013 = vmatpush2.msra.mxu0 0.0
  %1014 = vmatprep.subr.mxu0 0.0
  %1015 = vmatpush2.msra.mxu0 0.0
  %1016 = vmatprep.subr.mxu0 0.0
  %1017 = vmatpush2.msra.mxu0 0.0
  %1018 = vmatprep.subr.mxu0 0.0
  %1019 = vmatpush2.msra.mxu0 0.0
  %1020 = vmatprep.subr.mxu0 0.0
  %1021 = vmatpush2.msra.mxu0 0.0
  %1022 = vmatprep.subr.mxu0 0.0
  %1023 = vmatpush2.msra.mxu0 0.0
  %1024 = vmatprep.subr.mxu0 0.0
  %1025 = vmatpush2.msra.mxu0 0.0
  %1026 = vmatprep.mubr.f32.mxu0 0.0
  %1027 = vmatmul.mubr.f32.gmra.mxu0 %v957
  %v1028 = vpop.f32.mrf.mxu0
  %v1029 = vadd.f32 %v942, %v1028
  %v1030 = vpop.f32.mrf.mxu0
  %1031 = vmatprep.mubr.f32.mxu0 0.0
  %1032 = vmatmul.mubr.f32.gmra.mxu0 %v960
  %v1033 = vpop.f32.mrf.mxu0
  %v1034 = vadd.f32 %v947, %v1033
  %v1035 = vpop.f32.mrf.mxu0
  %1036 = vdwg.mxu0
  %1037 = vrot.lane.b32.xlu0 %v629, 112
  %v1038 = vpop.permute.xlu0 %1037
  %1039 = vrot.lane.b32.xlu0 %v633, 112
  %v1040 = vpop.permute.xlu0 %1039
  %1041 = vrot.lane.b32.xlu0 %v629, 80
  %v1042 = vpop.permute.xlu0 %1041
  %1043 = vrot.lane.b32.xlu0 %v633, 80
  %v1044 = vpop.permute.xlu0 %1043
  %v1045 = vsel %vm643, %v1038, 0
  %v1047 = vsel %vm643, %v1040, 0
  %v1049 = vsel %vm643, %v1042, 0
  %v1051 = vsel %vm643, %v1044, 0
  %1053 = vmatprep.subr.mxu0 0.0
  %1054 = vmatpush1.xpose.msra.mxu0 0.0
  %1055 = vmatprep.subr.mxu0 0.0
  %1056 = vmatpush1.xpose.msra.mxu0 0.0
  %1057 = vmatprep.subr.mxu0 0.0
  %1058 = vmatpush1.xpose.msra.mxu0 0.0
  %1059 = vmatprep.subr.mxu0 0.0
  %1060 = vmatpush1.xpose.msra.mxu0 0.0
  %1061 = vmatprep.subr.mxu0 0.0
  %1062 = vmatpush1.xpose.msra.mxu0 0.0
  %1063 = vmatprep.subr.mxu0 0.0
  %1064 = vmatpush1.xpose.msra.mxu0 0.0
  %1065 = vmatprep.subr.mxu0 0.0
  %1066 = vmatpush1.xpose.msra.mxu0 0.0
  %1067 = vmatprep.subr.mxu0 0.0
  %1068 = vmatpush1.xpose.msra.mxu0 0.0
  %1069 = vmatprep.subr.mxu0 0.0
  %1070 = vmatpush1.xpose.msra.mxu0 0.0
  %1071 = vmatprep.subr.mxu0 0.0
  %1072 = vmatpush1.xpose.msra.mxu0 0.0
  %1073 = vmatprep.subr.mxu0 0.0
  %1074 = vmatpush1.xpose.msra.mxu0 0.0
  %1075 = vmatprep.subr.mxu0 0.0
  %1076 = vmatpush1.xpose.msra.mxu0 0.0
  %1077 = vmatprep.subr.mxu0 0.0
  %1078 = vmatpush1.xpose.msra.mxu0 0.0
  %1079 = vmatprep.subr.mxu0 0.0
  %1080 = vmatpush1.xpose.msra.mxu0 0.0
  %1081 = vmatprep.subr.mxu0 0.0
  %1082 = vmatpush1.xpose.msra.mxu0 %v1051
  %1083 = vmatprep.subr.mxu0 0.0
  %1084 = vmatpush1.xpose.msra.mxu0 %v1049
  %1085 = vmatprep.subr.mxu0 0.0
  %1086 = vmatpush2.xpose.msra.mxu0 0.0
  %1087 = vmatprep.subr.mxu0 0.0
  %1088 = vmatpush2.xpose.msra.mxu0 0.0
  %1089 = vmatprep.subr.mxu0 0.0
  %1090 = vmatpush2.xpose.msra.mxu0 0.0
  %1091 = vmatprep.subr.mxu0 0.0
  %1092 = vmatpush2.xpose.msra.mxu0 0.0
  %1093 = vmatprep.subr.mxu0 0.0
  %1094 = vmatpush2.xpose.msra.mxu0 0.0
  %1095 = vmatprep.subr.mxu0 0.0
  %1096 = vmatpush2.xpose.msra.mxu0 0.0
  %1097 = vmatprep.subr.mxu0 0.0
  %1098 = vmatpush2.xpose.msra.mxu0 0.0
  %1099 = vmatprep.subr.mxu0 0.0
  %1100 = vmatpush2.xpose.msra.mxu0 0.0
  %1101 = vmatprep.subr.mxu0 0.0
  %1102 = vmatpush2.xpose.msra.mxu0 0.0
  %1103 = vmatprep.subr.mxu0 0.0
  %1104 = vmatpush2.xpose.msra.mxu0 0.0
  %1105 = vmatprep.subr.mxu0 0.0
  %1106 = vmatpush2.xpose.msra.mxu0 0.0
  %1107 = vmatprep.subr.mxu0 0.0
  %1108 = vmatpush2.xpose.msra.mxu0 0.0
  %1109 = vmatprep.subr.mxu0 0.0
  %1110 = vmatpush2.xpose.msra.mxu0 0.0
  %1111 = vmatprep.subr.mxu0 0.0
  %1112 = vmatpush2.xpose.msra.mxu0 0.0
  %1113 = vmatprep.subr.mxu0 0.0
  %1114 = vmatpush2.xpose.msra.mxu0 0.0
  %1115 = vmatprep.subr.mxu0 0.0
  %1116 = vmatpush2.xpose.msra.mxu0 0.0
  %1117 = vmatprep.mubr.f32.mxu0 0.0
  %1118 = vmatmul.mubr.f32.gmra.mxu0 %v1045
  %v1119 = vpop.f32.mrf.mxu0
  %v1120 = vadd.f32 %v25, %v1119
  %v1121 = vpop.f32.mrf.mxu0
  %1122 = vmatprep.mubr.f32.mxu0 0.0
  %1123 = vmatmul.mubr.f32.gmra.mxu0 %v1047
  %v1124 = vpop.f32.mrf.mxu0
  %v1125 = vadd.f32 %v26, %v1124
  %v1126 = vpop.f32.mrf.mxu0
  %1127 = vdwg.mxu0
  %v1128 = vsel %vm727, %v1120, -inf
  %1129 = vmax.xlane.f32.xlu0 %v1128
  %v1130 = vpop.xlane.xlu0 %1129
  %v1131 = vsel %vm727, %v1125, -inf
  %1132 = vmax.xlane.f32.xlu0 %v1131
  %v1133 = vpop.xlane.xlu0 %1132
  %v1134 = vsub.f32 %v1120, %v1130
  %v1135 = vsub.f32 %v1125, %v1133
  %v1136 = vmul.f32 %v1134, 1.442695
  %v1137 = vpow.pop %v1136
  %v1138 = vmul.f32 %v1135, 1.442695
  %v1139 = vpow.pop %v1138
  %v1140 = vsel %vm727, %v1137, 0.0
  %1141 = vadd.xlane.f32.xlu0 %v1140
  %v1142 = vpop.xlane.xlu0 %1141
  %v1143 = vsel %vm727, %v1139, 0.0
  %1144 = vadd.xlane.f32.xlu0 %v1143
  %v1145 = vpop.xlane.xlu0 %1144
  %v1146 = vrcp.pop %v1142
  %v1147 = vrcp.pop %v1145
  %v1148 = vmul.f32 %v1137, %v1146
  %v1149 = vmul.f32 %v1139, %v1147
  %v1151 = vsel %vm727, %v1148, 0
  %v1154 = vsel %vm727, %v1149, 0
  %1156 = vmatprep.subr.mxu0 0.0
  %1157 = vmatpush1.msra.mxu0 0.0
  %1158 = vmatprep.subr.mxu0 0.0
  %1159 = vmatpush1.msra.mxu0 0.0
  %1160 = vmatprep.subr.mxu0 0.0
  %1161 = vmatpush1.msra.mxu0 0.0
  %1162 = vmatprep.subr.mxu0 0.0
  %1163 = vmatpush1.msra.mxu0 0.0
  %1164 = vmatprep.subr.mxu0 0.0
  %1165 = vmatpush1.msra.mxu0 0.0
  %1166 = vmatprep.subr.mxu0 0.0
  %1167 = vmatpush1.msra.mxu0 0.0
  %1168 = vmatprep.subr.mxu0 0.0
  %1169 = vmatpush1.msra.mxu0 0.0
  %1170 = vmatprep.subr.mxu0 0.0
  %1171 = vmatpush1.msra.mxu0 0.0
  %1172 = vmatprep.subr.mxu0 0.0
  %1173 = vmatpush1.msra.mxu0 0.0
  %1174 = vmatprep.subr.mxu0 0.0
  %1175 = vmatpush1.msra.mxu0 0.0
  %1176 = vmatprep.subr.mxu0 0.0
  %1177 = vmatpush1.msra.mxu0 0.0
  %1178 = vmatprep.subr.mxu0 0.0
  %1179 = vmatpush1.msra.mxu0 0.0
  %1180 = vmatprep.subr.mxu0 0.0
  %1181 = vmatpush1.msra.mxu0 0.0
  %1182 = vmatprep.subr.mxu0 0.0
  %1183 = vmatpush1.msra.mxu0 0.0
  %1184 = vmatprep.subr.mxu0 0.0
  %1185 = vmatpush1.msra.mxu0 %v634
  %1186 = vmatprep.subr.mxu0 0.0
  %1187 = vmatpush1.msra.mxu0 %v630
  %1188 = vmatprep.subr.mxu0 0.0
  %1189 = vmatpush2.msra.mxu0 0.0
  %1190 = vmatprep.subr.mxu0 0.0
  %1191 = vmatpush2.msra.mxu0 0.0
  %1192 = vmatprep.subr.mxu0 0.0
  %1193 = vmatpush2.msra.mxu0 0.0
  %1194 = vmatprep.subr.mxu0 0.0
  %1195 = vmatpush2.msra.mxu0 0.0
  %1196 = vmatprep.subr.mxu0 0.0
  %1197 = vmatpush2.msra.mxu0 0.0
  %1198 = vmatprep.subr.mxu0 0.0
  %1199 = vmatpush2.msra.mxu0 0.0
  %1200 = vmatprep.subr.mxu0 0.0
  %1201 = vmatpush2.msra.mxu0 0.0
  %1202 = vmatprep.subr.mxu0 0.0
  %1203 = vmatpush2.msra.mxu0 0.0
  %1204 = vmatprep.subr.mxu0 0.0
  %1205 = vmatpush2.msra.mxu0 0.0
  %1206 = vmatprep.subr.mxu0 0.0
  %1207 = vmatpush2.msra.mxu0 0.0
  %1208 = vmatprep.subr.mxu0 0.0
  %1209 = vmatpush2.msra.mxu0 0.0
  %1210 = vmatprep.subr.mxu0 0.0
  %1211 = vmatpush2.msra.mxu0 0.0
  %1212 = vmatprep.subr.mxu0 0.0
  %1213 = vmatpush2.msra.mxu0 0.0
  %1214 = vmatprep.subr.mxu0 0.0
  %1215 = vmatpush2.msra.mxu0 0.0
  %1216 = vmatprep.subr.mxu0 0.0
  %1217 = vmatpush2.msra.mxu0 0.0
  %1218 = vmatprep.subr.mxu0 0.0
  %1219 = vmatpush2.msra.mxu0 0.0
  %1220 = vmatprep.mubr.f32.mxu0 0.0
  %1221 = vmatmul.mubr.f32.gmra.mxu0 %v1151
  %v1222 = vpop.f32.mrf.mxu0
  %v1223 = vadd.f32 0.0, %v1222
  %v1224 = vpop.f32.mrf.mxu0
  %1225 = vmatprep.mubr.f32.mxu0 0.0
  %1226 = vmatmul.mubr.f32.gmra.mxu0 %v1154
  %v1227 = vpop.f32.mrf.mxu0
  %v1228 = vadd.f32 0.0, %v1227
  %v1229 = vpop.f32.mrf.mxu0
  %1230 = vdwg.mxu0
  %v1231 = vadd.f32 %v1029, %v1223
  %v1232 = vadd.f32 %v1034, %v1228
  %1233 = vrot.lane.b32.xlu0 %v629, 104
  %v1234 = vpop.permute.xlu0 %1233
  %1235 = vrot.lane.b32.xlu0 %v633, 104
  %v1236 = vpop.permute.xlu0 %1235
  %1237 = vrot.lane.b32.xlu0 %v629, 72
  %v1238 = vpop.permute.xlu0 %1237
  %1239 = vrot.lane.b32.xlu0 %v633, 72
  %v1240 = vpop.permute.xlu0 %1239
  %v1241 = vsel %vm643, %v1234, 0
  %v1243 = vsel %vm643, %v1236, 0
  %v1245 = vsel %vm643, %v1238, 0
  %v1247 = vsel %vm643, %v1240, 0
  %1249 = vmatprep.subr.mxu0 0.0
  %1250 = vmatpush1.xpose.msra.mxu0 0.0
  %1251 = vmatprep.subr.mxu0 0.0
  %1252 = vmatpush1.xpose.msra.mxu0 0.0
  %1253 = vmatprep.subr.mxu0 0.0
  %1254 = vmatpush1.xpose.msra.mxu0 0.0
  %1255 = vmatprep.subr.mxu0 0.0
  %1256 = vmatpush1.xpose.msra.mxu0 0.0
  %1257 = vmatprep.subr.mxu0 0.0
  %1258 = vmatpush1.xpose.msra.mxu0 0.0
  %1259 = vmatprep.subr.mxu0 0.0
  %1260 = vmatpush1.xpose.msra.mxu0 0.0
  %1261 = vmatprep.subr.mxu0 0.0
  %1262 = vmatpush1.xpose.msra.mxu0 0.0
  %1263 = vmatprep.subr.mxu0 0.0
  %1264 = vmatpush1.xpose.msra.mxu0 0.0
  %1265 = vmatprep.subr.mxu0 0.0
  %1266 = vmatpush1.xpose.msra.mxu0 0.0
  %1267 = vmatprep.subr.mxu0 0.0
  %1268 = vmatpush1.xpose.msra.mxu0 0.0
  %1269 = vmatprep.subr.mxu0 0.0
  %1270 = vmatpush1.xpose.msra.mxu0 0.0
  %1271 = vmatprep.subr.mxu0 0.0
  %1272 = vmatpush1.xpose.msra.mxu0 0.0
  %1273 = vmatprep.subr.mxu0 0.0
  %1274 = vmatpush1.xpose.msra.mxu0 0.0
  %1275 = vmatprep.subr.mxu0 0.0
  %1276 = vmatpush1.xpose.msra.mxu0 0.0
  %1277 = vmatprep.subr.mxu0 0.0
  %1278 = vmatpush1.xpose.msra.mxu0 %v1247
  %1279 = vmatprep.subr.mxu0 0.0
  %1280 = vmatpush1.xpose.msra.mxu0 %v1245
  %1281 = vmatprep.subr.mxu0 0.0
  %1282 = vmatpush2.xpose.msra.mxu0 0.0
  %1283 = vmatprep.subr.mxu0 0.0
  %1284 = vmatpush2.xpose.msra.mxu0 0.0
  %1285 = vmatprep.subr.mxu0 0.0
  %1286 = vmatpush2.xpose.msra.mxu0 0.0
  %1287 = vmatprep.subr.mxu0 0.0
  %1288 = vmatpush2.xpose.msra.mxu0 0.0
  %1289 = vmatprep.subr.mxu0 0.0
  %1290 = vmatpush2.xpose.msra.mxu0 0.0
  %1291 = vmatprep.subr.mxu0 0.0
  %1292 = vmatpush2.xpose.msra.mxu0 0.0
  %1293 = vmatprep.subr.mxu0 0.0
  %1294 = vmatpush2.xpose.msra.mxu0 0.0
  %1295 = vmatprep.subr.mxu0 0.0
  %1296 = vmatpush2.xpose.msra.mxu0 0.0
  %1297 = vmatprep.subr.mxu0 0.0
  %1298 = vmatpush2.xpose.msra.mxu0 0.0
  %1299 = vmatprep.subr.mxu0 0.0
  %1300 = vmatpush2.xpose.msra.mxu0 0.0
  %1301 = vmatprep.subr.mxu0 0.0
  %1302 = vmatpush2.xpose.msra.mxu0 0.0
  %1303 = vmatprep.subr.mxu0 0.0
  %1304 = vmatpush2.xpose.msra.mxu0 0.0
  %1305 = vmatprep.subr.mxu0 0.0
  %1306 = vmatpush2.xpose.msra.mxu0 0.0
  %1307 = vmatprep.subr.mxu0 0.0
  %1308 = vmatpush2.xpose.msra.mxu0 0.0
  %1309 = vmatprep.subr.mxu0 0.0
  %1310 = vmatpush2.xpose.msra.mxu0 0.0
  %1311 = vmatprep.subr.mxu0 0.0
  %1312 = vmatpush2.xpose.msra.mxu0 0.0
  %1313 = vmatprep.mubr.f32.mxu0 0.0
  %1314 = vmatmul.mubr.f32.gmra.mxu0 %v1241
  %v1315 = vpop.f32.mrf.mxu0
  %v1316 = vadd.f32 %v25, %v1315
  %v1317 = vpop.f32.mrf.mxu0
  %1318 = vmatprep.mubr.f32.mxu0 0.0
  %1319 = vmatmul.mubr.f32.gmra.mxu0 %v1243
  %v1320 = vpop.f32.mrf.mxu0
  %v1321 = vadd.f32 %v26, %v1320
  %v1322 = vpop.f32.mrf.mxu0
  %1323 = vdwg.mxu0
  %v1324 = vsel %vm727, %v1316, -inf
  %1325 = vmax.xlane.f32.xlu0 %v1324
  %v1326 = vpop.xlane.xlu0 %1325
  %v1327 = vsel %vm727, %v1321, -inf
  %1328 = vmax.xlane.f32.xlu0 %v1327
  %v1329 = vpop.xlane.xlu0 %1328
  %v1330 = vsub.f32 %v1316, %v1326
  %v1331 = vsub.f32 %v1321, %v1329
  %v1332 = vmul.f32 %v1330, 1.442695
  %v1333 = vpow.pop %v1332
  %v1334 = vmul.f32 %v1331, 1.442695
  %v1335 = vpow.pop %v1334
  %v1336 = vsel %vm727, %v1333, 0.0
  %1337 = vadd.xlane.f32.xlu0 %v1336
  %v1338 = vpop.xlane.xlu0 %1337
  %v1339 = vsel %vm727, %v1335, 0.0
  %1340 = vadd.xlane.f32.xlu0 %v1339
  %v1341 = vpop.xlane.xlu0 %1340
  %v1342 = vrcp.pop %v1338
  %v1343 = vrcp.pop %v1341
  %v1344 = vmul.f32 %v1333, %v1342
  %v1345 = vmul.f32 %v1335, %v1343
  %1348 = vrot.lane.b32.xlu0 %v630, 96
  %v1349 = vpop.permute.xlu0 %1348
  %1350 = vrot.lane.b32.xlu0 %v634, 96
  %v1351 = vpop.permute.xlu0 %1350
  %v1355 = vsel %vm727, %v1344, 0
  %v1358 = vsel %vm727, %v1345, 0
  %1360 = vmatprep.subr.mxu0 0.0
  %1361 = vmatpush1.msra.mxu0 0.0
  %1362 = vmatprep.subr.mxu0 0.0
  %1363 = vmatpush1.msra.mxu0 0.0
  %1364 = vmatprep.subr.mxu0 0.0
  %1365 = vmatpush1.msra.mxu0 0.0
  %1366 = vmatprep.subr.mxu0 0.0
  %1367 = vmatpush1.msra.mxu0 0.0
  %1368 = vmatprep.subr.mxu0 0.0
  %1369 = vmatpush1.msra.mxu0 0.0
  %1370 = vmatprep.subr.mxu0 0.0
  %1371 = vmatpush1.msra.mxu0 0.0
  %1372 = vmatprep.subr.mxu0 0.0
  %1373 = vmatpush1.msra.mxu0 0.0
  %1374 = vmatprep.subr.mxu0 0.0
  %1375 = vmatpush1.msra.mxu0 0.0
  %1376 = vmatprep.subr.mxu0 0.0
  %1377 = vmatpush1.msra.mxu0 0.0
  %1378 = vmatprep.subr.mxu0 0.0
  %1379 = vmatpush1.msra.mxu0 0.0
  %1380 = vmatprep.subr.mxu0 0.0
  %1381 = vmatpush1.msra.mxu0 0.0
  %1382 = vmatprep.subr.mxu0 0.0
  %1383 = vmatpush1.msra.mxu0 0.0
  %1384 = vmatprep.subr.mxu0 0.0
  %1385 = vmatpush1.msra.mxu0 0.0
  %1386 = vmatprep.subr.mxu0 0.0
  %1387 = vmatpush1.msra.mxu0 0.0
  %1388 = vmatprep.subr.mxu0 0.0
  %1389 = vmatpush1.msra.mxu0 %v1351
  %1390 = vmatprep.subr.mxu0 0.0
  %1391 = vmatpush1.msra.mxu0 %v1349
  %1392 = vmatprep.subr.mxu0 0.0
  %1393 = vmatpush2.msra.mxu0 0.0
  %1394 = vmatprep.subr.mxu0 0.0
  %1395 = vmatpush2.msra.mxu0 0.0
  %1396 = vmatprep.subr.mxu0 0.0
  %1397 = vmatpush2.msra.mxu0 0.0
  %1398 = vmatprep.subr.mxu0 0.0
  %1399 = vmatpush2.msra.mxu0 0.0
  %1400 = vmatprep.subr.mxu0 0.0
  %1401 = vmatpush2.msra.mxu0 0.0
  %1402 = vmatprep.subr.mxu0 0.0
  %1403 = vmatpush2.msra.mxu0 0.0
  %1404 = vmatprep.subr.mxu0 0.0
  %1405 = vmatpush2.msra.mxu0 0.0
  %1406 = vmatprep.subr.mxu0 0.0
  %1407 = vmatpush2.msra.mxu0 0.0
  %1408 = vmatprep.subr.mxu0 0.0
  %1409 = vmatpush2.msra.mxu0 0.0
  %1410 = vmatprep.subr.mxu0 0.0
  %1411 = vmatpush2.msra.mxu0 0.0
  %1412 = vmatprep.subr.mxu0 0.0
  %1413 = vmatpush2.msra.mxu0 0.0
  %1414 = vmatprep.subr.mxu0 0.0
  %1415 = vmatpush2.msra.mxu0 0.0
  %1416 = vmatprep.subr.mxu0 0.0
  %1417 = vmatpush2.msra.mxu0 0.0
  %1418 = vmatprep.subr.mxu0 0.0
  %1419 = vmatpush2.msra.mxu0 0.0
  %1420 = vmatprep.subr.mxu0 0.0
  %1421 = vmatpush2.msra.mxu0 0.0
  %1422 = vmatprep.subr.mxu0 0.0
  %1423 = vmatpush2.msra.mxu0 0.0
  %1424 = vmatprep.mubr.f32.mxu0 0.0
  %1425 = vmatmul.mubr.f32.gmra.mxu0 %v1355
  %v1426 = vpop.f32.mrf.mxu0
  %v1427 = vadd.f32 0.0, %v1426
  %v1428 = vpop.f32.mrf.mxu0
  %1429 = vmatprep.mubr.f32.mxu0 0.0
  %1430 = vmatmul.mubr.f32.gmra.mxu0 %v1358
  %v1431 = vpop.f32.mrf.mxu0
  %v1432 = vadd.f32 0.0, %v1431
  %v1433 = vpop.f32.mrf.mxu0
  %1434 = vdwg.mxu0
  %v1435 = vadd.f32 %v1231, %v1427
  %v1436 = vadd.f32 %v1232, %v1432
  %1439 = vrot.lane.b32.xlu0 %v631, 96
  %v1440 = vpop.permute.xlu0 %1439
  %1441 = vrot.lane.b32.xlu0 %v635, 96
  %v1442 = vpop.permute.xlu0 %1441
  %v1443 = vsel %vm643, %v631, 0
  %v1445 = vsel %vm643, %v635, 0
  %v1447 = vsel %vm643, %v1440, 0
  %v1449 = vsel %vm643, %v1442, 0
  %1451 = vmatprep.subr.mxu0 0.0
  %1452 = vmatpush1.xpose.msra.mxu0 0.0
  %1453 = vmatprep.subr.mxu0 0.0
  %1454 = vmatpush1.xpose.msra.mxu0 0.0
  %1455 = vmatprep.subr.mxu0 0.0
  %1456 = vmatpush1.xpose.msra.mxu0 0.0
  %1457 = vmatprep.subr.mxu0 0.0
  %1458 = vmatpush1.xpose.msra.mxu0 0.0
  %1459 = vmatprep.subr.mxu0 0.0
  %1460 = vmatpush1.xpose.msra.mxu0 0.0
  %1461 = vmatprep.subr.mxu0 0.0
  %1462 = vmatpush1.xpose.msra.mxu0 0.0
  %1463 = vmatprep.subr.mxu0 0.0
  %1464 = vmatpush1.xpose.msra.mxu0 0.0
  %1465 = vmatprep.subr.mxu0 0.0
  %1466 = vmatpush1.xpose.msra.mxu0 0.0
  %1467 = vmatprep.subr.mxu0 0.0
  %1468 = vmatpush1.xpose.msra.mxu0 0.0
  %1469 = vmatprep.subr.mxu0 0.0
  %1470 = vmatpush1.xpose.msra.mxu0 0.0
  %1471 = vmatprep.subr.mxu0 0.0
  %1472 = vmatpush1.xpose.msra.mxu0 0.0
  %1473 = vmatprep.subr.mxu0 0.0
  %1474 = vmatpush1.xpose.msra.mxu0 0.0
  %1475 = vmatprep.subr.mxu0 0.0
  %1476 = vmatpush1.xpose.msra.mxu0 0.0
  %1477 = vmatprep.subr.mxu0 0.0
  %1478 = vmatpush1.xpose.msra.mxu0 0.0
  %1479 = vmatprep.subr.mxu0 0.0
  %1480 = vmatpush1.xpose.msra.mxu0 %v1449
  %1481 = vmatprep.subr.mxu0 0.0
  %1482 = vmatpush1.xpose.msra.mxu0 %v1447
  %1483 = vmatprep.subr.mxu0 0.0
  %1484 = vmatpush2.xpose.msra.mxu0 0.0
  %1485 = vmatprep.subr.mxu0 0.0
  %1486 = vmatpush2.xpose.msra.mxu0 0.0
  %1487 = vmatprep.subr.mxu0 0.0
  %1488 = vmatpush2.xpose.msra.mxu0 0.0
  %1489 = vmatprep.subr.mxu0 0.0
  %1490 = vmatpush2.xpose.msra.mxu0 0.0
  %1491 = vmatprep.subr.mxu0 0.0
  %1492 = vmatpush2.xpose.msra.mxu0 0.0
  %1493 = vmatprep.subr.mxu0 0.0
  %1494 = vmatpush2.xpose.msra.mxu0 0.0
  %1495 = vmatprep.subr.mxu0 0.0
  %1496 = vmatpush2.xpose.msra.mxu0 0.0
  %1497 = vmatprep.subr.mxu0 0.0
  %1498 = vmatpush2.xpose.msra.mxu0 0.0
  %1499 = vmatprep.subr.mxu0 0.0
  %1500 = vmatpush2.xpose.msra.mxu0 0.0
  %1501 = vmatprep.subr.mxu0 0.0
  %1502 = vmatpush2.xpose.msra.mxu0 0.0
  %1503 = vmatprep.subr.mxu0 0.0
  %1504 = vmatpush2.xpose.msra.mxu0 0.0
  %1505 = vmatprep.subr.mxu0 0.0
  %1506 = vmatpush2.xpose.msra.mxu0 0.0
  %1507 = vmatprep.subr.mxu0 0.0
  %1508 = vmatpush2.xpose.msra.mxu0 0.0
  %1509 = vmatprep.subr.mxu0 0.0
  %1510 = vmatpush2.xpose.msra.mxu0 0.0
  %1511 = vmatprep.subr.mxu0 0.0
  %1512 = vmatpush2.xpose.msra.mxu0 0.0
  %1513 = vmatprep.subr.mxu0 0.0
  %1514 = vmatpush2.xpose.msra.mxu0 0.0
  %1515 = vmatprep.mubr.f32.mxu0 0.0
  %1516 = vmatmul.mubr.f32.gmra.mxu0 %v1443
  %v1517 = vpop.f32.mrf.mxu0
  %v1518 = vadd.f32 %v27, %v1517
  %v1519 = vpop.f32.mrf.mxu0
  %1520 = vmatprep.mubr.f32.mxu0 0.0
  %1521 = vmatmul.mubr.f32.gmra.mxu0 %v1445
  %v1522 = vpop.f32.mrf.mxu0
  %v1523 = vadd.f32 %v28, %v1522
  %v1524 = vpop.f32.mrf.mxu0
  %1525 = vdwg.mxu0
  %v1526 = vsel %vm727, %v1518, -inf
  %1527 = vmax.xlane.f32.xlu0 %v1526
  %v1528 = vpop.xlane.xlu0 %1527
  %v1529 = vsel %vm727, %v1523, -inf
  %1530 = vmax.xlane.f32.xlu0 %v1529
  %v1531 = vpop.xlane.xlu0 %1530
  %v1532 = vsub.f32 %v1518, %v1528
  %v1533 = vsub.f32 %v1523, %v1531
  %v1534 = vmul.f32 %v1532, 1.442695
  %v1535 = vpow.pop %v1534
  %v1536 = vmul.f32 %v1533, 1.442695
  %v1537 = vpow.pop %v1536
  %v1538 = vsel %vm727, %v1535, 0.0
  %1539 = vadd.xlane.f32.xlu0 %v1538
  %v1540 = vpop.xlane.xlu0 %1539
  %v1541 = vsel %vm727, %v1537, 0.0
  %1542 = vadd.xlane.f32.xlu0 %v1541
  %v1543 = vpop.xlane.xlu0 %1542
  %v1544 = vrcp.pop %v1540
  %v1545 = vrcp.pop %v1543
  %v1546 = vmul.f32 %v1535, %v1544
  %v1547 = vmul.f32 %v1537, %v1545
  %1548 = vrot.lane.b32.xlu0 %v631, 64
  %v1549 = vpop.permute.xlu0 %1548
  %1550 = vrot.lane.b32.xlu0 %v635, 64
  %v1551 = vpop.permute.xlu0 %1550
  %v1555 = vsel %vm727, %v1546, 0
  %v1558 = vsel %vm727, %v1547, 0
  %1560 = vmatprep.subr.mxu0 0.0
  %1561 = vmatpush1.msra.mxu0 0.0
  %1562 = vmatprep.subr.mxu0 0.0
  %1563 = vmatpush1.msra.mxu0 0.0
  %1564 = vmatprep.subr.mxu0 0.0
  %1565 = vmatpush1.msra.mxu0 0.0
  %1566 = vmatprep.subr.mxu0 0.0
  %1567 = vmatpush1.msra.mxu0 0.0
  %1568 = vmatprep.subr.mxu0 0.0
  %1569 = vmatpush1.msra.mxu0 0.0
  %1570 = vmatprep.subr.mxu0 0.0
  %1571 = vmatpush1.msra.mxu0 0.0
  %1572 = vmatprep.subr.mxu0 0.0
  %1573 = vmatpush1.msra.mxu0 0.0
  %1574 = vmatprep.subr.mxu0 0.0
  %1575 = vmatpush1.msra.mxu0 0.0
  %1576 = vmatprep.subr.mxu0 0.0
  %1577 = vmatpush1.msra.mxu0 0.0
  %1578 = vmatprep.subr.mxu0 0.0
  %1579 = vmatpush1.msra.mxu0 0.0
  %1580 = vmatprep.subr.mxu0 0.0
  %1581 = vmatpush1.msra.mxu0 0.0
  %1582 = vmatprep.subr.mxu0 0.0
  %1583 = vmatpush1.msra.mxu0 0.0
  %1584 = vmatprep.subr.mxu0 0.0
  %1585 = vmatpush1.msra.mxu0 0.0
  %1586 = vmatprep.subr.mxu0 0.0
  %1587 = vmatpush1.msra.mxu0 0.0
  %1588 = vmatprep.subr.mxu0 0.0
  %1589 = vmatpush1.msra.mxu0 %v1551
  %1590 = vmatprep.subr.mxu0 0.0
  %1591 = vmatpush1.msra.mxu0 %v1549
  %1592 = vmatprep.subr.mxu0 0.0
  %1593 = vmatpush2.msra.mxu0 0.0
  %1594 = vmatprep.subr.mxu0 0.0
  %1595 = vmatpush2.msra.mxu0 0.0
  %1596 = vmatprep.subr.mxu0 0.0
  %1597 = vmatpush2.msra.mxu0 0.0
  %1598 = vmatprep.subr.mxu0 0.0
  %1599 = vmatpush2.msra.mxu0 0.0
  %1600 = vmatprep.subr.mxu0 0.0
  %1601 = vmatpush2.msra.mxu0 0.0
  %1602 = vmatprep.subr.mxu0 0.0
  %1603 = vmatpush2.msra.mxu0 0.0
  %1604 = vmatprep.subr.mxu0 0.0
  %1605 = vmatpush2.msra.mxu0 0.0
  %1606 = vmatprep.subr.mxu0 0.0
  %1607 = vmatpush2.msra.mxu0 0.0
  %1608 = vmatprep.subr.mxu0 0.0
  %1609 = vmatpush2.msra.mxu0 0.0
  %1610 = vmatprep.subr.mxu0 0.0
  %1611 = vmatpush2.msra.mxu0 0.0
  %1612 = vmatprep.subr.mxu0 0.0
  %1613 = vmatpush2.msra.mxu0 0.0
  %1614 = vmatprep.subr.mxu0 0.0
  %1615 = vmatpush2.msra.mxu0 0.0
  %1616 = vmatprep.subr.mxu0 0.0
  %1617 = vmatpush2.msra.mxu0 0.0
  %1618 = vmatprep.subr.mxu0 0.0
  %1619 = vmatpush2.msra.mxu0 0.0
  %1620 = vmatprep.subr.mxu0 0.0
  %1621 = vmatpush2.msra.mxu0 0.0
  %1622 = vmatprep.subr.mxu0 0.0
  %1623 = vmatpush2.msra.mxu0 0.0
  %1624 = vmatprep.mubr.f32.mxu0 0.0
  %1625 = vmatmul.mubr.f32.gmra.mxu0 %v1555
  %v1626 = vpop.f32.mrf.mxu0
  %v1627 = vadd.f32 0.0, %v1626
  %v1628 = vpop.f32.mrf.mxu0
  %1629 = vmatprep.mubr.f32.mxu0 0.0
  %1630 = vmatmul.mubr.f32.gmra.mxu0 %v1558
  %v1631 = vpop.f32.mrf.mxu0
  %v1632 = vadd.f32 0.0, %v1631
  %v1633 = vpop.f32.mrf.mxu0
  %1634 = vdwg.mxu0
  %v1635 = vadd.f32 %v1435, %v1627
  %v1636 = vadd.f32 %v1436, %v1632
  %1637 = vrot.lane.b32.xlu0 %v631, 120
  %v1638 = vpop.permute.xlu0 %1637
  %1639 = vrot.lane.b32.xlu0 %v635, 120
  %v1640 = vpop.permute.xlu0 %1639
  %1641 = vrot.lane.b32.xlu0 %v631, 88
  %v1642 = vpop.permute.xlu0 %1641
  %1643 = vrot.lane.b32.xlu0 %v635, 88
  %v1644 = vpop.permute.xlu0 %1643
  %v1645 = vsel %vm643, %v1638, 0
  %v1647 = vsel %vm643, %v1640, 0
  %v1649 = vsel %vm643, %v1642, 0
  %v1651 = vsel %vm643, %v1644, 0
  %1653 = vmatprep.subr.mxu0 0.0
  %1654 = vmatpush1.xpose.msra.mxu0 0.0
  %1655 = vmatprep.subr.mxu0 0.0
  %1656 = vmatpush1.xpose.msra.mxu0 0.0
  %1657 = vmatprep.subr.mxu0 0.0
  %1658 = vmatpush1.xpose.msra.mxu0 0.0
  %1659 = vmatprep.subr.mxu0 0.0
  %1660 = vmatpush1.xpose.msra.mxu0 0.0
  %1661 = vmatprep.subr.mxu0 0.0
  %1662 = vmatpush1.xpose.msra.mxu0 0.0
  %1663 = vmatprep.subr.mxu0 0.0
  %1664 = vmatpush1.xpose.msra.mxu0 0.0
  %1665 = vmatprep.subr.mxu0 0.0
  %1666 = vmatpush1.xpose.msra.mxu0 0.0
  %1667 = vmatprep.subr.mxu0 0.0
  %1668 = vmatpush1.xpose.msra.mxu0 0.0
  %1669 = vmatprep.subr.mxu0 0.0
  %1670 = vmatpush1.xpose.msra.mxu0 0.0
  %1671 = vmatprep.subr.mxu0 0.0
  %1672 = vmatpush1.xpose.msra.mxu0 0.0
  %1673 = vmatprep.subr.mxu0 0.0
  %1674 = vmatpush1.xpose.msra.mxu0 0.0
  %1675 = vmatprep.subr.mxu0 0.0
  %1676 = vmatpush1.xpose.msra.mxu0 0.0
  %1677 = vmatprep.subr.mxu0 0.0
  %1678 = vmatpush1.xpose.msra.mxu0 0.0
  %1679 = vmatprep.subr.mxu0 0.0
  %1680 = vmatpush1.xpose.msra.mxu0 0.0
  %1681 = vmatprep.subr.mxu0 0.0
  %1682 = vmatpush1.xpose.msra.mxu0 %v1651
  %1683 = vmatprep.subr.mxu0 0.0
  %1684 = vmatpush1.xpose.msra.mxu0 %v1649
  %1685 = vmatprep.subr.mxu0 0.0
  %1686 = vmatpush2.xpose.msra.mxu0 0.0
  %1687 = vmatprep.subr.mxu0 0.0
  %1688 = vmatpush2.xpose.msra.mxu0 0.0
  %1689 = vmatprep.subr.mxu0 0.0
  %1690 = vmatpush2.xpose.msra.mxu0 0.0
  %1691 = vmatprep.subr.mxu0 0.0
  %1692 = vmatpush2.xpose.msra.mxu0 0.0
  %1693 = vmatprep.subr.mxu0 0.0
  %1694 = vmatpush2.xpose.msra.mxu0 0.0
  %1695 = vmatprep.subr.mxu0 0.0
  %1696 = vmatpush2.xpose.msra.mxu0 0.0
  %1697 = vmatprep.subr.mxu0 0.0
  %1698 = vmatpush2.xpose.msra.mxu0 0.0
  %1699 = vmatprep.subr.mxu0 0.0
  %1700 = vmatpush2.xpose.msra.mxu0 0.0
  %1701 = vmatprep.subr.mxu0 0.0
  %1702 = vmatpush2.xpose.msra.mxu0 0.0
  %1703 = vmatprep.subr.mxu0 0.0
  %1704 = vmatpush2.xpose.msra.mxu0 0.0
  %1705 = vmatprep.subr.mxu0 0.0
  %1706 = vmatpush2.xpose.msra.mxu0 0.0
  %1707 = vmatprep.subr.mxu0 0.0
  %1708 = vmatpush2.xpose.msra.mxu0 0.0
  %1709 = vmatprep.subr.mxu0 0.0
  %1710 = vmatpush2.xpose.msra.mxu0 0.0
  %1711 = vmatprep.subr.mxu0 0.0
  %1712 = vmatpush2.xpose.msra.mxu0 0.0
  %1713 = vmatprep.subr.mxu0 0.0
  %1714 = vmatpush2.xpose.msra.mxu0 0.0
  %1715 = vmatprep.subr.mxu0 0.0
  %1716 = vmatpush2.xpose.msra.mxu0 0.0
  %1717 = vmatprep.mubr.f32.mxu0 0.0
  %1718 = vmatmul.mubr.f32.gmra.mxu0 %v1645
  %v1719 = vpop.f32.mrf.mxu0
  %v1720 = vadd.f32 %v27, %v1719
  %v1721 = vpop.f32.mrf.mxu0
  %1722 = vmatprep.mubr.f32.mxu0 0.0
  %1723 = vmatmul.mubr.f32.gmra.mxu0 %v1647
  %v1724 = vpop.f32.mrf.mxu0
  %v1725 = vadd.f32 %v28, %v1724
  %v1726 = vpop.f32.mrf.mxu0
  %1727 = vdwg.mxu0
  %v1728 = vsel %vm727, %v1720, -inf
  %1729 = vmax.xlane.f32.xlu0 %v1728
  %v1730 = vpop.xlane.xlu0 %1729
  %v1731 = vsel %vm727, %v1725, -inf
  %1732 = vmax.xlane.f32.xlu0 %v1731
  %v1733 = vpop.xlane.xlu0 %1732
  %v1734 = vsub.f32 %v1720, %v1730
  %v1735 = vsub.f32 %v1725, %v1733
  %v1736 = vmul.f32 %v1734, 1.442695
  %v1737 = vpow.pop %v1736
  %v1738 = vmul.f32 %v1735, 1.442695
  %v1739 = vpow.pop %v1738
  %v1740 = vsel %vm727, %v1737, 0.0
  %1741 = vadd.xlane.f32.xlu0 %v1740
  %v1742 = vpop.xlane.xlu0 %1741
  %v1743 = vsel %vm727, %v1739, 0.0
  %1744 = vadd.xlane.f32.xlu0 %v1743
  %v1745 = vpop.xlane.xlu0 %1744
  %v1746 = vrcp.pop %v1742
  %v1747 = vrcp.pop %v1745
  %v1748 = vmul.f32 %v1737, %v1746
  %v1749 = vmul.f32 %v1739, %v1747
  %1750 = vrot.lane.b32.xlu0 %v631, 32
  %v1751 = vpop.permute.xlu0 %1750
  %1752 = vrot.lane.b32.xlu0 %v635, 32
  %v1753 = vpop.permute.xlu0 %1752
  %v1757 = vsel %vm727, %v1748, 0
  %v1760 = vsel %vm727, %v1749, 0
  %1762 = vmatprep.subr.mxu0 0.0
  %1763 = vmatpush1.msra.mxu0 0.0
  %1764 = vmatprep.subr.mxu0 0.0
  %1765 = vmatpush1.msra.mxu0 0.0
  %1766 = vmatprep.subr.mxu0 0.0
  %1767 = vmatpush1.msra.mxu0 0.0
  %1768 = vmatprep.subr.mxu0 0.0
  %1769 = vmatpush1.msra.mxu0 0.0
  %1770 = vmatprep.subr.mxu0 0.0
  %1771 = vmatpush1.msra.mxu0 0.0
  %1772 = vmatprep.subr.mxu0 0.0
  %1773 = vmatpush1.msra.mxu0 0.0
  %1774 = vmatprep.subr.mxu0 0.0
  %1775 = vmatpush1.msra.mxu0 0.0
  %1776 = vmatprep.subr.mxu0 0.0
  %1777 = vmatpush1.msra.mxu0 0.0
  %1778 = vmatprep.subr.mxu0 0.0
  %1779 = vmatpush1.msra.mxu0 0.0
  %1780 = vmatprep.subr.mxu0 0.0
  %1781 = vmatpush1.msra.mxu0 0.0
  %1782 = vmatprep.subr.mxu0 0.0
  %1783 = vmatpush1.msra.mxu0 0.0
  %1784 = vmatprep.subr.mxu0 0.0
  %1785 = vmatpush1.msra.mxu0 0.0
  %1786 = vmatprep.subr.mxu0 0.0
  %1787 = vmatpush1.msra.mxu0 0.0
  %1788 = vmatprep.subr.mxu0 0.0
  %1789 = vmatpush1.msra.mxu0 0.0
  %1790 = vmatprep.subr.mxu0 0.0
  %1791 = vmatpush1.msra.mxu0 %v1753
  %1792 = vmatprep.subr.mxu0 0.0
  %1793 = vmatpush1.msra.mxu0 %v1751
  %1794 = vmatprep.subr.mxu0 0.0
  %1795 = vmatpush2.msra.mxu0 0.0
  %1796 = vmatprep.subr.mxu0 0.0
  %1797 = vmatpush2.msra.mxu0 0.0
  %1798 = vmatprep.subr.mxu0 0.0
  %1799 = vmatpush2.msra.mxu0 0.0
  %1800 = vmatprep.subr.mxu0 0.0
  %1801 = vmatpush2.msra.mxu0 0.0
  %1802 = vmatprep.subr.mxu0 0.0
  %1803 = vmatpush2.msra.mxu0 0.0
  %1804 = vmatprep.subr.mxu0 0.0
  %1805 = vmatpush2.msra.mxu0 0.0
  %1806 = vmatprep.subr.mxu0 0.0
  %1807 = vmatpush2.msra.mxu0 0.0
  %1808 = vmatprep.subr.mxu0 0.0
  %1809 = vmatpush2.msra.mxu0 0.0
  %1810 = vmatprep.subr.mxu0 0.0
  %1811 = vmatpush2.msra.mxu0 0.0
  %1812 = vmatprep.subr.mxu0 0.0
  %1813 = vmatpush2.msra.mxu0 0.0
  %1814 = vmatprep.subr.mxu0 0.0
  %1815 = vmatpush2.msra.mxu0 0.0
  %1816 = vmatprep.subr.mxu0 0.0
  %1817 = vmatpush2.msra.mxu0 0.0
  %1818 = vmatprep.subr.mxu0 0.0
  %1819 = vmatpush2.msra.mxu0 0.0
  %1820 = vmatprep.subr.mxu0 0.0
  %1821 = vmatpush2.msra.mxu0 0.0
  %1822 = vmatprep.subr.mxu0 0.0
  %1823 = vmatpush2.msra.mxu0 0.0
  %1824 = vmatprep.subr.mxu0 0.0
  %1825 = vmatpush2.msra.mxu0 0.0
  %1826 = vmatprep.mubr.f32.mxu0 0.0
  %1827 = vmatmul.mubr.f32.gmra.mxu0 %v1757
  %v1828 = vpop.f32.mrf.mxu0
  %v1829 = vadd.f32 0.0, %v1828
  %v1830 = vpop.f32.mrf.mxu0
  %1831 = vmatprep.mubr.f32.mxu0 0.0
  %1832 = vmatmul.mubr.f32.gmra.mxu0 %v1760
  %v1833 = vpop.f32.mrf.mxu0
  %v1834 = vadd.f32 0.0, %v1833
  %v1835 = vpop.f32.mrf.mxu0
  %1836 = vdwg.mxu0
  %v1837 = vadd.f32 %v1635, %v1829
  %v1838 = vadd.f32 %v1636, %v1834
  %1839 = vrot.lane.b32.xlu0 %v631, 112
  %v1840 = vpop.permute.xlu0 %1839
  %1841 = vrot.lane.b32.xlu0 %v635, 112
  %v1842 = vpop.permute.xlu0 %1841
  %1843 = vrot.lane.b32.xlu0 %v631, 80
  %v1844 = vpop.permute.xlu0 %1843
  %1845 = vrot.lane.b32.xlu0 %v635, 80
  %v1846 = vpop.permute.xlu0 %1845
  %v1847 = vsel %vm643, %v1840, 0
  %v1849 = vsel %vm643, %v1842, 0
  %v1851 = vsel %vm643, %v1844, 0
  %v1853 = vsel %vm643, %v1846, 0
  %1855 = vmatprep.subr.mxu0 0.0
  %1856 = vmatpush1.xpose.msra.mxu0 0.0
  %1857 = vmatprep.subr.mxu0 0.0
  %1858 = vmatpush1.xpose.msra.mxu0 0.0
  %1859 = vmatprep.subr.mxu0 0.0
  %1860 = vmatpush1.xpose.msra.mxu0 0.0
  %1861 = vmatprep.subr.mxu0 0.0
  %1862 = vmatpush1.xpose.msra.mxu0 0.0
  %1863 = vmatprep.subr.mxu0 0.0
  %1864 = vmatpush1.xpose.msra.mxu0 0.0
  %1865 = vmatprep.subr.mxu0 0.0
  %1866 = vmatpush1.xpose.msra.mxu0 0.0
  %1867 = vmatprep.subr.mxu0 0.0
  %1868 = vmatpush1.xpose.msra.mxu0 0.0
  %1869 = vmatprep.subr.mxu0 0.0
  %1870 = vmatpush1.xpose.msra.mxu0 0.0
  %1871 = vmatprep.subr.mxu0 0.0
  %1872 = vmatpush1.xpose.msra.mxu0 0.0
  %1873 = vmatprep.subr.mxu0 0.0
  %1874 = vmatpush1.xpose.msra.mxu0 0.0
  %1875 = vmatprep.subr.mxu0 0.0
  %1876 = vmatpush1.xpose.msra.mxu0 0.0
  %1877 = vmatprep.subr.mxu0 0.0
  %1878 = vmatpush1.xpose.msra.mxu0 0.0
  %1879 = vmatprep.subr.mxu0 0.0
  %1880 = vmatpush1.xpose.msra.mxu0 0.0
  %1881 = vmatprep.subr.mxu0 0.0
  %1882 = vmatpush1.xpose.msra.mxu0 0.0
  %1883 = vmatprep.subr.mxu0 0.0
  %1884 = vmatpush1.xpose.msra.mxu0 %v1853
  %1885 = vmatprep.subr.mxu0 0.0
  %1886 = vmatpush1.xpose.msra.mxu0 %v1851
  %1887 = vmatprep.subr.mxu0 0.0
  %1888 = vmatpush2.xpose.msra.mxu0 0.0
  %1889 = vmatprep.subr.mxu0 0.0
  %1890 = vmatpush2.xpose.msra.mxu0 0.0
  %1891 = vmatprep.subr.mxu0 0.0
  %1892 = vmatpush2.xpose.msra.mxu0 0.0
  %1893 = vmatprep.subr.mxu0 0.0
  %1894 = vmatpush2.xpose.msra.mxu0 0.0
  %1895 = vmatprep.subr.mxu0 0.0
  %1896 = vmatpush2.xpose.msra.mxu0 0.0
  %1897 = vmatprep.subr.mxu0 0.0
  %1898 = vmatpush2.xpose.msra.mxu0 0.0
  %1899 = vmatprep.subr.mxu0 0.0
  %1900 = vmatpush2.xpose.msra.mxu0 0.0
  %1901 = vmatprep.subr.mxu0 0.0
  %1902 = vmatpush2.xpose.msra.mxu0 0.0
  %1903 = vmatprep.subr.mxu0 0.0
  %1904 = vmatpush2.xpose.msra.mxu0 0.0
  %1905 = vmatprep.subr.mxu0 0.0
  %1906 = vmatpush2.xpose.msra.mxu0 0.0
  %1907 = vmatprep.subr.mxu0 0.0
  %1908 = vmatpush2.xpose.msra.mxu0 0.0
  %1909 = vmatprep.subr.mxu0 0.0
  %1910 = vmatpush2.xpose.msra.mxu0 0.0
  %1911 = vmatprep.subr.mxu0 0.0
  %1912 = vmatpush2.xpose.msra.mxu0 0.0
  %1913 = vmatprep.subr.mxu0 0.0
  %1914 = vmatpush2.xpose.msra.mxu0 0.0
  %1915 = vmatprep.subr.mxu0 0.0
  %1916 = vmatpush2.xpose.msra.mxu0 0.0
  %1917 = vmatprep.subr.mxu0 0.0
  %1918 = vmatpush2.xpose.msra.mxu0 0.0
  %1919 = vmatprep.mubr.f32.mxu0 0.0
  %1920 = vmatmul.mubr.f32.gmra.mxu0 %v1847
  %v1921 = vpop.f32.mrf.mxu0
  %v1922 = vadd.f32 %v27, %v1921
  %v1923 = vpop.f32.mrf.mxu0
  %1924 = vmatprep.mubr.f32.mxu0 0.0
  %1925 = vmatmul.mubr.f32.gmra.mxu0 %v1849
  %v1926 = vpop.f32.mrf.mxu0
  %v1927 = vadd.f32 %v28, %v1926
  %v1928 = vpop.f32.mrf.mxu0
  %1929 = vdwg.mxu0
  %v1930 = vsel %vm727, %v1922, -inf
  %1931 = vmax.xlane.f32.xlu0 %v1930
  %v1932 = vpop.xlane.xlu0 %1931
  %v1933 = vsel %vm727, %v1927, -inf
  %1934 = vmax.xlane.f32.xlu0 %v1933
  %v1935 = vpop.xlane.xlu0 %1934
  %v1936 = vsub.f32 %v1922, %v1932
  %v1937 = vsub.f32 %v1927, %v1935
  %v1938 = vmul.f32 %v1936, 1.442695
  %v1939 = vpow.pop %v1938
  %v1940 = vmul.f32 %v1937, 1.442695
  %v1941 = vpow.pop %v1940
  %v1942 = vsel %vm727, %v1939, 0.0
  %1943 = vadd.xlane.f32.xlu0 %v1942
  %v1944 = vpop.xlane.xlu0 %1943
  %v1945 = vsel %vm727, %v1941, 0.0
  %1946 = vadd.xlane.f32.xlu0 %v1945
  %v1947 = vpop.xlane.xlu0 %1946
  %v1948 = vrcp.pop %v1944
  %v1949 = vrcp.pop %v1947
  %v1950 = vmul.f32 %v1939, %v1948
  %v1951 = vmul.f32 %v1941, %v1949
  %v1953 = vsel %vm727, %v1950, 0
  %v1956 = vsel %vm727, %v1951, 0
  %1958 = vmatprep.subr.mxu0 0.0
  %1959 = vmatpush1.msra.mxu0 0.0
  %1960 = vmatprep.subr.mxu0 0.0
  %1961 = vmatpush1.msra.mxu0 0.0
  %1962 = vmatprep.subr.mxu0 0.0
  %1963 = vmatpush1.msra.mxu0 0.0
  %1964 = vmatprep.subr.mxu0 0.0
  %1965 = vmatpush1.msra.mxu0 0.0
  %1966 = vmatprep.subr.mxu0 0.0
  %1967 = vmatpush1.msra.mxu0 0.0
  %1968 = vmatprep.subr.mxu0 0.0
  %1969 = vmatpush1.msra.mxu0 0.0
  %1970 = vmatprep.subr.mxu0 0.0
  %1971 = vmatpush1.msra.mxu0 0.0
  %1972 = vmatprep.subr.mxu0 0.0
  %1973 = vmatpush1.msra.mxu0 0.0
  %1974 = vmatprep.subr.mxu0 0.0
  %1975 = vmatpush1.msra.mxu0 0.0
  %1976 = vmatprep.subr.mxu0 0.0
  %1977 = vmatpush1.msra.mxu0 0.0
  %1978 = vmatprep.subr.mxu0 0.0
  %1979 = vmatpush1.msra.mxu0 0.0
  %1980 = vmatprep.subr.mxu0 0.0
  %1981 = vmatpush1.msra.mxu0 0.0
  %1982 = vmatprep.subr.mxu0 0.0
  %1983 = vmatpush1.msra.mxu0 0.0
  %1984 = vmatprep.subr.mxu0 0.0
  %1985 = vmatpush1.msra.mxu0 0.0
  %1986 = vmatprep.subr.mxu0 0.0
  %1987 = vmatpush1.msra.mxu0 %v636
  %1988 = vmatprep.subr.mxu0 0.0
  %1989 = vmatpush1.msra.mxu0 %v632
  %1990 = vmatprep.subr.mxu0 0.0
  %1991 = vmatpush2.msra.mxu0 0.0
  %1992 = vmatprep.subr.mxu0 0.0
  %1993 = vmatpush2.msra.mxu0 0.0
  %1994 = vmatprep.subr.mxu0 0.0
  %1995 = vmatpush2.msra.mxu0 0.0
  %1996 = vmatprep.subr.mxu0 0.0
  %1997 = vmatpush2.msra.mxu0 0.0
  %1998 = vmatprep.subr.mxu0 0.0
  %1999 = vmatpush2.msra.mxu0 0.0
  %2000 = vmatprep.subr.mxu0 0.0
  %2001 = vmatpush2.msra.mxu0 0.0
  %2002 = vmatprep.subr.mxu0 0.0
  %2003 = vmatpush2.msra.mxu0 0.0
  %2004 = vmatprep.subr.mxu0 0.0
  %2005 = vmatpush2.msra.mxu0 0.0
  %2006 = vmatprep.subr.mxu0 0.0
  %2007 = vmatpush2.msra.mxu0 0.0
  %2008 = vmatprep.subr.mxu0 0.0
  %2009 = vmatpush2.msra.mxu0 0.0
  %2010 = vmatprep.subr.mxu0 0.0
  %2011 = vmatpush2.msra.mxu0 0.0
  %2012 = vmatprep.subr.mxu0 0.0
  %2013 = vmatpush2.msra.mxu0 0.0
  %2014 = vmatprep.subr.mxu0 0.0
  %2015 = vmatpush2.msra.mxu0 0.0
  %2016 = vmatprep.subr.mxu0 0.0
  %2017 = vmatpush2.msra.mxu0 0.0
  %2018 = vmatprep.subr.mxu0 0.0
  %2019 = vmatpush2.msra.mxu0 0.0
  %2020 = vmatprep.subr.mxu0 0.0
  %2021 = vmatpush2.msra.mxu0 0.0
  %2022 = vmatprep.mubr.f32.mxu0 0.0
  %2023 = vmatmul.mubr.f32.gmra.mxu0 %v1953
  %v2024 = vpop.f32.mrf.mxu0
  %v2025 = vadd.f32 0.0, %v2024
  %v2026 = vpop.f32.mrf.mxu0
  %2027 = vmatprep.mubr.f32.mxu0 0.0
  %2028 = vmatmul.mubr.f32.gmra.mxu0 %v1956
  %v2029 = vpop.f32.mrf.mxu0
  %v2030 = vadd.f32 0.0, %v2029
  %v2031 = vpop.f32.mrf.mxu0
  %2032 = vdwg.mxu0
  %v2033 = vadd.f32 %v1837, %v2025
  %v2034 = vadd.f32 %v1838, %v2030
  %2035 = vrot.lane.b32.xlu0 %v631, 104
  %v2036 = vpop.permute.xlu0 %2035
  %2037 = vrot.lane.b32.xlu0 %v635, 104
  %v2038 = vpop.permute.xlu0 %2037
  %2039 = vrot.lane.b32.xlu0 %v631, 72
  %v2040 = vpop.permute.xlu0 %2039
  %2041 = vrot.lane.b32.xlu0 %v635, 72
  %v2042 = vpop.permute.xlu0 %2041
  %v2043 = vsel %vm643, %v2036, 0
  %v2045 = vsel %vm643, %v2038, 0
  %v2047 = vsel %vm643, %v2040, 0
  %v2049 = vsel %vm643, %v2042, 0
  %2051 = vmatprep.subr.mxu0 0.0
  %2052 = vmatpush1.xpose.msra.mxu0 0.0
  %2053 = vmatprep.subr.mxu0 0.0
  %2054 = vmatpush1.xpose.msra.mxu0 0.0
  %2055 = vmatprep.subr.mxu0 0.0
  %2056 = vmatpush1.xpose.msra.mxu0 0.0
  %2057 = vmatprep.subr.mxu0 0.0
  %2058 = vmatpush1.xpose.msra.mxu0 0.0
  %2059 = vmatprep.subr.mxu0 0.0
  %2060 = vmatpush1.xpose.msra.mxu0 0.0
  %2061 = vmatprep.subr.mxu0 0.0
  %2062 = vmatpush1.xpose.msra.mxu0 0.0
  %2063 = vmatprep.subr.mxu0 0.0
  %2064 = vmatpush1.xpose.msra.mxu0 0.0
  %2065 = vmatprep.subr.mxu0 0.0
  %2066 = vmatpush1.xpose.msra.mxu0 0.0
  %2067 = vmatprep.subr.mxu0 0.0
  %2068 = vmatpush1.xpose.msra.mxu0 0.0
  %2069 = vmatprep.subr.mxu0 0.0
  %2070 = vmatpush1.xpose.msra.mxu0 0.0
  %2071 = vmatprep.subr.mxu0 0.0
  %2072 = vmatpush1.xpose.msra.mxu0 0.0
  %2073 = vmatprep.subr.mxu0 0.0
  %2074 = vmatpush1.xpose.msra.mxu0 0.0
  %2075 = vmatprep.subr.mxu0 0.0
  %2076 = vmatpush1.xpose.msra.mxu0 0.0
  %2077 = vmatprep.subr.mxu0 0.0
  %2078 = vmatpush1.xpose.msra.mxu0 0.0
  %2079 = vmatprep.subr.mxu0 0.0
  %2080 = vmatpush1.xpose.msra.mxu0 %v2049
  %2081 = vmatprep.subr.mxu0 0.0
  %2082 = vmatpush1.xpose.msra.mxu0 %v2047
  %2083 = vmatprep.subr.mxu0 0.0
  %2084 = vmatpush2.xpose.msra.mxu0 0.0
  %2085 = vmatprep.subr.mxu0 0.0
  %2086 = vmatpush2.xpose.msra.mxu0 0.0
  %2087 = vmatprep.subr.mxu0 0.0
  %2088 = vmatpush2.xpose.msra.mxu0 0.0
  %2089 = vmatprep.subr.mxu0 0.0
  %2090 = vmatpush2.xpose.msra.mxu0 0.0
  %2091 = vmatprep.subr.mxu0 0.0
  %2092 = vmatpush2.xpose.msra.mxu0 0.0
  %2093 = vmatprep.subr.mxu0 0.0
  %2094 = vmatpush2.xpose.msra.mxu0 0.0
  %2095 = vmatprep.subr.mxu0 0.0
  %2096 = vmatpush2.xpose.msra.mxu0 0.0
  %2097 = vmatprep.subr.mxu0 0.0
  %2098 = vmatpush2.xpose.msra.mxu0 0.0
  %2099 = vmatprep.subr.mxu0 0.0
  %2100 = vmatpush2.xpose.msra.mxu0 0.0
  %2101 = vmatprep.subr.mxu0 0.0
  %2102 = vmatpush2.xpose.msra.mxu0 0.0
  %2103 = vmatprep.subr.mxu0 0.0
  %2104 = vmatpush2.xpose.msra.mxu0 0.0
  %2105 = vmatprep.subr.mxu0 0.0
  %2106 = vmatpush2.xpose.msra.mxu0 0.0
  %2107 = vmatprep.subr.mxu0 0.0
  %2108 = vmatpush2.xpose.msra.mxu0 0.0
  %2109 = vmatprep.subr.mxu0 0.0
  %2110 = vmatpush2.xpose.msra.mxu0 0.0
  %2111 = vmatprep.subr.mxu0 0.0
  %2112 = vmatpush2.xpose.msra.mxu0 0.0
  %2113 = vmatprep.subr.mxu0 0.0
  %2114 = vmatpush2.xpose.msra.mxu0 0.0
  %2115 = vmatprep.mubr.f32.mxu0 0.0
  %2116 = vmatmul.mubr.f32.gmra.mxu0 %v2043
  %v2117 = vpop.f32.mrf.mxu0
  %v2118 = vadd.f32 %v27, %v2117
  %v2119 = vpop.f32.mrf.mxu0
  %2120 = vmatprep.mubr.f32.mxu0 0.0
  %2121 = vmatmul.mubr.f32.gmra.mxu0 %v2045
  %v2122 = vpop.f32.mrf.mxu0
  %v2123 = vadd.f32 %v28, %v2122
  %v2124 = vpop.f32.mrf.mxu0
  %2125 = vdwg.mxu0
  %v2126 = vsel %vm727, %v2118, -inf
  %2127 = vmax.xlane.f32.xlu0 %v2126
  %v2128 = vpop.xlane.xlu0 %2127
  %v2129 = vsel %vm727, %v2123, -inf
  %2130 = vmax.xlane.f32.xlu0 %v2129
  %v2131 = vpop.xlane.xlu0 %2130
  %v2132 = vsub.f32 %v2118, %v2128
  %v2133 = vsub.f32 %v2123, %v2131
  %v2134 = vmul.f32 %v2132, 1.442695
  %v2135 = vpow.pop %v2134
  %v2136 = vmul.f32 %v2133, 1.442695
  %v2137 = vpow.pop %v2136
  %v2138 = vsel %vm727, %v2135, 0.0
  %2139 = vadd.xlane.f32.xlu0 %v2138
  %v2140 = vpop.xlane.xlu0 %2139
  %v2141 = vsel %vm727, %v2137, 0.0
  %2142 = vadd.xlane.f32.xlu0 %v2141
  %v2143 = vpop.xlane.xlu0 %2142
  %v2144 = vrcp.pop %v2140
  %v2145 = vrcp.pop %v2143
  %v2146 = vmul.f32 %v2135, %v2144
  %v2147 = vmul.f32 %v2137, %v2145
  %2150 = vrot.lane.b32.xlu0 %v632, 96
  %v2151 = vpop.permute.xlu0 %2150
  %2152 = vrot.lane.b32.xlu0 %v636, 96
  %v2153 = vpop.permute.xlu0 %2152
  %v2157 = vsel %vm727, %v2146, 0
  %v2160 = vsel %vm727, %v2147, 0
  %2162 = vmatprep.subr.mxu0 0.0
  %2163 = vmatpush1.msra.mxu0 0.0
  %2164 = vmatprep.subr.mxu0 0.0
  %2165 = vmatpush1.msra.mxu0 0.0
  %2166 = vmatprep.subr.mxu0 0.0
  %2167 = vmatpush1.msra.mxu0 0.0
  %2168 = vmatprep.subr.mxu0 0.0
  %2169 = vmatpush1.msra.mxu0 0.0
  %2170 = vmatprep.subr.mxu0 0.0
  %2171 = vmatpush1.msra.mxu0 0.0
  %2172 = vmatprep.subr.mxu0 0.0
  %2173 = vmatpush1.msra.mxu0 0.0
  %2174 = vmatprep.subr.mxu0 0.0
  %2175 = vmatpush1.msra.mxu0 0.0
  %2176 = vmatprep.subr.mxu0 0.0
  %2177 = vmatpush1.msra.mxu0 0.0
  %2178 = vmatprep.subr.mxu0 0.0
  %2179 = vmatpush1.msra.mxu0 0.0
  %2180 = vmatprep.subr.mxu0 0.0
  %2181 = vmatpush1.msra.mxu0 0.0
  %2182 = vmatprep.subr.mxu0 0.0
  %2183 = vmatpush1.msra.mxu0 0.0
  %2184 = vmatprep.subr.mxu0 0.0
  %2185 = vmatpush1.msra.mxu0 0.0
  %2186 = vmatprep.subr.mxu0 0.0
  %2187 = vmatpush1.msra.mxu0 0.0
  %2188 = vmatprep.subr.mxu0 0.0
  %2189 = vmatpush1.msra.mxu0 0.0
  %2190 = vmatprep.subr.mxu0 0.0
  %2191 = vmatpush1.msra.mxu0 %v2153
  %2192 = vmatprep.subr.mxu0 0.0
  %2193 = vmatpush1.msra.mxu0 %v2151
  %2194 = vmatprep.subr.mxu0 0.0
  %2195 = vmatpush2.msra.mxu0 0.0
  %2196 = vmatprep.subr.mxu0 0.0
  %2197 = vmatpush2.msra.mxu0 0.0
  %2198 = vmatprep.subr.mxu0 0.0
  %2199 = vmatpush2.msra.mxu0 0.0
  %2200 = vmatprep.subr.mxu0 0.0
  %2201 = vmatpush2.msra.mxu0 0.0
  %2202 = vmatprep.subr.mxu0 0.0
  %2203 = vmatpush2.msra.mxu0 0.0
  %2204 = vmatprep.subr.mxu0 0.0
  %2205 = vmatpush2.msra.mxu0 0.0
  %2206 = vmatprep.subr.mxu0 0.0
  %2207 = vmatpush2.msra.mxu0 0.0
  %2208 = vmatprep.subr.mxu0 0.0
  %2209 = vmatpush2.msra.mxu0 0.0
  %2210 = vmatprep.subr.mxu0 0.0
  %2211 = vmatpush2.msra.mxu0 0.0
  %2212 = vmatprep.subr.mxu0 0.0
  %2213 = vmatpush2.msra.mxu0 0.0
  %2214 = vmatprep.subr.mxu0 0.0
  %2215 = vmatpush2.msra.mxu0 0.0
  %2216 = vmatprep.subr.mxu0 0.0
  %2217 = vmatpush2.msra.mxu0 0.0
  %2218 = vmatprep.subr.mxu0 0.0
  %2219 = vmatpush2.msra.mxu0 0.0
  %2220 = vmatprep.subr.mxu0 0.0
  %2221 = vmatpush2.msra.mxu0 0.0
  %2222 = vmatprep.subr.mxu0 0.0
  %2223 = vmatpush2.msra.mxu0 0.0
  %2224 = vmatprep.subr.mxu0 0.0
  %2225 = vmatpush2.msra.mxu0 0.0
  %2226 = vmatprep.mubr.f32.mxu0 0.0
  %2227 = vmatmul.mubr.f32.gmra.mxu0 %v2157
  %v2228 = vpop.f32.mrf.mxu0
  %v2229 = vadd.f32 0.0, %v2228
  %v2230 = vpop.f32.mrf.mxu0
  %2231 = vmatprep.mubr.f32.mxu0 0.0
  %2232 = vmatmul.mubr.f32.gmra.mxu0 %v2160
  %v2233 = vpop.f32.mrf.mxu0
  %v2234 = vadd.f32 0.0, %v2233
  %v2235 = vpop.f32.mrf.mxu0
  %2236 = vdwg.mxu0
  %v2237 = vadd.f32 %v2033, %v2229
  %v2238 = vadd.f32 %v2034, %v2234
  %v2239 = vrot.slane %v98, 4
  %v2240 = vlaneseq
  %v2241 = vshrl.u32 %v2240, 7
  %v2242 = vsub.s32 0, %v2241
  %v2243 = vrot.slane %v2239, %v2242
  %v2245 = vadd.f32 %v2237, %v2243
  %v2246 = vadd.f32 %v2238, %v2243
  %v2247 = vmax.f32 %v2245, 0.0
  %v2248 = vmax.f32 %v2246, 0.0
  %v2249 = vsel %vm107, %v23, 0.0
  %2250 = vadd.xlane.f32.xlu0 %v2249
  %v2251 = vpop.xlane.xlu0 %2250
  %v2252 = vsel %vm107, %v24, 0.0
  %2253 = vadd.xlane.f32.xlu0 %v2252
  %v2254 = vpop.xlane.xlu0 %2253
  %vm2255 = vcmp.ne.f32.partialorder %v2251, 0.0
  %vm2256 = vcmp.ne.f32.partialorder %v2254, 0.0
  %v2257 = vsel %vm2255, 1, 0
  %v2258 = vsel %vm2256, 1, 0
  %v2259 = vcvt.s32.f32 %v2257
  %v2260 = vcvt.s32.f32 %v2258
  %v2261 = vmul.f32 %v2259, %v343
  %v2262 = vmul.f32 %v2259, %v345
  %v2263 = vmul.f32 %v2259, %v420
  %v2264 = vmul.f32 %v2259, %v422
  %v2265 = vmul.f32 %v2260, %v349
  %v2266 = vmul.f32 %v2260, %v351
  %v2267 = vmul.f32 %v2260, %v426
  %v2268 = vmul.f32 %v2260, %v428
  %v2269 = vsel %vm107, %v23, 0
  %v2271 = vsel %vm107, %v24, 0
  %2273 = vmatprep.subr.mxu0 0.0
  %2274 = vmatpush1.msra.mxu0 0.0
  %2275 = vmatprep.subr.mxu0 0.0
  %2276 = vmatpush1.msra.mxu0 0.0
  %2277 = vmatprep.subr.mxu0 0.0
  %2278 = vmatpush1.msra.mxu0 0.0
  %2279 = vmatprep.subr.mxu0 0.0
  %2280 = vmatpush1.msra.mxu0 0.0
  %2281 = vmatprep.subr.mxu0 0.0
  %2282 = vmatpush1.msra.mxu0 0.0
  %2283 = vmatprep.subr.mxu0 0.0
  %2284 = vmatpush1.msra.mxu0 0.0
  %2285 = vmatprep.subr.mxu0 0.0
  %2286 = vmatpush1.msra.mxu0 0.0
  %2287 = vmatprep.subr.mxu0 0.0
  %2288 = vmatpush1.msra.mxu0 0.0
  %2289 = vmatprep.subr.mxu0 0.0
  %2290 = vmatpush1.msra.mxu0 0.0
  %2291 = vmatprep.subr.mxu0 0.0
  %2292 = vmatpush1.msra.mxu0 0.0
  %2293 = vmatprep.subr.mxu0 0.0
  %2294 = vmatpush1.msra.mxu0 0.0
  %2295 = vmatprep.subr.mxu0 0.0
  %2296 = vmatpush1.msra.mxu0 0.0
  %2297 = vmatprep.subr.mxu0 %v79
  %2298 = vmatpush1.msra.mxu0 %v78
  %2299 = vmatprep.subr.mxu0 %v75
  %2300 = vmatpush1.msra.mxu0 %v74
  %2301 = vmatprep.subr.mxu0 %v71
  %2302 = vmatpush1.msra.mxu0 %v70
  %2303 = vmatprep.subr.mxu0 %v67
  %2304 = vmatpush1.msra.mxu0 %v66
  %2305 = vmatprep.subr.mxu0 0.0
  %2306 = vmatpush2.msra.mxu0 0.0
  %2307 = vmatprep.subr.mxu0 0.0
  %2308 = vmatpush2.msra.mxu0 0.0
  %2309 = vmatprep.subr.mxu0 0.0
  %2310 = vmatpush2.msra.mxu0 0.0
  %2311 = vmatprep.subr.mxu0 0.0
  %2312 = vmatpush2.msra.mxu0 0.0
  %2313 = vmatprep.subr.mxu0 0.0
  %2314 = vmatpush2.msra.mxu0 0.0
  %2315 = vmatprep.subr.mxu0 0.0
  %2316 = vmatpush2.msra.mxu0 0.0
  %2317 = vmatprep.subr.mxu0 0.0
  %2318 = vmatpush2.msra.mxu0 0.0
  %2319 = vmatprep.subr.mxu0 0.0
  %2320 = vmatpush2.msra.mxu0 0.0
  %2321 = vmatprep.subr.mxu0 0.0
  %2322 = vmatpush2.msra.mxu0 0.0
  %2323 = vmatprep.subr.mxu0 0.0
  %2324 = vmatpush2.msra.mxu0 0.0
  %2325 = vmatprep.subr.mxu0 0.0
  %2326 = vmatpush2.msra.mxu0 0.0
  %2327 = vmatprep.subr.mxu0 0.0
  %2328 = vmatpush2.msra.mxu0 0.0
  %2329 = vmatprep.subr.mxu0 0.0
  %2330 = vmatpush2.msra.mxu0 0.0
  %2331 = vmatprep.subr.mxu0 0.0
  %2332 = vmatpush2.msra.mxu0 0.0
  %2333 = vmatprep.subr.mxu0 0.0
  %2334 = vmatpush2.msra.mxu0 0.0
  %2335 = vmatprep.subr.mxu0 0.0
  %2336 = vmatpush2.msra.mxu0 0.0
  %2337 = vmatprep.mubr.f32.mxu0 0.0
  %2338 = vmatmul.mubr.f32.gmra.mxu0 %v2269
  %v2339 = vpop.f32.mrf.mxu0
  %v2340 = vadd.f32 %v2261, %v2339
  %v2341 = vpop.f32.mrf.mxu0
  %v2342 = vadd.f32 %v2262, %v2341
  %2343 = vmatprep.mubr.f32.mxu0 0.0
  %2344 = vmatmul.mubr.f32.gmra.mxu0 %v2271
  %v2345 = vpop.f32.mrf.mxu0
  %v2346 = vadd.f32 %v2265, %v2345
  %v2347 = vpop.f32.mrf.mxu0
  %v2348 = vadd.f32 %v2266, %v2347
  %2349 = vdwg.mxu0
  %2350 = vmatprep.subr.mxu0 0.0
  %2351 = vmatpush1.msra.mxu0 0.0
  %2352 = vmatprep.subr.mxu0 0.0
  %2353 = vmatpush1.msra.mxu0 0.0
  %2354 = vmatprep.subr.mxu0 0.0
  %2355 = vmatpush1.msra.mxu0 0.0
  %2356 = vmatprep.subr.mxu0 0.0
  %2357 = vmatpush1.msra.mxu0 0.0
  %2358 = vmatprep.subr.mxu0 0.0
  %2359 = vmatpush1.msra.mxu0 0.0
  %2360 = vmatprep.subr.mxu0 0.0
  %2361 = vmatpush1.msra.mxu0 0.0
  %2362 = vmatprep.subr.mxu0 0.0
  %2363 = vmatpush1.msra.mxu0 0.0
  %2364 = vmatprep.subr.mxu0 0.0
  %2365 = vmatpush1.msra.mxu0 0.0
  %2366 = vmatprep.subr.mxu0 0.0
  %2367 = vmatpush1.msra.mxu0 0.0
  %2368 = vmatprep.subr.mxu0 0.0
  %2369 = vmatpush1.msra.mxu0 0.0
  %2370 = vmatprep.subr.mxu0 0.0
  %2371 = vmatpush1.msra.mxu0 0.0
  %2372 = vmatprep.subr.mxu0 0.0
  %2373 = vmatpush1.msra.mxu0 0.0
  %2374 = vmatprep.subr.mxu0 %v81
  %2375 = vmatpush1.msra.mxu0 %v80
  %2376 = vmatprep.subr.mxu0 %v77
  %2377 = vmatpush1.msra.mxu0 %v76
  %2378 = vmatprep.subr.mxu0 %v73
  %2379 = vmatpush1.msra.mxu0 %v72
  %2380 = vmatprep.subr.mxu0 %v69
  %2381 = vmatpush1.msra.mxu0 %v68
  %2382 = vmatprep.subr.mxu0 0.0
  %2383 = vmatpush2.msra.mxu0 0.0
  %2384 = vmatprep.subr.mxu0 0.0
  %2385 = vmatpush2.msra.mxu0 0.0
  %2386 = vmatprep.subr.mxu0 0.0
  %2387 = vmatpush2.msra.mxu0 0.0
  %2388 = vmatprep.subr.mxu0 0.0
  %2389 = vmatpush2.msra.mxu0 0.0
  %2390 = vmatprep.subr.mxu0 0.0
  %2391 = vmatpush2.msra.mxu0 0.0
  %2392 = vmatprep.subr.mxu0 0.0
  %2393 = vmatpush2.msra.mxu0 0.0
  %2394 = vmatprep.subr.mxu0 0.0
  %2395 = vmatpush2.msra.mxu0 0.0
  %2396 = vmatprep.subr.mxu0 0.0
  %2397 = vmatpush2.msra.mxu0 0.0
  %2398 = vmatprep.subr.mxu0 0.0
  %2399 = vmatpush2.msra.mxu0 0.0
  %2400 = vmatprep.subr.mxu0 0.0
  %2401 = vmatpush2.msra.mxu0 0.0
  %2402 = vmatprep.subr.mxu0 0.0
  %2403 = vmatpush2.msra.mxu0 0.0
  %2404 = vmatprep.subr.mxu0 0.0
  %2405 = vmatpush2.msra.mxu0 0.0
  %2406 = vmatprep.subr.mxu0 0.0
  %2407 = vmatpush2.msra.mxu0 0.0
  %2408 = vmatprep.subr.mxu0 0.0
  %2409 = vmatpush2.msra.mxu0 0.0
  %2410 = vmatprep.subr.mxu0 0.0
  %2411 = vmatpush2.msra.mxu0 0.0
  %2412 = vmatprep.subr.mxu0 0.0
  %2413 = vmatpush2.msra.mxu0 0.0
  %2414 = vmatprep.mubr.f32.mxu0 0.0
  %2415 = vmatmul.mubr.f32.gmra.mxu0 %v2269
  %v2416 = vpop.f32.mrf.mxu0
  %v2417 = vadd.f32 %v2263, %v2416
  %v2418 = vpop.f32.mrf.mxu0
  %v2419 = vadd.f32 %v2264, %v2418
  %2420 = vmatprep.mubr.f32.mxu0 0.0
  %2421 = vmatmul.mubr.f32.gmra.mxu0 %v2271
  %v2422 = vpop.f32.mrf.mxu0
  %v2423 = vadd.f32 %v2267, %v2422
  %v2424 = vpop.f32.mrf.mxu0
  %v2425 = vadd.f32 %v2268, %v2424
  %2426 = vdwg.mxu0
  %v2428 = vlaneseq
  %v2429 = vshrl.u32 %v2428, 7
  %v2430 = vsub.s32 0, %v2429
  %v2431 = vrot.slane %v100, %v2430
  %v2432 = vlaneseq
  %v2433 = vshrl.u32 %v2432, 7
  %v2434 = vsub.s32 1, %v2433
  %v2435 = vrot.slane %v100, %v2434
  %v2436 = vlaneseq
  %v2437 = vshrl.u32 %v2436, 7
  %v2438 = vsub.s32 2, %v2437
  %v2439 = vrot.slane %v100, %v2438
  %v2440 = vlaneseq
  %v2441 = vshrl.u32 %v2440, 7
  %v2442 = vsub.s32 3, %v2441
  %v2443 = vrot.slane %v100, %v2442
  %v2448 = vadd.f32 %v2340, %v2431
  %v2449 = vadd.f32 %v2342, %v2435
  %v2450 = vadd.f32 %v2417, %v2439
  %v2451 = vadd.f32 %v2419, %v2443
  %v2452 = vadd.f32 %v2346, %v2431
  %v2453 = vadd.f32 %v2348, %v2435
  %v2454 = vadd.f32 %v2423, %v2439
  %v2455 = vadd.f32 %v2425, %v2443
  %2458 = vrot.lane.b32.xlu0 %v2448, 96
  %v2459 = vpop.permute.xlu0 %2458
  %2460 = vrot.lane.b32.xlu0 %v2452, 96
  %v2461 = vpop.permute.xlu0 %2460
  %v2462 = vsel %vm643, %v2448, 0
  %v2464 = vsel %vm643, %v2452, 0
  %v2466 = vsel %vm643, %v2459, 0
  %v2468 = vsel %vm643, %v2461, 0
  %2470 = vmatprep.subr.mxu0 0.0
  %2471 = vmatpush1.xpose.msra.mxu0 0.0
  %2472 = vmatprep.subr.mxu0 0.0
  %2473 = vmatpush1.xpose.msra.mxu0 0.0
  %2474 = vmatprep.subr.mxu0 0.0
  %2475 = vmatpush1.xpose.msra.mxu0 0.0
  %2476 = vmatprep.subr.mxu0 0.0
  %2477 = vmatpush1.xpose.msra.mxu0 0.0
  %2478 = vmatprep.subr.mxu0 0.0
  %2479 = vmatpush1.xpose.msra.mxu0 0.0
  %2480 = vmatprep.subr.mxu0 0.0
  %2481 = vmatpush1.xpose.msra.mxu0 0.0
  %2482 = vmatprep.subr.mxu0 0.0
  %2483 = vmatpush1.xpose.msra.mxu0 0.0
  %2484 = vmatprep.subr.mxu0 0.0
  %2485 = vmatpush1.xpose.msra.mxu0 0.0
  %2486 = vmatprep.subr.mxu0 0.0
  %2487 = vmatpush1.xpose.msra.mxu0 0.0
  %2488 = vmatprep.subr.mxu0 0.0
  %2489 = vmatpush1.xpose.msra.mxu0 0.0
  %2490 = vmatprep.subr.mxu0 0.0
  %2491 = vmatpush1.xpose.msra.mxu0 0.0
  %2492 = vmatprep.subr.mxu0 0.0
  %2493 = vmatpush1.xpose.msra.mxu0 0.0
  %2494 = vmatprep.subr.mxu0 0.0
  %2495 = vmatpush1.xpose.msra.mxu0 0.0
  %2496 = vmatprep.subr.mxu0 0.0
  %2497 = vmatpush1.xpose.msra.mxu0 0.0
  %2498 = vmatprep.subr.mxu0 0.0
  %2499 = vmatpush1.xpose.msra.mxu0 %v2468
  %2500 = vmatprep.subr.mxu0 0.0
  %2501 = vmatpush1.xpose.msra.mxu0 %v2466
  %2502 = vmatprep.subr.mxu0 0.0
  %2503 = vmatpush2.xpose.msra.mxu0 0.0
  %2504 = vmatprep.subr.mxu0 0.0
  %2505 = vmatpush2.xpose.msra.mxu0 0.0
  %2506 = vmatprep.subr.mxu0 0.0
  %2507 = vmatpush2.xpose.msra.mxu0 0.0
  %2508 = vmatprep.subr.mxu0 0.0
  %2509 = vmatpush2.xpose.msra.mxu0 0.0
  %2510 = vmatprep.subr.mxu0 0.0
  %2511 = vmatpush2.xpose.msra.mxu0 0.0
  %2512 = vmatprep.subr.mxu0 0.0
  %2513 = vmatpush2.xpose.msra.mxu0 0.0
  %2514 = vmatprep.subr.mxu0 0.0
  %2515 = vmatpush2.xpose.msra.mxu0 0.0
  %2516 = vmatprep.subr.mxu0 0.0
  %2517 = vmatpush2.xpose.msra.mxu0 0.0
  %2518 = vmatprep.subr.mxu0 0.0
  %2519 = vmatpush2.xpose.msra.mxu0 0.0
  %2520 = vmatprep.subr.mxu0 0.0
  %2521 = vmatpush2.xpose.msra.mxu0 0.0
  %2522 = vmatprep.subr.mxu0 0.0
  %2523 = vmatpush2.xpose.msra.mxu0 0.0
  %2524 = vmatprep.subr.mxu0 0.0
  %2525 = vmatpush2.xpose.msra.mxu0 0.0
  %2526 = vmatprep.subr.mxu0 0.0
  %2527 = vmatpush2.xpose.msra.mxu0 0.0
  %2528 = vmatprep.subr.mxu0 0.0
  %2529 = vmatpush2.xpose.msra.mxu0 0.0
  %2530 = vmatprep.subr.mxu0 0.0
  %2531 = vmatpush2.xpose.msra.mxu0 0.0
  %2532 = vmatprep.subr.mxu0 0.0
  %2533 = vmatpush2.xpose.msra.mxu0 0.0
  %2534 = vmatprep.mubr.f32.mxu0 0.0
  %2535 = vmatmul.mubr.f32.gmra.mxu0 %v2462
  %v2536 = vpop.f32.mrf.mxu0
  %v2537 = vadd.f32 %v29, %v2536
  %v2538 = vpop.f32.mrf.mxu0
  %2539 = vmatprep.mubr.f32.mxu0 0.0
  %2540 = vmatmul.mubr.f32.gmra.mxu0 %v2464
  %v2541 = vpop.f32.mrf.mxu0
  %v2542 = vadd.f32 %v30, %v2541
  %v2543 = vpop.f32.mrf.mxu0
  %2544 = vdwg.mxu0
  %v2545 = vsel %vm727, %v2537, -inf
  %2546 = vmax.xlane.f32.xlu0 %v2545
  %v2547 = vpop.xlane.xlu0 %2546
  %v2548 = vsel %vm727, %v2542, -inf
  %2549 = vmax.xlane.f32.xlu0 %v2548
  %v2550 = vpop.xlane.xlu0 %2549
  %v2551 = vsub.f32 %v2537, %v2547
  %v2552 = vsub.f32 %v2542, %v2550
  %v2553 = vmul.f32 %v2551, 1.442695
  %v2554 = vpow.pop %v2553
  %v2555 = vmul.f32 %v2552, 1.442695
  %v2556 = vpow.pop %v2555
  %v2557 = vsel %vm727, %v2554, 0.0
  %2558 = vadd.xlane.f32.xlu0 %v2557
  %v2559 = vpop.xlane.xlu0 %2558
  %v2560 = vsel %vm727, %v2556, 0.0
  %2561 = vadd.xlane.f32.xlu0 %v2560
  %v2562 = vpop.xlane.xlu0 %2561
  %v2563 = vrcp.pop %v2559
  %v2564 = vrcp.pop %v2562
  %v2565 = vmul.f32 %v2554, %v2563
  %v2566 = vmul.f32 %v2556, %v2564
  %2567 = vrot.lane.b32.xlu0 %v2448, 120
  %v2568 = vpop.permute.xlu0 %2567
  %2569 = vrot.lane.b32.xlu0 %v2452, 120
  %v2570 = vpop.permute.xlu0 %2569
  %2571 = vrot.lane.b32.xlu0 %v2448, 88
  %v2572 = vpop.permute.xlu0 %2571
  %2573 = vrot.lane.b32.xlu0 %v2452, 88
  %v2574 = vpop.permute.xlu0 %2573
  %v2575 = vsel %vm643, %v2568, 0
  %v2577 = vsel %vm643, %v2570, 0
  %v2579 = vsel %vm643, %v2572, 0
  %v2581 = vsel %vm643, %v2574, 0
  %2583 = vmatprep.subr.mxu0 0.0
  %2584 = vmatpush1.xpose.msra.mxu0 0.0
  %2585 = vmatprep.subr.mxu0 0.0
  %2586 = vmatpush1.xpose.msra.mxu0 0.0
  %2587 = vmatprep.subr.mxu0 0.0
  %2588 = vmatpush1.xpose.msra.mxu0 0.0
  %2589 = vmatprep.subr.mxu0 0.0
  %2590 = vmatpush1.xpose.msra.mxu0 0.0
  %2591 = vmatprep.subr.mxu0 0.0
  %2592 = vmatpush1.xpose.msra.mxu0 0.0
  %2593 = vmatprep.subr.mxu0 0.0
  %2594 = vmatpush1.xpose.msra.mxu0 0.0
  %2595 = vmatprep.subr.mxu0 0.0
  %2596 = vmatpush1.xpose.msra.mxu0 0.0
  %2597 = vmatprep.subr.mxu0 0.0
  %2598 = vmatpush1.xpose.msra.mxu0 0.0
  %2599 = vmatprep.subr.mxu0 0.0
  %2600 = vmatpush1.xpose.msra.mxu0 0.0
  %2601 = vmatprep.subr.mxu0 0.0
  %2602 = vmatpush1.xpose.msra.mxu0 0.0
  %2603 = vmatprep.subr.mxu0 0.0
  %2604 = vmatpush1.xpose.msra.mxu0 0.0
  %2605 = vmatprep.subr.mxu0 0.0
  %2606 = vmatpush1.xpose.msra.mxu0 0.0
  %2607 = vmatprep.subr.mxu0 0.0
  %2608 = vmatpush1.xpose.msra.mxu0 0.0
  %2609 = vmatprep.subr.mxu0 0.0
  %2610 = vmatpush1.xpose.msra.mxu0 0.0
  %2611 = vmatprep.subr.mxu0 0.0
  %2612 = vmatpush1.xpose.msra.mxu0 %v2581
  %2613 = vmatprep.subr.mxu0 0.0
  %2614 = vmatpush1.xpose.msra.mxu0 %v2579
  %2615 = vmatprep.subr.mxu0 0.0
  %2616 = vmatpush2.xpose.msra.mxu0 0.0
  %2617 = vmatprep.subr.mxu0 0.0
  %2618 = vmatpush2.xpose.msra.mxu0 0.0
  %2619 = vmatprep.subr.mxu0 0.0
  %2620 = vmatpush2.xpose.msra.mxu0 0.0
  %2621 = vmatprep.subr.mxu0 0.0
  %2622 = vmatpush2.xpose.msra.mxu0 0.0
  %2623 = vmatprep.subr.mxu0 0.0
  %2624 = vmatpush2.xpose.msra.mxu0 0.0
  %2625 = vmatprep.subr.mxu0 0.0
  %2626 = vmatpush2.xpose.msra.mxu0 0.0
  %2627 = vmatprep.subr.mxu0 0.0
  %2628 = vmatpush2.xpose.msra.mxu0 0.0
  %2629 = vmatprep.subr.mxu0 0.0
  %2630 = vmatpush2.xpose.msra.mxu0 0.0
  %2631 = vmatprep.subr.mxu0 0.0
  %2632 = vmatpush2.xpose.msra.mxu0 0.0
  %2633 = vmatprep.subr.mxu0 0.0
  %2634 = vmatpush2.xpose.msra.mxu0 0.0
  %2635 = vmatprep.subr.mxu0 0.0
  %2636 = vmatpush2.xpose.msra.mxu0 0.0
  %2637 = vmatprep.subr.mxu0 0.0
  %2638 = vmatpush2.xpose.msra.mxu0 0.0
  %2639 = vmatprep.subr.mxu0 0.0
  %2640 = vmatpush2.xpose.msra.mxu0 0.0
  %2641 = vmatprep.subr.mxu0 0.0
  %2642 = vmatpush2.xpose.msra.mxu0 0.0
  %2643 = vmatprep.subr.mxu0 0.0
  %2644 = vmatpush2.xpose.msra.mxu0 0.0
  %2645 = vmatprep.subr.mxu0 0.0
  %2646 = vmatpush2.xpose.msra.mxu0 0.0
  %2647 = vmatprep.mubr.f32.mxu0 0.0
  %2648 = vmatmul.mubr.f32.gmra.mxu0 %v2575
  %v2649 = vpop.f32.mrf.mxu0
  %v2650 = vadd.f32 %v29, %v2649
  %v2651 = vpop.f32.mrf.mxu0
  %2652 = vmatprep.mubr.f32.mxu0 0.0
  %2653 = vmatmul.mubr.f32.gmra.mxu0 %v2577
  %v2654 = vpop.f32.mrf.mxu0
  %v2655 = vadd.f32 %v30, %v2654
  %v2656 = vpop.f32.mrf.mxu0
  %2657 = vdwg.mxu0
  %v2658 = vsel %vm727, %v2650, -inf
  %2659 = vmax.xlane.f32.xlu0 %v2658
  %v2660 = vpop.xlane.xlu0 %2659
  %v2661 = vsel %vm727, %v2655, -inf
  %2662 = vmax.xlane.f32.xlu0 %v2661
  %v2663 = vpop.xlane.xlu0 %2662
  %v2664 = vsub.f32 %v2650, %v2660
  %v2665 = vsub.f32 %v2655, %v2663
  %v2666 = vmul.f32 %v2664, 1.442695
  %v2667 = vpow.pop %v2666
  %v2668 = vmul.f32 %v2665, 1.442695
  %v2669 = vpow.pop %v2668
  %v2670 = vsel %vm727, %v2667, 0.0
  %2671 = vadd.xlane.f32.xlu0 %v2670
  %v2672 = vpop.xlane.xlu0 %2671
  %v2673 = vsel %vm727, %v2669, 0.0
  %2674 = vadd.xlane.f32.xlu0 %v2673
  %v2675 = vpop.xlane.xlu0 %2674
  %v2676 = vrcp.pop %v2672
  %v2677 = vrcp.pop %v2675
  %v2678 = vmul.f32 %v2667, %v2676
  %v2679 = vmul.f32 %v2669, %v2677
  %2680 = vrot.lane.b32.xlu0 %v2448, 32
  %v2681 = vpop.permute.xlu0 %2680
  %2682 = vrot.lane.b32.xlu0 %v2452, 32
  %v2683 = vpop.permute.xlu0 %2682
  %v2687 = vsel %vm727, %v2678, 0
  %v2690 = vsel %vm727, %v2679, 0
  %2692 = vmatprep.subr.mxu0 0.0
  %2693 = vmatpush1.msra.mxu0 0.0
  %2694 = vmatprep.subr.mxu0 0.0
  %2695 = vmatpush1.msra.mxu0 0.0
  %2696 = vmatprep.subr.mxu0 0.0
  %2697 = vmatpush1.msra.mxu0 0.0
  %2698 = vmatprep.subr.mxu0 0.0
  %2699 = vmatpush1.msra.mxu0 0.0
  %2700 = vmatprep.subr.mxu0 0.0
  %2701 = vmatpush1.msra.mxu0 0.0
  %2702 = vmatprep.subr.mxu0 0.0
  %2703 = vmatpush1.msra.mxu0 0.0
  %2704 = vmatprep.subr.mxu0 0.0
  %2705 = vmatpush1.msra.mxu0 0.0
  %2706 = vmatprep.subr.mxu0 0.0
  %2707 = vmatpush1.msra.mxu0 0.0
  %2708 = vmatprep.subr.mxu0 0.0
  %2709 = vmatpush1.msra.mxu0 0.0
  %2710 = vmatprep.subr.mxu0 0.0
  %2711 = vmatpush1.msra.mxu0 0.0
  %2712 = vmatprep.subr.mxu0 0.0
  %2713 = vmatpush1.msra.mxu0 0.0
  %2714 = vmatprep.subr.mxu0 0.0
  %2715 = vmatpush1.msra.mxu0 0.0
  %2716 = vmatprep.subr.mxu0 0.0
  %2717 = vmatpush1.msra.mxu0 0.0
  %2718 = vmatprep.subr.mxu0 0.0
  %2719 = vmatpush1.msra.mxu0 0.0
  %2720 = vmatprep.subr.mxu0 0.0
  %2721 = vmatpush1.msra.mxu0 %v2683
  %2722 = vmatprep.subr.mxu0 0.0
  %2723 = vmatpush1.msra.mxu0 %v2681
  %2724 = vmatprep.subr.mxu0 0.0
  %2725 = vmatpush2.msra.mxu0 0.0
  %2726 = vmatprep.subr.mxu0 0.0
  %2727 = vmatpush2.msra.mxu0 0.0
  %2728 = vmatprep.subr.mxu0 0.0
  %2729 = vmatpush2.msra.mxu0 0.0
  %2730 = vmatprep.subr.mxu0 0.0
  %2731 = vmatpush2.msra.mxu0 0.0
  %2732 = vmatprep.subr.mxu0 0.0
  %2733 = vmatpush2.msra.mxu0 0.0
  %2734 = vmatprep.subr.mxu0 0.0
  %2735 = vmatpush2.msra.mxu0 0.0
  %2736 = vmatprep.subr.mxu0 0.0
  %2737 = vmatpush2.msra.mxu0 0.0
  %2738 = vmatprep.subr.mxu0 0.0
  %2739 = vmatpush2.msra.mxu0 0.0
  %2740 = vmatprep.subr.mxu0 0.0
  %2741 = vmatpush2.msra.mxu0 0.0
  %2742 = vmatprep.subr.mxu0 0.0
  %2743 = vmatpush2.msra.mxu0 0.0
  %2744 = vmatprep.subr.mxu0 0.0
  %2745 = vmatpush2.msra.mxu0 0.0
  %2746 = vmatprep.subr.mxu0 0.0
  %2747 = vmatpush2.msra.mxu0 0.0
  %2748 = vmatprep.subr.mxu0 0.0
  %2749 = vmatpush2.msra.mxu0 0.0
  %2750 = vmatprep.subr.mxu0 0.0
  %2751 = vmatpush2.msra.mxu0 0.0
  %2752 = vmatprep.subr.mxu0 0.0
  %2753 = vmatpush2.msra.mxu0 0.0
  %2754 = vmatprep.subr.mxu0 0.0
  %2755 = vmatpush2.msra.mxu0 0.0
  %2756 = vmatprep.mubr.f32.mxu0 0.0
  %2757 = vmatmul.mubr.f32.gmra.mxu0 %v2687
  %v2758 = vpop.f32.mrf.mxu0
  %v2759 = vadd.f32 0.0, %v2758
  %v2760 = vpop.f32.mrf.mxu0
  %2761 = vmatprep.mubr.f32.mxu0 0.0
  %2762 = vmatmul.mubr.f32.gmra.mxu0 %v2690
  %v2763 = vpop.f32.mrf.mxu0
  %v2764 = vadd.f32 0.0, %v2763
  %v2765 = vpop.f32.mrf.mxu0
  %2766 = vdwg.mxu0
  %2767 = vrot.lane.b32.xlu0 %v2448, 64
  %v2768 = vpop.permute.xlu0 %2767
  %2769 = vrot.lane.b32.xlu0 %v2452, 64
  %v2770 = vpop.permute.xlu0 %2769
  %v2774 = vsel %vm727, %v2565, 0
  %v2777 = vsel %vm727, %v2566, 0
  %2779 = vmatprep.subr.mxu0 0.0
  %2780 = vmatpush1.msra.mxu0 0.0
  %2781 = vmatprep.subr.mxu0 0.0
  %2782 = vmatpush1.msra.mxu0 0.0
  %2783 = vmatprep.subr.mxu0 0.0
  %2784 = vmatpush1.msra.mxu0 0.0
  %2785 = vmatprep.subr.mxu0 0.0
  %2786 = vmatpush1.msra.mxu0 0.0
  %2787 = vmatprep.subr.mxu0 0.0
  %2788 = vmatpush1.msra.mxu0 0.0
  %2789 = vmatprep.subr.mxu0 0.0
  %2790 = vmatpush1.msra.mxu0 0.0
  %2791 = vmatprep.subr.mxu0 0.0
  %2792 = vmatpush1.msra.mxu0 0.0
  %2793 = vmatprep.subr.mxu0 0.0
  %2794 = vmatpush1.msra.mxu0 0.0
  %2795 = vmatprep.subr.mxu0 0.0
  %2796 = vmatpush1.msra.mxu0 0.0
  %2797 = vmatprep.subr.mxu0 0.0
  %2798 = vmatpush1.msra.mxu0 0.0
  %2799 = vmatprep.subr.mxu0 0.0
  %2800 = vmatpush1.msra.mxu0 0.0
  %2801 = vmatprep.subr.mxu0 0.0
  %2802 = vmatpush1.msra.mxu0 0.0
  %2803 = vmatprep.subr.mxu0 0.0
  %2804 = vmatpush1.msra.mxu0 0.0
  %2805 = vmatprep.subr.mxu0 0.0
  %2806 = vmatpush1.msra.mxu0 0.0
  %2807 = vmatprep.subr.mxu0 0.0
  %2808 = vmatpush1.msra.mxu0 %v2770
  %2809 = vmatprep.subr.mxu0 0.0
  %2810 = vmatpush1.msra.mxu0 %v2768
  %2811 = vmatprep.subr.mxu0 0.0
  %2812 = vmatpush2.msra.mxu0 0.0
  %2813 = vmatprep.subr.mxu0 0.0
  %2814 = vmatpush2.msra.mxu0 0.0
  %2815 = vmatprep.subr.mxu0 0.0
  %2816 = vmatpush2.msra.mxu0 0.0
  %2817 = vmatprep.subr.mxu0 0.0
  %2818 = vmatpush2.msra.mxu0 0.0
  %2819 = vmatprep.subr.mxu0 0.0
  %2820 = vmatpush2.msra.mxu0 0.0
  %2821 = vmatprep.subr.mxu0 0.0
  %2822 = vmatpush2.msra.mxu0 0.0
  %2823 = vmatprep.subr.mxu0 0.0
  %2824 = vmatpush2.msra.mxu0 0.0
  %2825 = vmatprep.subr.mxu0 0.0
  %2826 = vmatpush2.msra.mxu0 0.0
  %2827 = vmatprep.subr.mxu0 0.0
  %2828 = vmatpush2.msra.mxu0 0.0
  %2829 = vmatprep.subr.mxu0 0.0
  %2830 = vmatpush2.msra.mxu0 0.0
  %2831 = vmatprep.subr.mxu0 0.0
  %2832 = vmatpush2.msra.mxu0 0.0
  %2833 = vmatprep.subr.mxu0 0.0
  %2834 = vmatpush2.msra.mxu0 0.0
  %2835 = vmatprep.subr.mxu0 0.0
  %2836 = vmatpush2.msra.mxu0 0.0
  %2837 = vmatprep.subr.mxu0 0.0
  %2838 = vmatpush2.msra.mxu0 0.0
  %2839 = vmatprep.subr.mxu0 0.0
  %2840 = vmatpush2.msra.mxu0 0.0
  %2841 = vmatprep.subr.mxu0 0.0
  %2842 = vmatpush2.msra.mxu0 0.0
  %2843 = vmatprep.mubr.f32.mxu0 0.0
  %2844 = vmatmul.mubr.f32.gmra.mxu0 %v2774
  %v2845 = vpop.f32.mrf.mxu0
  %v2846 = vadd.f32 %v2759, %v2845
  %v2847 = vpop.f32.mrf.mxu0
  %2848 = vmatprep.mubr.f32.mxu0 0.0
  %2849 = vmatmul.mubr.f32.gmra.mxu0 %v2777
  %v2850 = vpop.f32.mrf.mxu0
  %v2851 = vadd.f32 %v2764, %v2850
  %v2852 = vpop.f32.mrf.mxu0
  %2853 = vdwg.mxu0
  %2854 = vrot.lane.b32.xlu0 %v2448, 112
  %v2855 = vpop.permute.xlu0 %2854
  %2856 = vrot.lane.b32.xlu0 %v2452, 112
  %v2857 = vpop.permute.xlu0 %2856
  %2858 = vrot.lane.b32.xlu0 %v2448, 80
  %v2859 = vpop.permute.xlu0 %2858
  %2860 = vrot.lane.b32.xlu0 %v2452, 80
  %v2861 = vpop.permute.xlu0 %2860
  %v2862 = vsel %vm643, %v2855, 0
  %v2864 = vsel %vm643, %v2857, 0
  %v2866 = vsel %vm643, %v2859, 0
  %v2868 = vsel %vm643, %v2861, 0
  %2870 = vmatprep.subr.mxu0 0.0
  %2871 = vmatpush1.xpose.msra.mxu0 0.0
  %2872 = vmatprep.subr.mxu0 0.0
  %2873 = vmatpush1.xpose.msra.mxu0 0.0
  %2874 = vmatprep.subr.mxu0 0.0
  %2875 = vmatpush1.xpose.msra.mxu0 0.0
  %2876 = vmatprep.subr.mxu0 0.0
  %2877 = vmatpush1.xpose.msra.mxu0 0.0
  %2878 = vmatprep.subr.mxu0 0.0
  %2879 = vmatpush1.xpose.msra.mxu0 0.0
  %2880 = vmatprep.subr.mxu0 0.0
  %2881 = vmatpush1.xpose.msra.mxu0 0.0
  %2882 = vmatprep.subr.mxu0 0.0
  %2883 = vmatpush1.xpose.msra.mxu0 0.0
  %2884 = vmatprep.subr.mxu0 0.0
  %2885 = vmatpush1.xpose.msra.mxu0 0.0
  %2886 = vmatprep.subr.mxu0 0.0
  %2887 = vmatpush1.xpose.msra.mxu0 0.0
  %2888 = vmatprep.subr.mxu0 0.0
  %2889 = vmatpush1.xpose.msra.mxu0 0.0
  %2890 = vmatprep.subr.mxu0 0.0
  %2891 = vmatpush1.xpose.msra.mxu0 0.0
  %2892 = vmatprep.subr.mxu0 0.0
  %2893 = vmatpush1.xpose.msra.mxu0 0.0
  %2894 = vmatprep.subr.mxu0 0.0
  %2895 = vmatpush1.xpose.msra.mxu0 0.0
  %2896 = vmatprep.subr.mxu0 0.0
  %2897 = vmatpush1.xpose.msra.mxu0 0.0
  %2898 = vmatprep.subr.mxu0 0.0
  %2899 = vmatpush1.xpose.msra.mxu0 %v2868
  %2900 = vmatprep.subr.mxu0 0.0
  %2901 = vmatpush1.xpose.msra.mxu0 %v2866
  %2902 = vmatprep.subr.mxu0 0.0
  %2903 = vmatpush2.xpose.msra.mxu0 0.0
  %2904 = vmatprep.subr.mxu0 0.0
  %2905 = vmatpush2.xpose.msra.mxu0 0.0
  %2906 = vmatprep.subr.mxu0 0.0
  %2907 = vmatpush2.xpose.msra.mxu0 0.0
  %2908 = vmatprep.subr.mxu0 0.0
  %2909 = vmatpush2.xpose.msra.mxu0 0.0
  %2910 = vmatprep.subr.mxu0 0.0
  %2911 = vmatpush2.xpose.msra.mxu0 0.0
  %2912 = vmatprep.subr.mxu0 0.0
  %2913 = vmatpush2.xpose.msra.mxu0 0.0
  %2914 = vmatprep.subr.mxu0 0.0
  %2915 = vmatpush2.xpose.msra.mxu0 0.0
  %2916 = vmatprep.subr.mxu0 0.0
  %2917 = vmatpush2.xpose.msra.mxu0 0.0
  %2918 = vmatprep.subr.mxu0 0.0
  %2919 = vmatpush2.xpose.msra.mxu0 0.0
  %2920 = vmatprep.subr.mxu0 0.0
  %2921 = vmatpush2.xpose.msra.mxu0 0.0
  %2922 = vmatprep.subr.mxu0 0.0
  %2923 = vmatpush2.xpose.msra.mxu0 0.0
  %2924 = vmatprep.subr.mxu0 0.0
  %2925 = vmatpush2.xpose.msra.mxu0 0.0
  %2926 = vmatprep.subr.mxu0 0.0
  %2927 = vmatpush2.xpose.msra.mxu0 0.0
  %2928 = vmatprep.subr.mxu0 0.0
  %2929 = vmatpush2.xpose.msra.mxu0 0.0
  %2930 = vmatprep.subr.mxu0 0.0
  %2931 = vmatpush2.xpose.msra.mxu0 0.0
  %2932 = vmatprep.subr.mxu0 0.0
  %2933 = vmatpush2.xpose.msra.mxu0 0.0
  %2934 = vmatprep.mubr.f32.mxu0 0.0
  %2935 = vmatmul.mubr.f32.gmra.mxu0 %v2862
  %v2936 = vpop.f32.mrf.mxu0
  %v2937 = vadd.f32 %v29, %v2936
  %v2938 = vpop.f32.mrf.mxu0
  %2939 = vmatprep.mubr.f32.mxu0 0.0
  %2940 = vmatmul.mubr.f32.gmra.mxu0 %v2864
  %v2941 = vpop.f32.mrf.mxu0
  %v2942 = vadd.f32 %v30, %v2941
  %v2943 = vpop.f32.mrf.mxu0
  %2944 = vdwg.mxu0
  %v2945 = vsel %vm727, %v2937, -inf
  %2946 = vmax.xlane.f32.xlu0 %v2945
  %v2947 = vpop.xlane.xlu0 %2946
  %v2948 = vsel %vm727, %v2942, -inf
  %2949 = vmax.xlane.f32.xlu0 %v2948
  %v2950 = vpop.xlane.xlu0 %2949
  %v2951 = vsub.f32 %v2937, %v2947
  %v2952 = vsub.f32 %v2942, %v2950
  %v2953 = vmul.f32 %v2951, 1.442695
  %v2954 = vpow.pop %v2953
  %v2955 = vmul.f32 %v2952, 1.442695
  %v2956 = vpow.pop %v2955
  %v2957 = vsel %vm727, %v2954, 0.0
  %2958 = vadd.xlane.f32.xlu0 %v2957
  %v2959 = vpop.xlane.xlu0 %2958
  %v2960 = vsel %vm727, %v2956, 0.0
  %2961 = vadd.xlane.f32.xlu0 %v2960
  %v2962 = vpop.xlane.xlu0 %2961
  %v2963 = vrcp.pop %v2959
  %v2964 = vrcp.pop %v2962
  %v2965 = vmul.f32 %v2954, %v2963
  %v2966 = vmul.f32 %v2956, %v2964
  %v2968 = vsel %vm727, %v2965, 0
  %v2971 = vsel %vm727, %v2966, 0
  %2973 = vmatprep.subr.mxu0 0.0
  %2974 = vmatpush1.msra.mxu0 0.0
  %2975 = vmatprep.subr.mxu0 0.0
  %2976 = vmatpush1.msra.mxu0 0.0
  %2977 = vmatprep.subr.mxu0 0.0
  %2978 = vmatpush1.msra.mxu0 0.0
  %2979 = vmatprep.subr.mxu0 0.0
  %2980 = vmatpush1.msra.mxu0 0.0
  %2981 = vmatprep.subr.mxu0 0.0
  %2982 = vmatpush1.msra.mxu0 0.0
  %2983 = vmatprep.subr.mxu0 0.0
  %2984 = vmatpush1.msra.mxu0 0.0
  %2985 = vmatprep.subr.mxu0 0.0
  %2986 = vmatpush1.msra.mxu0 0.0
  %2987 = vmatprep.subr.mxu0 0.0
  %2988 = vmatpush1.msra.mxu0 0.0
  %2989 = vmatprep.subr.mxu0 0.0
  %2990 = vmatpush1.msra.mxu0 0.0
  %2991 = vmatprep.subr.mxu0 0.0
  %2992 = vmatpush1.msra.mxu0 0.0
  %2993 = vmatprep.subr.mxu0 0.0
  %2994 = vmatpush1.msra.mxu0 0.0
  %2995 = vmatprep.subr.mxu0 0.0
  %2996 = vmatpush1.msra.mxu0 0.0
  %2997 = vmatprep.subr.mxu0 0.0
  %2998 = vmatpush1.msra.mxu0 0.0
  %2999 = vmatprep.subr.mxu0 0.0
  %3000 = vmatpush1.msra.mxu0 0.0
  %3001 = vmatprep.subr.mxu0 0.0
  %3002 = vmatpush1.msra.mxu0 %v2453
  %3003 = vmatprep.subr.mxu0 0.0
  %3004 = vmatpush1.msra.mxu0 %v2449
  %3005 = vmatprep.subr.mxu0 0.0
  %3006 = vmatpush2.msra.mxu0 0.0
  %3007 = vmatprep.subr.mxu0 0.0
  %3008 = vmatpush2.msra.mxu0 0.0
  %3009 = vmatprep.subr.mxu0 0.0
  %3010 = vmatpush2.msra.mxu0 0.0
  %3011 = vmatprep.subr.mxu0 0.0
  %3012 = vmatpush2.msra.mxu0 0.0
  %3013 = vmatprep.subr.mxu0 0.0
  %3014 = vmatpush2.msra.mxu0 0.0
  %3015 = vmatprep.subr.mxu0 0.0
  %3016 = vmatpush2.msra.mxu0 0.0
  %3017 = vmatprep.subr.mxu0 0.0
  %3018 = vmatpush2.msra.mxu0 0.0
  %3019 = vmatprep.subr.mxu0 0.0
  %3020 = vmatpush2.msra.mxu0 0.0
  %3021 = vmatprep.subr.mxu0 0.0
  %3022 = vmatpush2.msra.mxu0 0.0
  %3023 = vmatprep.subr.mxu0 0.0
  %3024 = vmatpush2.msra.mxu0 0.0
  %3025 = vmatprep.subr.mxu0 0.0
  %3026 = vmatpush2.msra.mxu0 0.0
  %3027 = vmatprep.subr.mxu0 0.0
  %3028 = vmatpush2.msra.mxu0 0.0
  %3029 = vmatprep.subr.mxu0 0.0
  %3030 = vmatpush2.msra.mxu0 0.0
  %3031 = vmatprep.subr.mxu0 0.0
  %3032 = vmatpush2.msra.mxu0 0.0
  %3033 = vmatprep.subr.mxu0 0.0
  %3034 = vmatpush2.msra.mxu0 0.0
  %3035 = vmatprep.subr.mxu0 0.0
  %3036 = vmatpush2.msra.mxu0 0.0
  %3037 = vmatprep.mubr.f32.mxu0 0.0
  %3038 = vmatmul.mubr.f32.gmra.mxu0 %v2968
  %v3039 = vpop.f32.mrf.mxu0
  %v3040 = vadd.f32 0.0, %v3039
  %v3041 = vpop.f32.mrf.mxu0
  %3042 = vmatprep.mubr.f32.mxu0 0.0
  %3043 = vmatmul.mubr.f32.gmra.mxu0 %v2971
  %v3044 = vpop.f32.mrf.mxu0
  %v3045 = vadd.f32 0.0, %v3044
  %v3046 = vpop.f32.mrf.mxu0
  %3047 = vdwg.mxu0
  %v3048 = vadd.f32 %v2846, %v3040
  %v3049 = vadd.f32 %v2851, %v3045
  %3050 = vrot.lane.b32.xlu0 %v2448, 104
  %v3051 = vpop.permute.xlu0 %3050
  %3052 = vrot.lane.b32.xlu0 %v2452, 104
  %v3053 = vpop.permute.xlu0 %3052
  %3054 = vrot.lane.b32.xlu0 %v2448, 72
  %v3055 = vpop.permute.xlu0 %3054
  %3056 = vrot.lane.b32.xlu0 %v2452, 72
  %v3057 = vpop.permute.xlu0 %3056
  %v3058 = vsel %vm643, %v3051, 0
  %v3060 = vsel %vm643, %v3053, 0
  %v3062 = vsel %vm643, %v3055, 0
  %v3064 = vsel %vm643, %v3057, 0
  %3066 = vmatprep.subr.mxu0 0.0
  %3067 = vmatpush1.xpose.msra.mxu0 0.0
  %3068 = vmatprep.subr.mxu0 0.0
  %3069 = vmatpush1.xpose.msra.mxu0 0.0
  %3070 = vmatprep.subr.mxu0 0.0
  %3071 = vmatpush1.xpose.msra.mxu0 0.0
  %3072 = vmatprep.subr.mxu0 0.0
  %3073 = vmatpush1.xpose.msra.mxu0 0.0
  %3074 = vmatprep.subr.mxu0 0.0
  %3075 = vmatpush1.xpose.msra.mxu0 0.0
  %3076 = vmatprep.subr.mxu0 0.0
  %3077 = vmatpush1.xpose.msra.mxu0 0.0
  %3078 = vmatprep.subr.mxu0 0.0
  %3079 = vmatpush1.xpose.msra.mxu0 0.0
  %3080 = vmatprep.subr.mxu0 0.0
  %3081 = vmatpush1.xpose.msra.mxu0 0.0
  %3082 = vmatprep.subr.mxu0 0.0
  %3083 = vmatpush1.xpose.msra.mxu0 0.0
  %3084 = vmatprep.subr.mxu0 0.0
  %3085 = vmatpush1.xpose.msra.mxu0 0.0
  %3086 = vmatprep.subr.mxu0 0.0
  %3087 = vmatpush1.xpose.msra.mxu0 0.0
  %3088 = vmatprep.subr.mxu0 0.0
  %3089 = vmatpush1.xpose.msra.mxu0 0.0
  %3090 = vmatprep.subr.mxu0 0.0
  %3091 = vmatpush1.xpose.msra.mxu0 0.0
  %3092 = vmatprep.subr.mxu0 0.0
  %3093 = vmatpush1.xpose.msra.mxu0 0.0
  %3094 = vmatprep.subr.mxu0 0.0
  %3095 = vmatpush1.xpose.msra.mxu0 %v3064
  %3096 = vmatprep.subr.mxu0 0.0
  %3097 = vmatpush1.xpose.msra.mxu0 %v3062
  %3098 = vmatprep.subr.mxu0 0.0
  %3099 = vmatpush2.xpose.msra.mxu0 0.0
  %3100 = vmatprep.subr.mxu0 0.0
  %3101 = vmatpush2.xpose.msra.mxu0 0.0
  %3102 = vmatprep.subr.mxu0 0.0
  %3103 = vmatpush2.xpose.msra.mxu0 0.0
  %3104 = vmatprep.subr.mxu0 0.0
  %3105 = vmatpush2.xpose.msra.mxu0 0.0
  %3106 = vmatprep.subr.mxu0 0.0
  %3107 = vmatpush2.xpose.msra.mxu0 0.0
  %3108 = vmatprep.subr.mxu0 0.0
  %3109 = vmatpush2.xpose.msra.mxu0 0.0
  %3110 = vmatprep.subr.mxu0 0.0
  %3111 = vmatpush2.xpose.msra.mxu0 0.0
  %3112 = vmatprep.subr.mxu0 0.0
  %3113 = vmatpush2.xpose.msra.mxu0 0.0
  %3114 = vmatprep.subr.mxu0 0.0
  %3115 = vmatpush2.xpose.msra.mxu0 0.0
  %3116 = vmatprep.subr.mxu0 0.0
  %3117 = vmatpush2.xpose.msra.mxu0 0.0
  %3118 = vmatprep.subr.mxu0 0.0
  %3119 = vmatpush2.xpose.msra.mxu0 0.0
  %3120 = vmatprep.subr.mxu0 0.0
  %3121 = vmatpush2.xpose.msra.mxu0 0.0
  %3122 = vmatprep.subr.mxu0 0.0
  %3123 = vmatpush2.xpose.msra.mxu0 0.0
  %3124 = vmatprep.subr.mxu0 0.0
  %3125 = vmatpush2.xpose.msra.mxu0 0.0
  %3126 = vmatprep.subr.mxu0 0.0
  %3127 = vmatpush2.xpose.msra.mxu0 0.0
  %3128 = vmatprep.subr.mxu0 0.0
  %3129 = vmatpush2.xpose.msra.mxu0 0.0
  %3130 = vmatprep.mubr.f32.mxu0 0.0
  %3131 = vmatmul.mubr.f32.gmra.mxu0 %v3058
  %v3132 = vpop.f32.mrf.mxu0
  %v3133 = vadd.f32 %v29, %v3132
  %v3134 = vpop.f32.mrf.mxu0
  %3135 = vmatprep.mubr.f32.mxu0 0.0
  %3136 = vmatmul.mubr.f32.gmra.mxu0 %v3060
  %v3137 = vpop.f32.mrf.mxu0
  %v3138 = vadd.f32 %v30, %v3137
  %v3139 = vpop.f32.mrf.mxu0
  %3140 = vdwg.mxu0
  %v3141 = vsel %vm727, %v3133, -inf
  %3142 = vmax.xlane.f32.xlu0 %v3141
  %v3143 = vpop.xlane.xlu0 %3142
  %v3144 = vsel %vm727, %v3138, -inf
  %3145 = vmax.xlane.f32.xlu0 %v3144
  %v3146 = vpop.xlane.xlu0 %3145
  %v3147 = vsub.f32 %v3133, %v3143
  %v3148 = vsub.f32 %v3138, %v3146
  %v3149 = vmul.f32 %v3147, 1.442695
  %v3150 = vpow.pop %v3149
  %v3151 = vmul.f32 %v3148, 1.442695
  %v3152 = vpow.pop %v3151
  %v3153 = vsel %vm727, %v3150, 0.0
  %3154 = vadd.xlane.f32.xlu0 %v3153
  %v3155 = vpop.xlane.xlu0 %3154
  %v3156 = vsel %vm727, %v3152, 0.0
  %3157 = vadd.xlane.f32.xlu0 %v3156
  %v3158 = vpop.xlane.xlu0 %3157
  %v3159 = vrcp.pop %v3155
  %v3160 = vrcp.pop %v3158
  %v3161 = vmul.f32 %v3150, %v3159
  %v3162 = vmul.f32 %v3152, %v3160
  %3165 = vrot.lane.b32.xlu0 %v2449, 96
  %v3166 = vpop.permute.xlu0 %3165
  %3167 = vrot.lane.b32.xlu0 %v2453, 96
  %v3168 = vpop.permute.xlu0 %3167
  %v3172 = vsel %vm727, %v3161, 0
  %v3175 = vsel %vm727, %v3162, 0
  %3177 = vmatprep.subr.mxu0 0.0
  %3178 = vmatpush1.msra.mxu0 0.0
  %3179 = vmatprep.subr.mxu0 0.0
  %3180 = vmatpush1.msra.mxu0 0.0
  %3181 = vmatprep.subr.mxu0 0.0
  %3182 = vmatpush1.msra.mxu0 0.0
  %3183 = vmatprep.subr.mxu0 0.0
  %3184 = vmatpush1.msra.mxu0 0.0
  %3185 = vmatprep.subr.mxu0 0.0
  %3186 = vmatpush1.msra.mxu0 0.0
  %3187 = vmatprep.subr.mxu0 0.0
  %3188 = vmatpush1.msra.mxu0 0.0
  %3189 = vmatprep.subr.mxu0 0.0
  %3190 = vmatpush1.msra.mxu0 0.0
  %3191 = vmatprep.subr.mxu0 0.0
  %3192 = vmatpush1.msra.mxu0 0.0
  %3193 = vmatprep.subr.mxu0 0.0
  %3194 = vmatpush1.msra.mxu0 0.0
  %3195 = vmatprep.subr.mxu0 0.0
  %3196 = vmatpush1.msra.mxu0 0.0
  %3197 = vmatprep.subr.mxu0 0.0
  %3198 = vmatpush1.msra.mxu0 0.0
  %3199 = vmatprep.subr.mxu0 0.0
  %3200 = vmatpush1.msra.mxu0 0.0
  %3201 = vmatprep.subr.mxu0 0.0
  %3202 = vmatpush1.msra.mxu0 0.0
  %3203 = vmatprep.subr.mxu0 0.0
  %3204 = vmatpush1.msra.mxu0 0.0
  %3205 = vmatprep.subr.mxu0 0.0
  %3206 = vmatpush1.msra.mxu0 %v3168
  %3207 = vmatprep.subr.mxu0 0.0
  %3208 = vmatpush1.msra.mxu0 %v3166
  %3209 = vmatprep.subr.mxu0 0.0
  %3210 = vmatpush2.msra.mxu0 0.0
  %3211 = vmatprep.subr.mxu0 0.0
  %3212 = vmatpush2.msra.mxu0 0.0
  %3213 = vmatprep.subr.mxu0 0.0
  %3214 = vmatpush2.msra.mxu0 0.0
  %3215 = vmatprep.subr.mxu0 0.0
  %3216 = vmatpush2.msra.mxu0 0.0
  %3217 = vmatprep.subr.mxu0 0.0
  %3218 = vmatpush2.msra.mxu0 0.0
  %3219 = vmatprep.subr.mxu0 0.0
  %3220 = vmatpush2.msra.mxu0 0.0
  %3221 = vmatprep.subr.mxu0 0.0
  %3222 = vmatpush2.msra.mxu0 0.0
  %3223 = vmatprep.subr.mxu0 0.0
  %3224 = vmatpush2.msra.mxu0 0.0
  %3225 = vmatprep.subr.mxu0 0.0
  %3226 = vmatpush2.msra.mxu0 0.0
  %3227 = vmatprep.subr.mxu0 0.0
  %3228 = vmatpush2.msra.mxu0 0.0
  %3229 = vmatprep.subr.mxu0 0.0
  %3230 = vmatpush2.msra.mxu0 0.0
  %3231 = vmatprep.subr.mxu0 0.0
  %3232 = vmatpush2.msra.mxu0 0.0
  %3233 = vmatprep.subr.mxu0 0.0
  %3234 = vmatpush2.msra.mxu0 0.0
  %3235 = vmatprep.subr.mxu0 0.0
  %3236 = vmatpush2.msra.mxu0 0.0
  %3237 = vmatprep.subr.mxu0 0.0
  %3238 = vmatpush2.msra.mxu0 0.0
  %3239 = vmatprep.subr.mxu0 0.0
  %3240 = vmatpush2.msra.mxu0 0.0
  %3241 = vmatprep.mubr.f32.mxu0 0.0
  %3242 = vmatmul.mubr.f32.gmra.mxu0 %v3172
  %v3243 = vpop.f32.mrf.mxu0
  %v3244 = vadd.f32 0.0, %v3243
  %v3245 = vpop.f32.mrf.mxu0
  %3246 = vmatprep.mubr.f32.mxu0 0.0
  %3247 = vmatmul.mubr.f32.gmra.mxu0 %v3175
  %v3248 = vpop.f32.mrf.mxu0
  %v3249 = vadd.f32 0.0, %v3248
  %v3250 = vpop.f32.mrf.mxu0
  %3251 = vdwg.mxu0
  %v3252 = vadd.f32 %v3048, %v3244
  %v3253 = vadd.f32 %v3049, %v3249
  %3256 = vrot.lane.b32.xlu0 %v2450, 96
  %v3257 = vpop.permute.xlu0 %3256
  %3258 = vrot.lane.b32.xlu0 %v2454, 96
  %v3259 = vpop.permute.xlu0 %3258
  %v3260 = vsel %vm643, %v2450, 0
  %v3262 = vsel %vm643, %v2454, 0
  %v3264 = vsel %vm643, %v3257, 0
  %v3266 = vsel %vm643, %v3259, 0
  %3268 = vmatprep.subr.mxu0 0.0
  %3269 = vmatpush1.xpose.msra.mxu0 0.0
  %3270 = vmatprep.subr.mxu0 0.0
  %3271 = vmatpush1.xpose.msra.mxu0 0.0
  %3272 = vmatprep.subr.mxu0 0.0
  %3273 = vmatpush1.xpose.msra.mxu0 0.0
  %3274 = vmatprep.subr.mxu0 0.0
  %3275 = vmatpush1.xpose.msra.mxu0 0.0
  %3276 = vmatprep.subr.mxu0 0.0
  %3277 = vmatpush1.xpose.msra.mxu0 0.0
  %3278 = vmatprep.subr.mxu0 0.0
  %3279 = vmatpush1.xpose.msra.mxu0 0.0
  %3280 = vmatprep.subr.mxu0 0.0
  %3281 = vmatpush1.xpose.msra.mxu0 0.0
  %3282 = vmatprep.subr.mxu0 0.0
  %3283 = vmatpush1.xpose.msra.mxu0 0.0
  %3284 = vmatprep.subr.mxu0 0.0
  %3285 = vmatpush1.xpose.msra.mxu0 0.0
  %3286 = vmatprep.subr.mxu0 0.0
  %3287 = vmatpush1.xpose.msra.mxu0 0.0
  %3288 = vmatprep.subr.mxu0 0.0
  %3289 = vmatpush1.xpose.msra.mxu0 0.0
  %3290 = vmatprep.subr.mxu0 0.0
  %3291 = vmatpush1.xpose.msra.mxu0 0.0
  %3292 = vmatprep.subr.mxu0 0.0
  %3293 = vmatpush1.xpose.msra.mxu0 0.0
  %3294 = vmatprep.subr.mxu0 0.0
  %3295 = vmatpush1.xpose.msra.mxu0 0.0
  %3296 = vmatprep.subr.mxu0 0.0
  %3297 = vmatpush1.xpose.msra.mxu0 %v3266
  %3298 = vmatprep.subr.mxu0 0.0
  %3299 = vmatpush1.xpose.msra.mxu0 %v3264
  %3300 = vmatprep.subr.mxu0 0.0
  %3301 = vmatpush2.xpose.msra.mxu0 0.0
  %3302 = vmatprep.subr.mxu0 0.0
  %3303 = vmatpush2.xpose.msra.mxu0 0.0
  %3304 = vmatprep.subr.mxu0 0.0
  %3305 = vmatpush2.xpose.msra.mxu0 0.0
  %3306 = vmatprep.subr.mxu0 0.0
  %3307 = vmatpush2.xpose.msra.mxu0 0.0
  %3308 = vmatprep.subr.mxu0 0.0
  %3309 = vmatpush2.xpose.msra.mxu0 0.0
  %3310 = vmatprep.subr.mxu0 0.0
  %3311 = vmatpush2.xpose.msra.mxu0 0.0
  %3312 = vmatprep.subr.mxu0 0.0
  %3313 = vmatpush2.xpose.msra.mxu0 0.0
  %3314 = vmatprep.subr.mxu0 0.0
  %3315 = vmatpush2.xpose.msra.mxu0 0.0
  %3316 = vmatprep.subr.mxu0 0.0
  %3317 = vmatpush2.xpose.msra.mxu0 0.0
  %3318 = vmatprep.subr.mxu0 0.0
  %3319 = vmatpush2.xpose.msra.mxu0 0.0
  %3320 = vmatprep.subr.mxu0 0.0
  %3321 = vmatpush2.xpose.msra.mxu0 0.0
  %3322 = vmatprep.subr.mxu0 0.0
  %3323 = vmatpush2.xpose.msra.mxu0 0.0
  %3324 = vmatprep.subr.mxu0 0.0
  %3325 = vmatpush2.xpose.msra.mxu0 0.0
  %3326 = vmatprep.subr.mxu0 0.0
  %3327 = vmatpush2.xpose.msra.mxu0 0.0
  %3328 = vmatprep.subr.mxu0 0.0
  %3329 = vmatpush2.xpose.msra.mxu0 0.0
  %3330 = vmatprep.subr.mxu0 0.0
  %3331 = vmatpush2.xpose.msra.mxu0 0.0
  %3332 = vmatprep.mubr.f32.mxu0 0.0
  %3333 = vmatmul.mubr.f32.gmra.mxu0 %v3260
  %v3334 = vpop.f32.mrf.mxu0
  %v3335 = vadd.f32 %v31, %v3334
  %v3336 = vpop.f32.mrf.mxu0
  %3337 = vmatprep.mubr.f32.mxu0 0.0
  %3338 = vmatmul.mubr.f32.gmra.mxu0 %v3262
  %v3339 = vpop.f32.mrf.mxu0
  %v3340 = vadd.f32 %v32, %v3339
  %v3341 = vpop.f32.mrf.mxu0
  %3342 = vdwg.mxu0
  %v3343 = vsel %vm727, %v3335, -inf
  %3344 = vmax.xlane.f32.xlu0 %v3343
  %v3345 = vpop.xlane.xlu0 %3344
  %v3346 = vsel %vm727, %v3340, -inf
  %3347 = vmax.xlane.f32.xlu0 %v3346
  %v3348 = vpop.xlane.xlu0 %3347
  %v3349 = vsub.f32 %v3335, %v3345
  %v3350 = vsub.f32 %v3340, %v3348
  %v3351 = vmul.f32 %v3349, 1.442695
  %v3352 = vpow.pop %v3351
  %v3353 = vmul.f32 %v3350, 1.442695
  %v3354 = vpow.pop %v3353
  %v3355 = vsel %vm727, %v3352, 0.0
  %3356 = vadd.xlane.f32.xlu0 %v3355
  %v3357 = vpop.xlane.xlu0 %3356
  %v3358 = vsel %vm727, %v3354, 0.0
  %3359 = vadd.xlane.f32.xlu0 %v3358
  %v3360 = vpop.xlane.xlu0 %3359
  %v3361 = vrcp.pop %v3357
  %v3362 = vrcp.pop %v3360
  %v3363 = vmul.f32 %v3352, %v3361
  %v3364 = vmul.f32 %v3354, %v3362
  %3365 = vrot.lane.b32.xlu0 %v2450, 64
  %v3366 = vpop.permute.xlu0 %3365
  %3367 = vrot.lane.b32.xlu0 %v2454, 64
  %v3368 = vpop.permute.xlu0 %3367
  %v3372 = vsel %vm727, %v3363, 0
  %v3375 = vsel %vm727, %v3364, 0
  %3377 = vmatprep.subr.mxu0 0.0
  %3378 = vmatpush1.msra.mxu0 0.0
  %3379 = vmatprep.subr.mxu0 0.0
  %3380 = vmatpush1.msra.mxu0 0.0
  %3381 = vmatprep.subr.mxu0 0.0
  %3382 = vmatpush1.msra.mxu0 0.0
  %3383 = vmatprep.subr.mxu0 0.0
  %3384 = vmatpush1.msra.mxu0 0.0
  %3385 = vmatprep.subr.mxu0 0.0
  %3386 = vmatpush1.msra.mxu0 0.0
  %3387 = vmatprep.subr.mxu0 0.0
  %3388 = vmatpush1.msra.mxu0 0.0
  %3389 = vmatprep.subr.mxu0 0.0
  %3390 = vmatpush1.msra.mxu0 0.0
  %3391 = vmatprep.subr.mxu0 0.0
  %3392 = vmatpush1.msra.mxu0 0.0
  %3393 = vmatprep.subr.mxu0 0.0
  %3394 = vmatpush1.msra.mxu0 0.0
  %3395 = vmatprep.subr.mxu0 0.0
  %3396 = vmatpush1.msra.mxu0 0.0
  %3397 = vmatprep.subr.mxu0 0.0
  %3398 = vmatpush1.msra.mxu0 0.0
  %3399 = vmatprep.subr.mxu0 0.0
  %3400 = vmatpush1.msra.mxu0 0.0
  %3401 = vmatprep.subr.mxu0 0.0
  %3402 = vmatpush1.msra.mxu0 0.0
  %3403 = vmatprep.subr.mxu0 0.0
  %3404 = vmatpush1.msra.mxu0 0.0
  %3405 = vmatprep.subr.mxu0 0.0
  %3406 = vmatpush1.msra.mxu0 %v3368
  %3407 = vmatprep.subr.mxu0 0.0
  %3408 = vmatpush1.msra.mxu0 %v3366
  %3409 = vmatprep.subr.mxu0 0.0
  %3410 = vmatpush2.msra.mxu0 0.0
  %3411 = vmatprep.subr.mxu0 0.0
  %3412 = vmatpush2.msra.mxu0 0.0
  %3413 = vmatprep.subr.mxu0 0.0
  %3414 = vmatpush2.msra.mxu0 0.0
  %3415 = vmatprep.subr.mxu0 0.0
  %3416 = vmatpush2.msra.mxu0 0.0
  %3417 = vmatprep.subr.mxu0 0.0
  %3418 = vmatpush2.msra.mxu0 0.0
  %3419 = vmatprep.subr.mxu0 0.0
  %3420 = vmatpush2.msra.mxu0 0.0
  %3421 = vmatprep.subr.mxu0 0.0
  %3422 = vmatpush2.msra.mxu0 0.0
  %3423 = vmatprep.subr.mxu0 0.0
  %3424 = vmatpush2.msra.mxu0 0.0
  %3425 = vmatprep.subr.mxu0 0.0
  %3426 = vmatpush2.msra.mxu0 0.0
  %3427 = vmatprep.subr.mxu0 0.0
  %3428 = vmatpush2.msra.mxu0 0.0
  %3429 = vmatprep.subr.mxu0 0.0
  %3430 = vmatpush2.msra.mxu0 0.0
  %3431 = vmatprep.subr.mxu0 0.0
  %3432 = vmatpush2.msra.mxu0 0.0
  %3433 = vmatprep.subr.mxu0 0.0
  %3434 = vmatpush2.msra.mxu0 0.0
  %3435 = vmatprep.subr.mxu0 0.0
  %3436 = vmatpush2.msra.mxu0 0.0
  %3437 = vmatprep.subr.mxu0 0.0
  %3438 = vmatpush2.msra.mxu0 0.0
  %3439 = vmatprep.subr.mxu0 0.0
  %3440 = vmatpush2.msra.mxu0 0.0
  %3441 = vmatprep.mubr.f32.mxu0 0.0
  %3442 = vmatmul.mubr.f32.gmra.mxu0 %v3372
  %v3443 = vpop.f32.mrf.mxu0
  %v3444 = vadd.f32 0.0, %v3443
  %v3445 = vpop.f32.mrf.mxu0
  %3446 = vmatprep.mubr.f32.mxu0 0.0
  %3447 = vmatmul.mubr.f32.gmra.mxu0 %v3375
  %v3448 = vpop.f32.mrf.mxu0
  %v3449 = vadd.f32 0.0, %v3448
  %v3450 = vpop.f32.mrf.mxu0
  %3451 = vdwg.mxu0
  %v3452 = vadd.f32 %v3252, %v3444
  %v3453 = vadd.f32 %v3253, %v3449
  %3454 = vrot.lane.b32.xlu0 %v2450, 120
  %v3455 = vpop.permute.xlu0 %3454
  %3456 = vrot.lane.b32.xlu0 %v2454, 120
  %v3457 = vpop.permute.xlu0 %3456
  %3458 = vrot.lane.b32.xlu0 %v2450, 88
  %v3459 = vpop.permute.xlu0 %3458
  %3460 = vrot.lane.b32.xlu0 %v2454, 88
  %v3461 = vpop.permute.xlu0 %3460
  %v3462 = vsel %vm643, %v3455, 0
  %v3464 = vsel %vm643, %v3457, 0
  %v3466 = vsel %vm643, %v3459, 0
  %v3468 = vsel %vm643, %v3461, 0
  %3470 = vmatprep.subr.mxu0 0.0
  %3471 = vmatpush1.xpose.msra.mxu0 0.0
  %3472 = vmatprep.subr.mxu0 0.0
  %3473 = vmatpush1.xpose.msra.mxu0 0.0
  %3474 = vmatprep.subr.mxu0 0.0
  %3475 = vmatpush1.xpose.msra.mxu0 0.0
  %3476 = vmatprep.subr.mxu0 0.0
  %3477 = vmatpush1.xpose.msra.mxu0 0.0
  %3478 = vmatprep.subr.mxu0 0.0
  %3479 = vmatpush1.xpose.msra.mxu0 0.0
  %3480 = vmatprep.subr.mxu0 0.0
  %3481 = vmatpush1.xpose.msra.mxu0 0.0
  %3482 = vmatprep.subr.mxu0 0.0
  %3483 = vmatpush1.xpose.msra.mxu0 0.0
  %3484 = vmatprep.subr.mxu0 0.0
  %3485 = vmatpush1.xpose.msra.mxu0 0.0
  %3486 = vmatprep.subr.mxu0 0.0
  %3487 = vmatpush1.xpose.msra.mxu0 0.0
  %3488 = vmatprep.subr.mxu0 0.0
  %3489 = vmatpush1.xpose.msra.mxu0 0.0
  %3490 = vmatprep.subr.mxu0 0.0
  %3491 = vmatpush1.xpose.msra.mxu0 0.0
  %3492 = vmatprep.subr.mxu0 0.0
  %3493 = vmatpush1.xpose.msra.mxu0 0.0
  %3494 = vmatprep.subr.mxu0 0.0
  %3495 = vmatpush1.xpose.msra.mxu0 0.0
  %3496 = vmatprep.subr.mxu0 0.0
  %3497 = vmatpush1.xpose.msra.mxu0 0.0
  %3498 = vmatprep.subr.mxu0 0.0
  %3499 = vmatpush1.xpose.msra.mxu0 %v3468
  %3500 = vmatprep.subr.mxu0 0.0
  %3501 = vmatpush1.xpose.msra.mxu0 %v3466
  %3502 = vmatprep.subr.mxu0 0.0
  %3503 = vmatpush2.xpose.msra.mxu0 0.0
  %3504 = vmatprep.subr.mxu0 0.0
  %3505 = vmatpush2.xpose.msra.mxu0 0.0
  %3506 = vmatprep.subr.mxu0 0.0
  %3507 = vmatpush2.xpose.msra.mxu0 0.0
  %3508 = vmatprep.subr.mxu0 0.0
  %3509 = vmatpush2.xpose.msra.mxu0 0.0
  %3510 = vmatprep.subr.mxu0 0.0
  %3511 = vmatpush2.xpose.msra.mxu0 0.0
  %3512 = vmatprep.subr.mxu0 0.0
  %3513 = vmatpush2.xpose.msra.mxu0 0.0
  %3514 = vmatprep.subr.mxu0 0.0
  %3515 = vmatpush2.xpose.msra.mxu0 0.0
  %3516 = vmatprep.subr.mxu0 0.0
  %3517 = vmatpush2.xpose.msra.mxu0 0.0
  %3518 = vmatprep.subr.mxu0 0.0
  %3519 = vmatpush2.xpose.msra.mxu0 0.0
  %3520 = vmatprep.subr.mxu0 0.0
  %3521 = vmatpush2.xpose.msra.mxu0 0.0
  %3522 = vmatprep.subr.mxu0 0.0
  %3523 = vmatpush2.xpose.msra.mxu0 0.0
  %3524 = vmatprep.subr.mxu0 0.0
  %3525 = vmatpush2.xpose.msra.mxu0 0.0
  %3526 = vmatprep.subr.mxu0 0.0
  %3527 = vmatpush2.xpose.msra.mxu0 0.0
  %3528 = vmatprep.subr.mxu0 0.0
  %3529 = vmatpush2.xpose.msra.mxu0 0.0
  %3530 = vmatprep.subr.mxu0 0.0
  %3531 = vmatpush2.xpose.msra.mxu0 0.0
  %3532 = vmatprep.subr.mxu0 0.0
  %3533 = vmatpush2.xpose.msra.mxu0 0.0
  %3534 = vmatprep.mubr.f32.mxu0 0.0
  %3535 = vmatmul.mubr.f32.gmra.mxu0 %v3462
  %v3536 = vpop.f32.mrf.mxu0
  %v3537 = vadd.f32 %v31, %v3536
  %v3538 = vpop.f32.mrf.mxu0
  %3539 = vmatprep.mubr.f32.mxu0 0.0
  %3540 = vmatmul.mubr.f32.gmra.mxu0 %v3464
  %v3541 = vpop.f32.mrf.mxu0
  %v3542 = vadd.f32 %v32, %v3541
  %v3543 = vpop.f32.mrf.mxu0
  %3544 = vdwg.mxu0
  %v3545 = vsel %vm727, %v3537, -inf
  %3546 = vmax.xlane.f32.xlu0 %v3545
  %v3547 = vpop.xlane.xlu0 %3546
  %v3548 = vsel %vm727, %v3542, -inf
  %3549 = vmax.xlane.f32.xlu0 %v3548
  %v3550 = vpop.xlane.xlu0 %3549
  %v3551 = vsub.f32 %v3537, %v3547
  %v3552 = vsub.f32 %v3542, %v3550
  %v3553 = vmul.f32 %v3551, 1.442695
  %v3554 = vpow.pop %v3553
  %v3555 = vmul.f32 %v3552, 1.442695
  %v3556 = vpow.pop %v3555
  %v3557 = vsel %vm727, %v3554, 0.0
  %3558 = vadd.xlane.f32.xlu0 %v3557
  %v3559 = vpop.xlane.xlu0 %3558
  %v3560 = vsel %vm727, %v3556, 0.0
  %3561 = vadd.xlane.f32.xlu0 %v3560
  %v3562 = vpop.xlane.xlu0 %3561
  %v3563 = vrcp.pop %v3559
  %v3564 = vrcp.pop %v3562
  %v3565 = vmul.f32 %v3554, %v3563
  %v3566 = vmul.f32 %v3556, %v3564
  %3567 = vrot.lane.b32.xlu0 %v2450, 32
  %v3568 = vpop.permute.xlu0 %3567
  %3569 = vrot.lane.b32.xlu0 %v2454, 32
  %v3570 = vpop.permute.xlu0 %3569
  %v3574 = vsel %vm727, %v3565, 0
  %v3577 = vsel %vm727, %v3566, 0
  %3579 = vmatprep.subr.mxu0 0.0
  %3580 = vmatpush1.msra.mxu0 0.0
  %3581 = vmatprep.subr.mxu0 0.0
  %3582 = vmatpush1.msra.mxu0 0.0
  %3583 = vmatprep.subr.mxu0 0.0
  %3584 = vmatpush1.msra.mxu0 0.0
  %3585 = vmatprep.subr.mxu0 0.0
  %3586 = vmatpush1.msra.mxu0 0.0
  %3587 = vmatprep.subr.mxu0 0.0
  %3588 = vmatpush1.msra.mxu0 0.0
  %3589 = vmatprep.subr.mxu0 0.0
  %3590 = vmatpush1.msra.mxu0 0.0
  %3591 = vmatprep.subr.mxu0 0.0
  %3592 = vmatpush1.msra.mxu0 0.0
  %3593 = vmatprep.subr.mxu0 0.0
  %3594 = vmatpush1.msra.mxu0 0.0
  %3595 = vmatprep.subr.mxu0 0.0
  %3596 = vmatpush1.msra.mxu0 0.0
  %3597 = vmatprep.subr.mxu0 0.0
  %3598 = vmatpush1.msra.mxu0 0.0
  %3599 = vmatprep.subr.mxu0 0.0
  %3600 = vmatpush1.msra.mxu0 0.0
  %3601 = vmatprep.subr.mxu0 0.0
  %3602 = vmatpush1.msra.mxu0 0.0
  %3603 = vmatprep.subr.mxu0 0.0
  %3604 = vmatpush1.msra.mxu0 0.0
  %3605 = vmatprep.subr.mxu0 0.0
  %3606 = vmatpush1.msra.mxu0 0.0
  %3607 = vmatprep.subr.mxu0 0.0
  %3608 = vmatpush1.msra.mxu0 %v3570
  %3609 = vmatprep.subr.mxu0 0.0
  %3610 = vmatpush1.msra.mxu0 %v3568
  %3611 = vmatprep.subr.mxu0 0.0
  %3612 = vmatpush2.msra.mxu0 0.0
  %3613 = vmatprep.subr.mxu0 0.0
  %3614 = vmatpush2.msra.mxu0 0.0
  %3615 = vmatprep.subr.mxu0 0.0
  %3616 = vmatpush2.msra.mxu0 0.0
  %3617 = vmatprep.subr.mxu0 0.0
  %3618 = vmatpush2.msra.mxu0 0.0
  %3619 = vmatprep.subr.mxu0 0.0
  %3620 = vmatpush2.msra.mxu0 0.0
  %3621 = vmatprep.subr.mxu0 0.0
  %3622 = vmatpush2.msra.mxu0 0.0
  %3623 = vmatprep.subr.mxu0 0.0
  %3624 = vmatpush2.msra.mxu0 0.0
  %3625 = vmatprep.subr.mxu0 0.0
  %3626 = vmatpush2.msra.mxu0 0.0
  %3627 = vmatprep.subr.mxu0 0.0
  %3628 = vmatpush2.msra.mxu0 0.0
  %3629 = vmatprep.subr.mxu0 0.0
  %3630 = vmatpush2.msra.mxu0 0.0
  %3631 = vmatprep.subr.mxu0 0.0
  %3632 = vmatpush2.msra.mxu0 0.0
  %3633 = vmatprep.subr.mxu0 0.0
  %3634 = vmatpush2.msra.mxu0 0.0
  %3635 = vmatprep.subr.mxu0 0.0
  %3636 = vmatpush2.msra.mxu0 0.0
  %3637 = vmatprep.subr.mxu0 0.0
  %3638 = vmatpush2.msra.mxu0 0.0
  %3639 = vmatprep.subr.mxu0 0.0
  %3640 = vmatpush2.msra.mxu0 0.0
  %3641 = vmatprep.subr.mxu0 0.0
  %3642 = vmatpush2.msra.mxu0 0.0
  %3643 = vmatprep.mubr.f32.mxu0 0.0
  %3644 = vmatmul.mubr.f32.gmra.mxu0 %v3574
  %v3645 = vpop.f32.mrf.mxu0
  %v3646 = vadd.f32 0.0, %v3645
  %v3647 = vpop.f32.mrf.mxu0
  %3648 = vmatprep.mubr.f32.mxu0 0.0
  %3649 = vmatmul.mubr.f32.gmra.mxu0 %v3577
  %v3650 = vpop.f32.mrf.mxu0
  %v3651 = vadd.f32 0.0, %v3650
  %v3652 = vpop.f32.mrf.mxu0
  %3653 = vdwg.mxu0
  %v3654 = vadd.f32 %v3452, %v3646
  %v3655 = vadd.f32 %v3453, %v3651
  %3656 = vrot.lane.b32.xlu0 %v2450, 112
  %v3657 = vpop.permute.xlu0 %3656
  %3658 = vrot.lane.b32.xlu0 %v2454, 112
  %v3659 = vpop.permute.xlu0 %3658
  %3660 = vrot.lane.b32.xlu0 %v2450, 80
  %v3661 = vpop.permute.xlu0 %3660
  %3662 = vrot.lane.b32.xlu0 %v2454, 80
  %v3663 = vpop.permute.xlu0 %3662
  %v3664 = vsel %vm643, %v3657, 0
  %v3666 = vsel %vm643, %v3659, 0
  %v3668 = vsel %vm643, %v3661, 0
  %v3670 = vsel %vm643, %v3663, 0
  %3672 = vmatprep.subr.mxu0 0.0
  %3673 = vmatpush1.xpose.msra.mxu0 0.0
  %3674 = vmatprep.subr.mxu0 0.0
  %3675 = vmatpush1.xpose.msra.mxu0 0.0
  %3676 = vmatprep.subr.mxu0 0.0
  %3677 = vmatpush1.xpose.msra.mxu0 0.0
  %3678 = vmatprep.subr.mxu0 0.0
  %3679 = vmatpush1.xpose.msra.mxu0 0.0
  %3680 = vmatprep.subr.mxu0 0.0
  %3681 = vmatpush1.xpose.msra.mxu0 0.0
  %3682 = vmatprep.subr.mxu0 0.0
  %3683 = vmatpush1.xpose.msra.mxu0 0.0
  %3684 = vmatprep.subr.mxu0 0.0
  %3685 = vmatpush1.xpose.msra.mxu0 0.0
  %3686 = vmatprep.subr.mxu0 0.0
  %3687 = vmatpush1.xpose.msra.mxu0 0.0
  %3688 = vmatprep.subr.mxu0 0.0
  %3689 = vmatpush1.xpose.msra.mxu0 0.0
  %3690 = vmatprep.subr.mxu0 0.0
  %3691 = vmatpush1.xpose.msra.mxu0 0.0
  %3692 = vmatprep.subr.mxu0 0.0
  %3693 = vmatpush1.xpose.msra.mxu0 0.0
  %3694 = vmatprep.subr.mxu0 0.0
  %3695 = vmatpush1.xpose.msra.mxu0 0.0
  %3696 = vmatprep.subr.mxu0 0.0
  %3697 = vmatpush1.xpose.msra.mxu0 0.0
  %3698 = vmatprep.subr.mxu0 0.0
  %3699 = vmatpush1.xpose.msra.mxu0 0.0
  %3700 = vmatprep.subr.mxu0 0.0
  %3701 = vmatpush1.xpose.msra.mxu0 %v3670
  %3702 = vmatprep.subr.mxu0 0.0
  %3703 = vmatpush1.xpose.msra.mxu0 %v3668
  %3704 = vmatprep.subr.mxu0 0.0
  %3705 = vmatpush2.xpose.msra.mxu0 0.0
  %3706 = vmatprep.subr.mxu0 0.0
  %3707 = vmatpush2.xpose.msra.mxu0 0.0
  %3708 = vmatprep.subr.mxu0 0.0
  %3709 = vmatpush2.xpose.msra.mxu0 0.0
  %3710 = vmatprep.subr.mxu0 0.0
  %3711 = vmatpush2.xpose.msra.mxu0 0.0
  %3712 = vmatprep.subr.mxu0 0.0
  %3713 = vmatpush2.xpose.msra.mxu0 0.0
  %3714 = vmatprep.subr.mxu0 0.0
  %3715 = vmatpush2.xpose.msra.mxu0 0.0
  %3716 = vmatprep.subr.mxu0 0.0
  %3717 = vmatpush2.xpose.msra.mxu0 0.0
  %3718 = vmatprep.subr.mxu0 0.0
  %3719 = vmatpush2.xpose.msra.mxu0 0.0
  %3720 = vmatprep.subr.mxu0 0.0
  %3721 = vmatpush2.xpose.msra.mxu0 0.0
  %3722 = vmatprep.subr.mxu0 0.0
  %3723 = vmatpush2.xpose.msra.mxu0 0.0
  %3724 = vmatprep.subr.mxu0 0.0
  %3725 = vmatpush2.xpose.msra.mxu0 0.0
  %3726 = vmatprep.subr.mxu0 0.0
  %3727 = vmatpush2.xpose.msra.mxu0 0.0
  %3728 = vmatprep.subr.mxu0 0.0
  %3729 = vmatpush2.xpose.msra.mxu0 0.0
  %3730 = vmatprep.subr.mxu0 0.0
  %3731 = vmatpush2.xpose.msra.mxu0 0.0
  %3732 = vmatprep.subr.mxu0 0.0
  %3733 = vmatpush2.xpose.msra.mxu0 0.0
  %3734 = vmatprep.subr.mxu0 0.0
  %3735 = vmatpush2.xpose.msra.mxu0 0.0
  %3736 = vmatprep.mubr.f32.mxu0 0.0
  %3737 = vmatmul.mubr.f32.gmra.mxu0 %v3664
  %v3738 = vpop.f32.mrf.mxu0
  %v3739 = vadd.f32 %v31, %v3738
  %v3740 = vpop.f32.mrf.mxu0
  %3741 = vmatprep.mubr.f32.mxu0 0.0
  %3742 = vmatmul.mubr.f32.gmra.mxu0 %v3666
  %v3743 = vpop.f32.mrf.mxu0
  %v3744 = vadd.f32 %v32, %v3743
  %v3745 = vpop.f32.mrf.mxu0
  %3746 = vdwg.mxu0
  %v3747 = vsel %vm727, %v3739, -inf
  %3748 = vmax.xlane.f32.xlu0 %v3747
  %v3749 = vpop.xlane.xlu0 %3748
  %v3750 = vsel %vm727, %v3744, -inf
  %3751 = vmax.xlane.f32.xlu0 %v3750
  %v3752 = vpop.xlane.xlu0 %3751
  %v3753 = vsub.f32 %v3739, %v3749
  %v3754 = vsub.f32 %v3744, %v3752
  %v3755 = vmul.f32 %v3753, 1.442695
  %v3756 = vpow.pop %v3755
  %v3757 = vmul.f32 %v3754, 1.442695
  %v3758 = vpow.pop %v3757
  %v3759 = vsel %vm727, %v3756, 0.0
  %3760 = vadd.xlane.f32.xlu0 %v3759
  %v3761 = vpop.xlane.xlu0 %3760
  %v3762 = vsel %vm727, %v3758, 0.0
  %3763 = vadd.xlane.f32.xlu0 %v3762
  %v3764 = vpop.xlane.xlu0 %3763
  %v3765 = vrcp.pop %v3761
  %v3766 = vrcp.pop %v3764
  %v3767 = vmul.f32 %v3756, %v3765
  %v3768 = vmul.f32 %v3758, %v3766
  %v3770 = vsel %vm727, %v3767, 0
  %v3773 = vsel %vm727, %v3768, 0
  %3775 = vmatprep.subr.mxu0 0.0
  %3776 = vmatpush1.msra.mxu0 0.0
  %3777 = vmatprep.subr.mxu0 0.0
  %3778 = vmatpush1.msra.mxu0 0.0
  %3779 = vmatprep.subr.mxu0 0.0
  %3780 = vmatpush1.msra.mxu0 0.0
  %3781 = vmatprep.subr.mxu0 0.0
  %3782 = vmatpush1.msra.mxu0 0.0
  %3783 = vmatprep.subr.mxu0 0.0
  %3784 = vmatpush1.msra.mxu0 0.0
  %3785 = vmatprep.subr.mxu0 0.0
  %3786 = vmatpush1.msra.mxu0 0.0
  %3787 = vmatprep.subr.mxu0 0.0
  %3788 = vmatpush1.msra.mxu0 0.0
  %3789 = vmatprep.subr.mxu0 0.0
  %3790 = vmatpush1.msra.mxu0 0.0
  %3791 = vmatprep.subr.mxu0 0.0
  %3792 = vmatpush1.msra.mxu0 0.0
  %3793 = vmatprep.subr.mxu0 0.0
  %3794 = vmatpush1.msra.mxu0 0.0
  %3795 = vmatprep.subr.mxu0 0.0
  %3796 = vmatpush1.msra.mxu0 0.0
  %3797 = vmatprep.subr.mxu0 0.0
  %3798 = vmatpush1.msra.mxu0 0.0
  %3799 = vmatprep.subr.mxu0 0.0
  %3800 = vmatpush1.msra.mxu0 0.0
  %3801 = vmatprep.subr.mxu0 0.0
  %3802 = vmatpush1.msra.mxu0 0.0
  %3803 = vmatprep.subr.mxu0 0.0
  %3804 = vmatpush1.msra.mxu0 %v2455
  %3805 = vmatprep.subr.mxu0 0.0
  %3806 = vmatpush1.msra.mxu0 %v2451
  %3807 = vmatprep.subr.mxu0 0.0
  %3808 = vmatpush2.msra.mxu0 0.0
  %3809 = vmatprep.subr.mxu0 0.0
  %3810 = vmatpush2.msra.mxu0 0.0
  %3811 = vmatprep.subr.mxu0 0.0
  %3812 = vmatpush2.msra.mxu0 0.0
  %3813 = vmatprep.subr.mxu0 0.0
  %3814 = vmatpush2.msra.mxu0 0.0
  %3815 = vmatprep.subr.mxu0 0.0
  %3816 = vmatpush2.msra.mxu0 0.0
  %3817 = vmatprep.subr.mxu0 0.0
  %3818 = vmatpush2.msra.mxu0 0.0
  %3819 = vmatprep.subr.mxu0 0.0
  %3820 = vmatpush2.msra.mxu0 0.0
  %3821 = vmatprep.subr.mxu0 0.0
  %3822 = vmatpush2.msra.mxu0 0.0
  %3823 = vmatprep.subr.mxu0 0.0
  %3824 = vmatpush2.msra.mxu0 0.0
  %3825 = vmatprep.subr.mxu0 0.0
  %3826 = vmatpush2.msra.mxu0 0.0
  %3827 = vmatprep.subr.mxu0 0.0
  %3828 = vmatpush2.msra.mxu0 0.0
  %3829 = vmatprep.subr.mxu0 0.0
  %3830 = vmatpush2.msra.mxu0 0.0
  %3831 = vmatprep.subr.mxu0 0.0
  %3832 = vmatpush2.msra.mxu0 0.0
  %3833 = vmatprep.subr.mxu0 0.0
  %3834 = vmatpush2.msra.mxu0 0.0
  %3835 = vmatprep.subr.mxu0 0.0
  %3836 = vmatpush2.msra.mxu0 0.0
  %3837 = vmatprep.subr.mxu0 0.0
  %3838 = vmatpush2.msra.mxu0 0.0
  %3839 = vmatprep.mubr.f32.mxu0 0.0
  %3840 = vmatmul.mubr.f32.gmra.mxu0 %v3770
  %v3841 = vpop.f32.mrf.mxu0
  %v3842 = vadd.f32 0.0, %v3841
  %v3843 = vpop.f32.mrf.mxu0
  %3844 = vmatprep.mubr.f32.mxu0 0.0
  %3845 = vmatmul.mubr.f32.gmra.mxu0 %v3773
  %v3846 = vpop.f32.mrf.mxu0
  %v3847 = vadd.f32 0.0, %v3846
  %v3848 = vpop.f32.mrf.mxu0
  %3849 = vdwg.mxu0
  %v3850 = vadd.f32 %v3654, %v3842
  %v3851 = vadd.f32 %v3655, %v3847
  %3852 = vrot.lane.b32.xlu0 %v2450, 104
  %v3853 = vpop.permute.xlu0 %3852
  %3854 = vrot.lane.b32.xlu0 %v2454, 104
  %v3855 = vpop.permute.xlu0 %3854
  %3856 = vrot.lane.b32.xlu0 %v2450, 72
  %v3857 = vpop.permute.xlu0 %3856
  %3858 = vrot.lane.b32.xlu0 %v2454, 72
  %v3859 = vpop.permute.xlu0 %3858
  %v3860 = vsel %vm643, %v3853, 0
  %v3862 = vsel %vm643, %v3855, 0
  %v3864 = vsel %vm643, %v3857, 0
  %v3866 = vsel %vm643, %v3859, 0
  %3868 = vmatprep.subr.mxu0 0.0
  %3869 = vmatpush1.xpose.msra.mxu0 0.0
  %3870 = vmatprep.subr.mxu0 0.0
  %3871 = vmatpush1.xpose.msra.mxu0 0.0
  %3872 = vmatprep.subr.mxu0 0.0
  %3873 = vmatpush1.xpose.msra.mxu0 0.0
  %3874 = vmatprep.subr.mxu0 0.0
  %3875 = vmatpush1.xpose.msra.mxu0 0.0
  %3876 = vmatprep.subr.mxu0 0.0
  %3877 = vmatpush1.xpose.msra.mxu0 0.0
  %3878 = vmatprep.subr.mxu0 0.0
  %3879 = vmatpush1.xpose.msra.mxu0 0.0
  %3880 = vmatprep.subr.mxu0 0.0
  %3881 = vmatpush1.xpose.msra.mxu0 0.0
  %3882 = vmatprep.subr.mxu0 0.0
  %3883 = vmatpush1.xpose.msra.mxu0 0.0
  %3884 = vmatprep.subr.mxu0 0.0
  %3885 = vmatpush1.xpose.msra.mxu0 0.0
  %3886 = vmatprep.subr.mxu0 0.0
  %3887 = vmatpush1.xpose.msra.mxu0 0.0
  %3888 = vmatprep.subr.mxu0 0.0
  %3889 = vmatpush1.xpose.msra.mxu0 0.0
  %3890 = vmatprep.subr.mxu0 0.0
  %3891 = vmatpush1.xpose.msra.mxu0 0.0
  %3892 = vmatprep.subr.mxu0 0.0
  %3893 = vmatpush1.xpose.msra.mxu0 0.0
  %3894 = vmatprep.subr.mxu0 0.0
  %3895 = vmatpush1.xpose.msra.mxu0 0.0
  %3896 = vmatprep.subr.mxu0 0.0
  %3897 = vmatpush1.xpose.msra.mxu0 %v3866
  %3898 = vmatprep.subr.mxu0 0.0
  %3899 = vmatpush1.xpose.msra.mxu0 %v3864
  %3900 = vmatprep.subr.mxu0 0.0
  %3901 = vmatpush2.xpose.msra.mxu0 0.0
  %3902 = vmatprep.subr.mxu0 0.0
  %3903 = vmatpush2.xpose.msra.mxu0 0.0
  %3904 = vmatprep.subr.mxu0 0.0
  %3905 = vmatpush2.xpose.msra.mxu0 0.0
  %3906 = vmatprep.subr.mxu0 0.0
  %3907 = vmatpush2.xpose.msra.mxu0 0.0
  %3908 = vmatprep.subr.mxu0 0.0
  %3909 = vmatpush2.xpose.msra.mxu0 0.0
  %3910 = vmatprep.subr.mxu0 0.0
  %3911 = vmatpush2.xpose.msra.mxu0 0.0
  %3912 = vmatprep.subr.mxu0 0.0
  %3913 = vmatpush2.xpose.msra.mxu0 0.0
  %3914 = vmatprep.subr.mxu0 0.0
  %3915 = vmatpush2.xpose.msra.mxu0 0.0
  %3916 = vmatprep.subr.mxu0 0.0
  %3917 = vmatpush2.xpose.msra.mxu0 0.0
  %3918 = vmatprep.subr.mxu0 0.0
  %3919 = vmatpush2.xpose.msra.mxu0 0.0
  %3920 = vmatprep.subr.mxu0 0.0
  %3921 = vmatpush2.xpose.msra.mxu0 0.0
  %3922 = vmatprep.subr.mxu0 0.0
  %3923 = vmatpush2.xpose.msra.mxu0 0.0
  %3924 = vmatprep.subr.mxu0 0.0
  %3925 = vmatpush2.xpose.msra.mxu0 0.0
  %3926 = vmatprep.subr.mxu0 0.0
  %3927 = vmatpush2.xpose.msra.mxu0 0.0
  %3928 = vmatprep.subr.mxu0 0.0
  %3929 = vmatpush2.xpose.msra.mxu0 0.0
  %3930 = vmatprep.subr.mxu0 0.0
  %3931 = vmatpush2.xpose.msra.mxu0 0.0
  %3932 = vmatprep.mubr.f32.mxu0 0.0
  %3933 = vmatmul.mubr.f32.gmra.mxu0 %v3860
  %v3934 = vpop.f32.mrf.mxu0
  %v3935 = vadd.f32 %v31, %v3934
  %v3936 = vpop.f32.mrf.mxu0
  %3937 = vmatprep.mubr.f32.mxu0 0.0
  %3938 = vmatmul.mubr.f32.gmra.mxu0 %v3862
  %v3939 = vpop.f32.mrf.mxu0
  %v3940 = vadd.f32 %v32, %v3939
  %v3941 = vpop.f32.mrf.mxu0
  %3942 = vdwg.mxu0
  %v3943 = vsel %vm727, %v3935, -inf
  %3944 = vmax.xlane.f32.xlu0 %v3943
  %v3945 = vpop.xlane.xlu0 %3944
  %v3946 = vsel %vm727, %v3940, -inf
  %3947 = vmax.xlane.f32.xlu0 %v3946
  %v3948 = vpop.xlane.xlu0 %3947
  %v3949 = vsub.f32 %v3935, %v3945
  %v3950 = vsub.f32 %v3940, %v3948
  %v3951 = vmul.f32 %v3949, 1.442695
  %v3952 = vpow.pop %v3951
  %v3953 = vmul.f32 %v3950, 1.442695
  %v3954 = vpow.pop %v3953
  %v3955 = vsel %vm727, %v3952, 0.0
  %3956 = vadd.xlane.f32.xlu0 %v3955
  %v3957 = vpop.xlane.xlu0 %3956
  %v3958 = vsel %vm727, %v3954, 0.0
  %3959 = vadd.xlane.f32.xlu0 %v3958
  %v3960 = vpop.xlane.xlu0 %3959
  %v3961 = vrcp.pop %v3957
  %v3962 = vrcp.pop %v3960
  %v3963 = vmul.f32 %v3952, %v3961
  %v3964 = vmul.f32 %v3954, %v3962
  %3967 = vrot.lane.b32.xlu0 %v2451, 96
  %v3968 = vpop.permute.xlu0 %3967
  %3969 = vrot.lane.b32.xlu0 %v2455, 96
  %v3970 = vpop.permute.xlu0 %3969
  %v3974 = vsel %vm727, %v3963, 0
  %v3977 = vsel %vm727, %v3964, 0
  %3979 = vmatprep.subr.mxu0 0.0
  %3980 = vmatpush1.msra.mxu0 0.0
  %3981 = vmatprep.subr.mxu0 0.0
  %3982 = vmatpush1.msra.mxu0 0.0
  %3983 = vmatprep.subr.mxu0 0.0
  %3984 = vmatpush1.msra.mxu0 0.0
  %3985 = vmatprep.subr.mxu0 0.0
  %3986 = vmatpush1.msra.mxu0 0.0
  %3987 = vmatprep.subr.mxu0 0.0
  %3988 = vmatpush1.msra.mxu0 0.0
  %3989 = vmatprep.subr.mxu0 0.0
  %3990 = vmatpush1.msra.mxu0 0.0
  %3991 = vmatprep.subr.mxu0 0.0
  %3992 = vmatpush1.msra.mxu0 0.0
  %3993 = vmatprep.subr.mxu0 0.0
  %3994 = vmatpush1.msra.mxu0 0.0
  %3995 = vmatprep.subr.mxu0 0.0
  %3996 = vmatpush1.msra.mxu0 0.0
  %3997 = vmatprep.subr.mxu0 0.0
  %3998 = vmatpush1.msra.mxu0 0.0
  %3999 = vmatprep.subr.mxu0 0.0
  %4000 = vmatpush1.msra.mxu0 0.0
  %4001 = vmatprep.subr.mxu0 0.0
  %4002 = vmatpush1.msra.mxu0 0.0
  %4003 = vmatprep.subr.mxu0 0.0
  %4004 = vmatpush1.msra.mxu0 0.0
  %4005 = vmatprep.subr.mxu0 0.0
  %4006 = vmatpush1.msra.mxu0 0.0
  %4007 = vmatprep.subr.mxu0 0.0
  %4008 = vmatpush1.msra.mxu0 %v3970
  %4009 = vmatprep.subr.mxu0 0.0
  %4010 = vmatpush1.msra.mxu0 %v3968
  %4011 = vmatprep.subr.mxu0 0.0
  %4012 = vmatpush2.msra.mxu0 0.0
  %4013 = vmatprep.subr.mxu0 0.0
  %4014 = vmatpush2.msra.mxu0 0.0
  %4015 = vmatprep.subr.mxu0 0.0
  %4016 = vmatpush2.msra.mxu0 0.0
  %4017 = vmatprep.subr.mxu0 0.0
  %4018 = vmatpush2.msra.mxu0 0.0
  %4019 = vmatprep.subr.mxu0 0.0
  %4020 = vmatpush2.msra.mxu0 0.0
  %4021 = vmatprep.subr.mxu0 0.0
  %4022 = vmatpush2.msra.mxu0 0.0
  %4023 = vmatprep.subr.mxu0 0.0
  %4024 = vmatpush2.msra.mxu0 0.0
  %4025 = vmatprep.subr.mxu0 0.0
  %4026 = vmatpush2.msra.mxu0 0.0
  %4027 = vmatprep.subr.mxu0 0.0
  %4028 = vmatpush2.msra.mxu0 0.0
  %4029 = vmatprep.subr.mxu0 0.0
  %4030 = vmatpush2.msra.mxu0 0.0
  %4031 = vmatprep.subr.mxu0 0.0
  %4032 = vmatpush2.msra.mxu0 0.0
  %4033 = vmatprep.subr.mxu0 0.0
  %4034 = vmatpush2.msra.mxu0 0.0
  %4035 = vmatprep.subr.mxu0 0.0
  %4036 = vmatpush2.msra.mxu0 0.0
  %4037 = vmatprep.subr.mxu0 0.0
  %4038 = vmatpush2.msra.mxu0 0.0
  %4039 = vmatprep.subr.mxu0 0.0
  %4040 = vmatpush2.msra.mxu0 0.0
  %4041 = vmatprep.subr.mxu0 0.0
  %4042 = vmatpush2.msra.mxu0 0.0
  %4043 = vmatprep.mubr.f32.mxu0 0.0
  %4044 = vmatmul.mubr.f32.gmra.mxu0 %v3974
  %v4045 = vpop.f32.mrf.mxu0
  %v4046 = vadd.f32 0.0, %v4045
  %v4047 = vpop.f32.mrf.mxu0
  %4048 = vmatprep.mubr.f32.mxu0 0.0
  %4049 = vmatmul.mubr.f32.gmra.mxu0 %v3977
  %v4050 = vpop.f32.mrf.mxu0
  %v4051 = vadd.f32 0.0, %v4050
  %v4052 = vpop.f32.mrf.mxu0
  %4053 = vdwg.mxu0
  %v4054 = vadd.f32 %v3850, %v4046
  %v4055 = vadd.f32 %v3851, %v4051
  %v4056 = vrot.slane %v100, 4
  %v4057 = vlaneseq
  %v4058 = vshrl.u32 %v4057, 7
  %v4059 = vsub.s32 0, %v4058
  %v4060 = vrot.slane %v4056, %v4059
  %v4062 = vadd.f32 %v4054, %v4060
  %v4063 = vadd.f32 %v4055, %v4060
  %v4064 = vmax.f32 %v4062, 0.0
  %v4065 = vmax.f32 %v4063, 0.0
  %v4066 = vld [vmem:[%s3] sm:$0xff]
  %v4067 = vld [vmem:[%s3 + $0x8] sm:$0xff]
  %v4068 = vld [vmem:[%s3 + $0x10] sm:$0xff]
  %v4069 = vld [vmem:[%s3 + $0x18] sm:$0xff]
  %4070 = vrot.lane.b32.xlu0 %v98, 96
  %v4071 = vpop.permute.xlu0 %4070
  %v4072 = vrot.slane %v4071, 4
  %v4073 = vlaneseq
  %v4074 = vshrl.u32 %v4073, 7
  %v4075 = vsub.s32 0, %v4074
  %v4076 = vrot.slane %v4072, %v4075
  %v4079 = vsel %vm107, %v2247, 0
  %v4082 = vsel %vm107, %v2248, 0
  %4084 = vmatprep.subr.mxu0 0.0
  %4085 = vmatpush1.msra.mxu0 0.0
  %4086 = vmatprep.subr.mxu0 0.0
  %4087 = vmatpush1.msra.mxu0 0.0
  %4088 = vmatprep.subr.mxu0 0.0
  %4089 = vmatpush1.msra.mxu0 0.0
  %4090 = vmatprep.subr.mxu0 0.0
  %4091 = vmatpush1.msra.mxu0 0.0
  %4092 = vmatprep.subr.mxu0 0.0
  %4093 = vmatpush1.msra.mxu0 0.0
  %4094 = vmatprep.subr.mxu0 0.0
  %4095 = vmatpush1.msra.mxu0 0.0
  %4096 = vmatprep.subr.mxu0 0.0
  %4097 = vmatpush1.msra.mxu0 0.0
  %4098 = vmatprep.subr.mxu0 0.0
  %4099 = vmatpush1.msra.mxu0 0.0
  %4100 = vmatprep.subr.mxu0 0.0
  %4101 = vmatpush1.msra.mxu0 0.0
  %4102 = vmatprep.subr.mxu0 0.0
  %4103 = vmatpush1.msra.mxu0 0.0
  %4104 = vmatprep.subr.mxu0 0.0
  %4105 = vmatpush1.msra.mxu0 0.0
  %4106 = vmatprep.subr.mxu0 0.0
  %4107 = vmatpush1.msra.mxu0 0.0
  %4108 = vmatprep.subr.mxu0 0.0
  %4109 = vmatpush1.msra.mxu0 %v4069
  %4110 = vmatprep.subr.mxu0 0.0
  %4111 = vmatpush1.msra.mxu0 %v4068
  %4112 = vmatprep.subr.mxu0 0.0
  %4113 = vmatpush1.msra.mxu0 %v4067
  %4114 = vmatprep.subr.mxu0 0.0
  %4115 = vmatpush1.msra.mxu0 %v4066
  %4116 = vmatprep.subr.mxu0 0.0
  %4117 = vmatpush2.msra.mxu0 0.0
  %4118 = vmatprep.subr.mxu0 0.0
  %4119 = vmatpush2.msra.mxu0 0.0
  %4120 = vmatprep.subr.mxu0 0.0
  %4121 = vmatpush2.msra.mxu0 0.0
  %4122 = vmatprep.subr.mxu0 0.0
  %4123 = vmatpush2.msra.mxu0 0.0
  %4124 = vmatprep.subr.mxu0 0.0
  %4125 = vmatpush2.msra.mxu0 0.0
  %4126 = vmatprep.subr.mxu0 0.0
  %4127 = vmatpush2.msra.mxu0 0.0
  %4128 = vmatprep.subr.mxu0 0.0
  %4129 = vmatpush2.msra.mxu0 0.0
  %4130 = vmatprep.subr.mxu0 0.0
  %4131 = vmatpush2.msra.mxu0 0.0
  %4132 = vmatprep.subr.mxu0 0.0
  %4133 = vmatpush2.msra.mxu0 0.0
  %4134 = vmatprep.subr.mxu0 0.0
  %4135 = vmatpush2.msra.mxu0 0.0
  %4136 = vmatprep.subr.mxu0 0.0
  %4137 = vmatpush2.msra.mxu0 0.0
  %4138 = vmatprep.subr.mxu0 0.0
  %4139 = vmatpush2.msra.mxu0 0.0
  %4140 = vmatprep.subr.mxu0 0.0
  %4141 = vmatpush2.msra.mxu0 0.0
  %4142 = vmatprep.subr.mxu0 0.0
  %4143 = vmatpush2.msra.mxu0 0.0
  %4144 = vmatprep.subr.mxu0 0.0
  %4145 = vmatpush2.msra.mxu0 0.0
  %4146 = vmatprep.subr.mxu0 0.0
  %4147 = vmatpush2.msra.mxu0 0.0
  %4148 = vmatprep.mubr.f32.mxu0 0.0
  %4149 = vmatmul.mubr.f32.gmra.mxu0 %v4079
  %v4150 = vpop.f32.mrf.mxu0
  %v4151 = vadd.f32 %v4076, %v4150
  %v4152 = vpop.f32.mrf.mxu0
  %4153 = vmatprep.mubr.f32.mxu0 0.0
  %4154 = vmatmul.mubr.f32.gmra.mxu0 %v4082
  %v4155 = vpop.f32.mrf.mxu0
  %v4156 = vadd.f32 %v4076, %v4155
  %v4157 = vpop.f32.mrf.mxu0
  %4158 = vdwg.mxu0
  %s4159 = scalar_lea.vmem %s3, 32
  %v4160 = vld [vmem:[%s4159] sm:$0xff]
  %v4161 = vld [vmem:[%s4159 + $0x8] sm:$0xff]
  %v4162 = vld [vmem:[%s4159 + $0x10] sm:$0xff]
  %v4163 = vld [vmem:[%s4159 + $0x18] sm:$0xff]
  %4164 = vrot.lane.b32.xlu0 %v100, 96
  %v4165 = vpop.permute.xlu0 %4164
  %v4166 = vrot.slane %v4165, 4
  %v4167 = vlaneseq
  %v4168 = vshrl.u32 %v4167, 7
  %v4169 = vsub.s32 0, %v4168
  %v4170 = vrot.slane %v4166, %v4169
  %v4173 = vsel %vm107, %v4064, 0
  %v4176 = vsel %vm107, %v4065, 0
  %4178 = vmatprep.subr.mxu0 0.0
  %4179 = vmatpush1.msra.mxu0 0.0
  %4180 = vmatprep.subr.mxu0 0.0
  %4181 = vmatpush1.msra.mxu0 0.0
  %4182 = vmatprep.subr.mxu0 0.0
  %4183 = vmatpush1.msra.mxu0 0.0
  %4184 = vmatprep.subr.mxu0 0.0
  %4185 = vmatpush1.msra.mxu0 0.0
  %4186 = vmatprep.subr.mxu0 0.0
  %4187 = vmatpush1.msra.mxu0 0.0
  %4188 = vmatprep.subr.mxu0 0.0
  %4189 = vmatpush1.msra.mxu0 0.0
  %4190 = vmatprep.subr.mxu0 0.0
  %4191 = vmatpush1.msra.mxu0 0.0
  %4192 = vmatprep.subr.mxu0 0.0
  %4193 = vmatpush1.msra.mxu0 0.0
  %4194 = vmatprep.subr.mxu0 0.0
  %4195 = vmatpush1.msra.mxu0 0.0
  %4196 = vmatprep.subr.mxu0 0.0
  %4197 = vmatpush1.msra.mxu0 0.0
  %4198 = vmatprep.subr.mxu0 0.0
  %4199 = vmatpush1.msra.mxu0 0.0
  %4200 = vmatprep.subr.mxu0 0.0
  %4201 = vmatpush1.msra.mxu0 0.0
  %4202 = vmatprep.subr.mxu0 0.0
  %4203 = vmatpush1.msra.mxu0 %v4163
  %4204 = vmatprep.subr.mxu0 0.0
  %4205 = vmatpush1.msra.mxu0 %v4162
  %4206 = vmatprep.subr.mxu0 0.0
  %4207 = vmatpush1.msra.mxu0 %v4161
  %4208 = vmatprep.subr.mxu0 0.0
  %4209 = vmatpush1.msra.mxu0 %v4160
  %4210 = vmatprep.subr.mxu0 0.0
  %4211 = vmatpush2.msra.mxu0 0.0
  %4212 = vmatprep.subr.mxu0 0.0
  %4213 = vmatpush2.msra.mxu0 0.0
  %4214 = vmatprep.subr.mxu0 0.0
  %4215 = vmatpush2.msra.mxu0 0.0
  %4216 = vmatprep.subr.mxu0 0.0
  %4217 = vmatpush2.msra.mxu0 0.0
  %4218 = vmatprep.subr.mxu0 0.0
  %4219 = vmatpush2.msra.mxu0 0.0
  %4220 = vmatprep.subr.mxu0 0.0
  %4221 = vmatpush2.msra.mxu0 0.0
  %4222 = vmatprep.subr.mxu0 0.0
  %4223 = vmatpush2.msra.mxu0 0.0
  %4224 = vmatprep.subr.mxu0 0.0
  %4225 = vmatpush2.msra.mxu0 0.0
  %4226 = vmatprep.subr.mxu0 0.0
  %4227 = vmatpush2.msra.mxu0 0.0
  %4228 = vmatprep.subr.mxu0 0.0
  %4229 = vmatpush2.msra.mxu0 0.0
  %4230 = vmatprep.subr.mxu0 0.0
  %4231 = vmatpush2.msra.mxu0 0.0
  %4232 = vmatprep.subr.mxu0 0.0
  %4233 = vmatpush2.msra.mxu0 0.0
  %4234 = vmatprep.subr.mxu0 0.0
  %4235 = vmatpush2.msra.mxu0 0.0
  %4236 = vmatprep.subr.mxu0 0.0
  %4237 = vmatpush2.msra.mxu0 0.0
  %4238 = vmatprep.subr.mxu0 0.0
  %4239 = vmatpush2.msra.mxu0 0.0
  %4240 = vmatprep.subr.mxu0 0.0
  %4241 = vmatpush2.msra.mxu0 0.0
  %4242 = vmatprep.mubr.f32.mxu0 0.0
  %4243 = vmatmul.mubr.f32.gmra.mxu0 %v4173
  %v4244 = vpop.f32.mrf.mxu0
  %v4245 = vadd.f32 %v4170, %v4244
  %v4246 = vpop.f32.mrf.mxu0
  %4247 = vmatprep.mubr.f32.mxu0 0.0
  %4248 = vmatmul.mubr.f32.gmra.mxu0 %v4176
  %v4249 = vpop.f32.mrf.mxu0
  %v4250 = vadd.f32 %v4170, %v4249
  %v4251 = vpop.f32.mrf.mxu0
  %4252 = vdwg.mxu0
  %v4253 = vmul.f32 %v4064, %v4151
  %v4254 = vmul.f32 %v4065, %v4156
  %4257 = vrot.lane.b32.xlu0 %v4151, 96
  %v4258 = vpop.permute.xlu0 %4257
  %4259 = vrot.lane.b32.xlu0 %v4156, 96
  %v4260 = vpop.permute.xlu0 %4259
  %v4263 = vadd.f32 %v4253, %v4258
  %v4264 = vadd.f32 %v4254, %v4260
  %v4265 = vmax.f32 %v4263, 0.0
  %v4266 = vmax.f32 %v4264, 0.0
  %v4267 = vadd.f32 %v23, %v4265
  %v4268 = vadd.f32 %v24, %v4266
  %v4269 = vmul.f32 %v2247, %v4245
  %v4270 = vmul.f32 %v2248, %v4250
  %4273 = vrot.lane.b32.xlu0 %v4245, 96
  %v4274 = vpop.permute.xlu0 %4273
  %4275 = vrot.lane.b32.xlu0 %v4250, 96
  %v4276 = vpop.permute.xlu0 %4275
  %v4279 = vadd.f32 %v4269, %v4274
  %v4280 = vadd.f32 %v4270, %v4276
  %v4281 = vmax.f32 %v4279, 0.0
  %v4282 = vmax.f32 %v4280, 0.0
  %v4283 = vadd.f32 %v20, %v4281
  %v4284 = vadd.f32 %v21, %v4282
  %4287 = vrot.lane.b32.xlu0 %v4283, 32
  %v4288 = vpop.permute.xlu0 %4287
  %4289 = vrot.lane.b32.xlu0 %v4284, 32
  %v4290 = vpop.permute.xlu0 %4289
  %v4293 = vsel %vm107, %v4267, %v4288
  %v4294 = vsel %vm107, %v4268, %v4290
  %vm4295 = vcmask 523264
  %4296 = vst.msk [vmem:[%s5] sm:$0xff] %vm4295, %v4293
  %4297 = vst.msk [vmem:[%s5 + $0x8] sm:$0xff] %vm4295, %v4294
  // Predicated region
  $region22: #{explicit_relation_encoder.1} parent=0 // pred_check
    _
  $region23: #{explicit_relation_encoder.1} parent=0 // pred_check_branch
    %4299 = sbr.rel (0) target = $region25
  $region24: #{explicit_relation_encoder.1} parent=0 // pred_region
    _
  $region25: #{explicit_relation_encoder.1} parent=0 // pred_fallthru
    _
  // Predicated region
  $region26: #{explicit_relation_encoder.1} parent=0 // pred_check
    _
  $region27: #{explicit_relation_encoder.1} parent=0 // pred_check_branch
    %4301 = sbr.rel (0) target = $region29
  $region28: #{explicit_relation_encoder.1} parent=0 // pred_region
    _
  $region29: #{explicit_relation_encoder.1} parent=0 // pred_fallthru
    _

</llo_original>
